<compile_context>
chip_gen: v5e
topology: v5e:2x2
jax: 0.10.0
libtpu: 0.0.40
codegen_flags: <defaults>
</compile_context>

<pallas_src>
import functools
import math

import jax
import jax.numpy as jnp
from jax.experimental import pallas as pl
from jax.experimental.pallas import tpu as pltpu

# ----------------------------------------------------------------------------
# Model configuration (small, deterministic)
# ----------------------------------------------------------------------------
BLOCK_SETTING = [
    dict(num_heads=1, input_channels=32, output_channels=32),
    dict(num_heads=2, input_channels=32, output_channels=64),
]
INPUT_SIZE = (2, 4, 4)          # (T, H, W); scaled down from the hardcoded [8,56,56]
PROJ_AFTER_ATTN = True
RESIDUAL_POOL = True
RESIDUAL_WITH_CLS = False
LN_EPS = 1e-6

# Packed per-block vector slab layout (rows of a (VEC_ROWS, 4*attn_dim) fp32 array)
VEC_ROWS = 11
ROW_NORM1_G, ROW_NORM1_B = 0, 1
ROW_QKV_B = 2                   # K part pre-scaled by 1/sqrt(head_dim)
ROW_ATTN_PB = 3
ROW_PROJ_B = 4
ROW_NORM2_G, ROW_NORM2_B = 5, 6
ROW_MLP_B1 = 7
ROW_MLP_B2 = 8
ROW_FNORM_G, ROW_FNORM_B = 9, 10   # final LayerNorm (last block's slab only)


# ----------------------------------------------------------------------------
# Fused Pallas kernel: whole forward for one batch element per grid step
# ----------------------------------------------------------------------------
def _layernorm_fp32(x, g, b, eps):
    mu = jnp.mean(x, axis=-1, keepdims=True)
    var = jnp.mean(jnp.square(x - mu), axis=-1, keepdims=True)
    return (x - mu) * jax.lax.rsqrt(var + eps) * g + b


def _mfvit_fused_kernel(*refs, block_meta, eps, residual_pool, residual_with_cls):
    """refs = (x_ref, per-block params..., o_ref).  Per block the param refs are
    (vec_slab, qkv_w, attn_proj_w, [project_w], mlp_w1, mlp_w2)."""
    x_ref = refs[0]
    o_ref = refs[-1]
    prefs = refs[1:-1]

    x = x_ref[0].astype(jnp.float32)                       # (N, C0) fp32 residual stream
    n_tok = x.shape[0]

    # Hoisted CLS-row mask (residual_pool adds q only to non-CLS rows)
    non_cls = (jax.lax.broadcasted_iota(jnp.int32, (n_tok, 1), 0) != 0).astype(jnp.float32)

    idx = 0
    last_vec = None
    last_cout = None
    for meta in block_meta:                                # static unroll over blocks
        nh, hd = meta["num_heads"], meta["head_dim"]
        attn_dim, cin, cout = meta["attn_dim"], meta["cin"], meta["cout"]
        hidden = meta["hidden"]

        vec = prefs[idx][...]; idx += 1                    # (VEC_ROWS, 4A) fp32
        qkv_w = prefs[idx][...]; idx += 1                  # (cin, 3A) bf16, K pre-scaled
        attn_pw = prefs[idx][...]; idx += 1                # (A, A) bf16
        if meta["has_project"]:
            proj_w = prefs[idx][...]; idx += 1             # (cin, cout) bf16
        else:
            proj_w = None
        mlp_w1 = prefs[idx][...]; idx += 1                 # (A, 4A) bf16
        mlp_w2 = prefs[idx][...]; idx += 1                 # (4A, cout) bf16

        g1, b1 = vec[ROW_NORM1_G:ROW_NORM1_G + 1, :cin], vec[ROW_NORM1_B:ROW_NORM1_B + 1, :cin]
        qkv_b = vec[ROW_QKV_B:ROW_QKV_B + 1, :3 * attn_dim]
        attn_pb = vec[ROW_ATTN_PB:ROW_ATTN_PB + 1, :attn_dim]
        proj_b = vec[ROW_PROJ_B:ROW_PROJ_B + 1, :cout]
        g2, b2 = vec[ROW_NORM2_G:ROW_NORM2_G + 1, :attn_dim], vec[ROW_NORM2_B:ROW_NORM2_B + 1, :attn_dim]
        mlp_b1 = vec[ROW_MLP_B1:ROW_MLP_B1 + 1, :hidden]
        mlp_b2 = vec[ROW_MLP_B2:ROW_MLP_B2 + 1, :cout]

        # --- attention: LN1 -> fused QKV -> per-head attn -> out proj -> residual
        xn = _layernorm_fp32(x, g1, b1, eps)
        xn_bf = xn.astype(jnp.bfloat16)
        qkv = jnp.dot(xn_bf, qkv_w, preferred_element_type=jnp.float32) + qkv_b  # (N, 3A)

        attn_acc = None
        for h in range(nh):                                # static unroll over heads
            q = qkv[:, h * hd:(h + 1) * hd]                            # unscaled (residual_pool)
            k = qkv[:, attn_dim + h * hd:attn_dim + (h + 1) * hd]      # pre-scaled by 1/sqrt(hd)
            v = qkv[:, 2 * attn_dim + h * hd:2 * attn_dim + (h + 1) * hd]

            # scores: contract last axes directly (no k transpose / re-layout)
            s = jax.lax.dot_general(
                q.astype(jnp.bfloat16), k.astype(jnp.bfloat16),
                dimension_numbers=(((1,), (1,)), ((), ())),
                preferred_element_type=jnp.float32)                    # (N, N)

            # softmax in fp32, denominator reciprocal on the EUP
            s = s - jnp.max(s, axis=-1, keepdims=True)
            p = jnp.exp(s)
            p = p * pl.reciprocal(jnp.sum(p, axis=-1, keepdims=True), approx=True)

            out_h = jnp.dot(p.astype(jnp.bfloat16), v.astype(jnp.bfloat16),
                            preferred_element_type=jnp.float32)        # (N, hd)
            if residual_pool:
                out_h = out_h + (q if residual_with_cls else q * non_cls)

            # fold this head into the output projection (avoids a concat):
            # concat_h(out_h) @ W == sum_h out_h @ W[h*hd:(h+1)*hd, :]
            part = jnp.dot(out_h.astype(jnp.bfloat16),
                           attn_pw[h * hd:(h + 1) * hd, :],
                           preferred_element_type=jnp.float32)         # (N, A)
            attn_acc = part if attn_acc is None else attn_acc + part
        attn_out = attn_acc + attn_pb

        if proj_w is not None:     # proj_after_attn & cin != cout -> project(x_norm1)
            x_res = jnp.dot(xn_bf, proj_w, preferred_element_type=jnp.float32) + proj_b
        else:
            x_res = x
        x = x_res + attn_out                                           # stays in VMEM/vregs

        # --- MLP: LN2 -> linear + exact-erf GELU -> linear -> residual
        xn2 = _layernorm_fp32(x, g2, b2, eps)
        hmid = jnp.dot(xn2.astype(jnp.bfloat16), mlp_w1,
                       preferred_element_type=jnp.float32) + mlp_b1     # (N, 4A)
        hmid = 0.5 * hmid * (1.0 + jax.lax.erf(hmid * 0.7071067811865476))
        x = x + (jnp.dot(hmid.astype(jnp.bfloat16), mlp_w2,
                         preferred_element_type=jnp.float32) + mlp_b2)

        last_vec, last_cout = vec, cout

    # --- final LayerNorm on the CLS row only (fused epilogue; no extra launch)
    cls = x[0:1, :]
    y = _layernorm_fp32(cls,
                        last_vec[ROW_FNORM_G:ROW_FNORM_G + 1, :last_cout],
                        last_vec[ROW_FNORM_B:ROW_FNORM_B + 1, :last_cout], eps)
    o_ref[0] = y.astype(o_ref.dtype)


# ----------------------------------------------------------------------------
# Wrapper: one pallas_call for the whole forward, grid over batch ("parallel")
# ----------------------------------------------------------------------------
def _const_spec(arr):
    nd = arr.ndim
    return pl.BlockSpec(arr.shape, lambda b, _nd=nd: (0,) * _nd)


def pos_encoding(x, p, T, H, W):
    # PositionalEncoding.forward (absolute pos embed path)
    hw = H * W
    pos = jnp.repeat(p["temporal_pos"], hw, axis=0) + jnp.tile(p["spatial_pos"], (T, 1))
    pos = jnp.concatenate([p["class_pos"][None, :], pos], axis=0)        # (1+T*hw, E)
    cls = jnp.broadcast_to(p["class_token"][None, None, :],
                           (x.shape[0], 1, x.shape[-1]))
    x = jnp.concatenate([cls, x], axis=1)
    return x + pos[None]


def mfvit_forward(x, params):
    # x: (B, C, T, H, W)  ->  tokens (B, 1+T*H*W, C)  (== x.flatten(2).transpose(1,2))
    B, C, T, H, W = x.shape
    tokens = x.reshape(B, C, T * H * W).transpose(0, 2, 1)
    tokens = pos_encoding(tokens, params["pos"], T, H, W)
    N = tokens.shape[1]

    inputs = [tokens]
    in_specs = [pl.BlockSpec((1, N, C), lambda b: (b, 0, 0))]
    block_meta = []
    for bi, cnf in enumerate(BLOCK_SETTING):
        bp = params["blocks"][bi]
        cin, cout, nh = cnf["input_channels"], cnf["output_channels"], cnf["num_heads"]
        attn_dim = cout if PROJ_AFTER_ATTN else cin
        has_project = "project_w" in bp
        block_meta.append(dict(num_heads=nh, head_dim=attn_dim // nh, cin=cin,
                               cout=cout, attn_dim=attn_dim, hidden=4 * attn_dim,
                               has_project=has_project))
        order = ["vec", "qkv_w", "attn_proj_w"]
        if has_project:
            order.append("project_w")
        order += ["mlp_w1", "mlp_w2"]
        for name in order:
            arr = bp[name]
            inputs.append(arr)
            in_specs.append(_const_spec(arr))

    cout_final = BLOCK_SETTING[-1]["output_channels"]
    kernel = functools.partial(
        _mfvit_fused_kernel, block_meta=tuple(block_meta), eps=LN_EPS,
        residual_pool=RESIDUAL_POOL, residual_with_cls=RESIDUAL_WITH_CLS)

    out = pl.pallas_call(
        kernel,
        out_shape=jax.ShapeDtypeStruct((B, 1, cout_final), jnp.float32),
        grid=(B,),
        in_specs=in_specs,
        out_specs=pl.BlockSpec((1, 1, cout_final), lambda b: (b, 0, 0)),
        compiler_params=pltpu.CompilerParams(dimension_semantics=("parallel",)),
    )(*inputs)
    return out[:, 0, :]


# ----------------------------------------------------------------------------
# Deterministic parameter init + packing (trunc_normal std=0.02 like PyTorch).
# Matmul weights stored bf16 (fp32 accumulation in-kernel); small vectors are
# packed into one fp32 slab per block; the 1/sqrt(head_dim) score scale is
# folded into the K projection columns at prep time.
# ----------------------------------------------------------------------------
def init_params(key):
    keys = iter(jax.random.split(key, 64))

    def tn(shape):
        return 0.02 * jax.random.truncated_normal(next(keys), -2.0, 2.0, shape, jnp.float32)

    E0 = BLOCK_SETTING[0]["input_channels"]
    T, H, W = INPUT_SIZE
    params = {
        "pos": dict(
            class_token=tn((E0,)),
            spatial_pos=tn((H * W, E0)),
            temporal_pos=tn((T, E0)),
            class_pos=tn((E0,)),
        )
    }

    cout_final = BLOCK_SETTING[-1]["output_channels"]
    final_norm_g = jnp.ones((cout_final,), jnp.float32)
    final_norm_b = jnp.zeros((cout_final,), jnp.float32)

    blocks = []
    n_blocks = len(BLOCK_SETTING)
    for bi, cnf in enumerate(BLOCK_SETTING):
        cin, cout, nh = cnf["input_channels"], cnf["output_channels"], cnf["num_heads"]
        attn_dim = cout if PROJ_AFTER_ATTN else cin
        hd = attn_dim // nh
        hidden = 4 * attn_dim
        scale = 1.0 / math.sqrt(hd)

        qkv_w = tn((cin, 3 * attn_dim))
        qkv_b = jnp.zeros((3 * attn_dim,), jnp.float32)
        # Fold the score scale into the K projection (q must stay unscaled for
        # the residual_pool shortcut); (q*s) @ k^T == q @ (k*s)^T.
        qkv_w = qkv_w.at[:, attn_dim:2 * attn_dim].multiply(scale)
        qkv_b = qkv_b.at[attn_dim:2 * attn_dim].multiply(scale)

        attn_pw = tn((attn_dim, attn_dim))
        mlp_w1 = tn((attn_dim, hidden))
        mlp_w2 = tn((hidden, cout))
        has_project = cin != cout
        proj_w = tn((cin, cout)) if has_project else None

        # Packed small-vector slab: one DMA per block instead of ~10.
        width = hidden
        vec = jnp.zeros((VEC_ROWS, width), jnp.float32)

        def put(v, r, val):
            return v.at[r, :val.shape[0]].set(val)

        vec = put(vec, ROW_NORM1_G, jnp.ones((cin,), jnp.float32))
        vec = put(vec, ROW_NORM1_B, jnp.zeros((cin,), jnp.float32))
        vec = put(vec, ROW_QKV_B, qkv_b)
        vec = put(vec, ROW_ATTN_PB, jnp.zeros((attn_dim,), jnp.float32))
        vec = put(vec, ROW_PROJ_B, jnp.zeros((cout,), jnp.float32))
        vec = put(vec, ROW_NORM2_G, jnp.ones((attn_dim,), jnp.float32))
        vec = put(vec, ROW_NORM2_B, jnp.zeros((attn_dim,), jnp.float32))
        vec = put(vec, ROW_MLP_B1, jnp.zeros((hidden,), jnp.float32))
        vec = put(vec, ROW_MLP_B2, jnp.zeros((cout,), jnp.float32))
        if bi == n_blocks - 1:          # final LayerNorm rides in the last block's slab
            vec = put(vec, ROW_FNORM_G, final_norm_g)
            vec = put(vec, ROW_FNORM_B, final_norm_b)

        bp = dict(
            vec=vec,
            qkv_w=qkv_w.astype(jnp.bfloat16),
            attn_proj_w=attn_pw.astype(jnp.bfloat16),
            mlp_w1=mlp_w1.astype(jnp.bfloat16),
            mlp_w2=mlp_w2.astype(jnp.bfloat16),
        )
        if has_project:
            bp["project_w"] = proj_w.astype(jnp.bfloat16)
        blocks.append(bp)
    params["blocks"] = blocks
    return params


# ----------------------------------------------------------------------------
if __name__ == "__main__":
    key = jax.random.PRNGKey(0)
    k_param, k_x = jax.random.split(key)
    params = init_params(k_param)

    B = 2
    C = BLOCK_SETTING[0]["input_channels"]
    T, H, W = INPUT_SIZE
    x = jax.random.normal(k_x, (B, C, T, H, W), dtype=jnp.float32)

    fwd = jax.jit(mfvit_forward)
    out = fwd(x, params)
    jax.block_until_ready(out)
    assert out.shape == (B, BLOCK_SETTING[-1]["output_channels"])
    assert jnp.all(jnp.isfinite(out))
    print("KERNEL_OK")
</pallas_src>

<mosaic_0001>
module attributes {stable_mosaic.version = 11 : i64} {
  func.func @_mfvit_fused_kernel(%arg0: i32, %arg1: memref<1x33x32xf32, #tpu.memory_space<vmem>>, %arg2: memref<11x128xf32, #tpu.memory_space<vmem>>, %arg3: memref<32x96xbf16, #tpu.memory_space<vmem>>, %arg4: memref<32x32xbf16, #tpu.memory_space<vmem>>, %arg5: memref<32x128xbf16, #tpu.memory_space<vmem>>, %arg6: memref<128x32xbf16, #tpu.memory_space<vmem>>, %arg7: memref<11x256xf32, #tpu.memory_space<vmem>>, %arg8: memref<32x192xbf16, #tpu.memory_space<vmem>>, %arg9: memref<64x64xbf16, #tpu.memory_space<vmem>>, %arg10: memref<32x64xbf16, #tpu.memory_space<vmem>>, %arg11: memref<64x256xbf16, #tpu.memory_space<vmem>>, %arg12: memref<256x64xbf16, #tpu.memory_space<vmem>>, %arg13: memref<1x1x64xf32, #tpu.memory_space<vmem>>) attributes {dimension_semantics = [#tpu.dimension_semantics<parallel>], iteration_bounds = array<i64: 2>, scalar_prefetch = 0 : i64, scratch_operands = 0 : i64, tpu.core_type = #tpu.core_type<tc>, window_params = [{transform_indices = @transform_0, window_bounds = array<i64: 1, 33, 32>}, {pipeline_mode = #tpu.pipeline_mode<synchronous>, transform_indices = @transform_1, window_bounds = array<i64: 11, 128>}, {pipeline_mode = #tpu.pipeline_mode<synchronous>, transform_indices = @transform_2, window_bounds = array<i64: 32, 96>}, {pipeline_mode = #tpu.pipeline_mode<synchronous>, transform_indices = @transform_3, window_bounds = array<i64: 32, 32>}, {pipeline_mode = #tpu.pipeline_mode<synchronous>, transform_indices = @transform_4, window_bounds = array<i64: 32, 128>}, {pipeline_mode = #tpu.pipeline_mode<synchronous>, transform_indices = @transform_5, window_bounds = array<i64: 128, 32>}, {pipeline_mode = #tpu.pipeline_mode<synchronous>, transform_indices = @transform_6, window_bounds = array<i64: 11, 256>}, {pipeline_mode = #tpu.pipeline_mode<synchronous>, transform_indices = @transform_7, window_bounds = array<i64: 32, 192>}, {pipeline_mode = #tpu.pipeline_mode<synchronous>, transform_indices = @transform_8, window_bounds = array<i64: 64, 64>}, {pipeline_mode = #tpu.pipeline_mode<synchronous>, transform_indices = @transform_9, window_bounds = array<i64: 32, 64>}, {pipeline_mode = #tpu.pipeline_mode<synchronous>, transform_indices = @transform_10, window_bounds = array<i64: 64, 256>}, {pipeline_mode = #tpu.pipeline_mode<synchronous>, transform_indices = @transform_11, window_bounds = array<i64: 256, 64>}, {transform_indices = @transform_12, window_bounds = array<i64: 1, 1, 64>}]} {
    %c0 = arith.constant 0 : index
    %c0_0 = arith.constant 0 : index
    %c0_1 = arith.constant 0 : index
    %0 = vector.load %arg1[%c0, %c0_0, %c0_1] : memref<1x33x32xf32, #tpu.memory_space<vmem>>, vector<1x33x32xf32>
    %1 = vector.shape_cast %0 : vector<1x33x32xf32> to vector<33x32xf32>
    %2 = tpu.iota {dimensions = array<i32: 0>} : vector<33x1xi32>
    %c0_i32 = arith.constant 0 : i32
    %3 = vector.broadcast %c0_i32 : i32 to vector<33x1xi32>
    %4 = arith.cmpi ne, %2, %3 : vector<33x1xi32>
    %5 = arith.extui %4 : vector<33x1xi1> to vector<33x1xi32>
    %6 = arith.sitofp %5 : vector<33x1xi32> to vector<33x1xf32>
    %c0_2 = arith.constant 0 : index
    %c0_3 = arith.constant 0 : index
    %7 = vector.load %arg2[%c0_2, %c0_3] : memref<11x128xf32, #tpu.memory_space<vmem>>, vector<11x128xf32>
    %c0_4 = arith.constant 0 : index
    %c0_5 = arith.constant 0 : index
    %8 = vector.load %arg3[%c0_4, %c0_5] : memref<32x96xbf16, #tpu.memory_space<vmem>>, vector<32x96xbf16>
    %c0_6 = arith.constant 0 : index
    %c0_7 = arith.constant 0 : index
    %9 = vector.load %arg4[%c0_6, %c0_7] : memref<32x32xbf16, #tpu.memory_space<vmem>>, vector<32x32xbf16>
    %c0_8 = arith.constant 0 : index
    %c0_9 = arith.constant 0 : index
    %10 = vector.load %arg5[%c0_8, %c0_9] : memref<32x128xbf16, #tpu.memory_space<vmem>>, vector<32x128xbf16>
    %c0_10 = arith.constant 0 : index
    %c0_11 = arith.constant 0 : index
    %11 = vector.load %arg6[%c0_10, %c0_11] : memref<128x32xbf16, #tpu.memory_space<vmem>>, vector<128x32xbf16>
    %12 = vector.extract_strided_slice %7 {offsets = [0, 0], sizes = [1, 32], strides = [1, 1]} : vector<11x128xf32> to vector<1x32xf32>
    %13 = vector.extract_strided_slice %7 {offsets = [1, 0], sizes = [1, 32], strides = [1, 1]} : vector<11x128xf32> to vector<1x32xf32>
    %14 = vector.extract_strided_slice %7 {offsets = [2, 0], sizes = [1, 96], strides = [1, 1]} : vector<11x128xf32> to vector<1x96xf32>
    %15 = vector.extract_strided_slice %7 {offsets = [3, 0], sizes = [1, 32], strides = [1, 1]} : vector<11x128xf32> to vector<1x32xf32>
    %16 = vector.extract_strided_slice %7 {offsets = [5, 0], sizes = [1, 32], strides = [1, 1]} : vector<11x128xf32> to vector<1x32xf32>
    %17 = vector.extract_strided_slice %7 {offsets = [6, 0], sizes = [1, 32], strides = [1, 1]} : vector<11x128xf32> to vector<1x32xf32>
    %18 = vector.extract_strided_slice %7 {offsets = [7, 0], sizes = [1, 128], strides = [1, 1]} : vector<11x128xf32> to vector<1x128xf32>
    %19 = vector.extract_strided_slice %7 {offsets = [8, 0], sizes = [1, 32], strides = [1, 1]} : vector<11x128xf32> to vector<1x32xf32>
    %cst = arith.constant dense<0.000000e+00> : vector<33xf32>
    %20 = vector.multi_reduction <add>, %1, %cst [1] : vector<33x32xf32> to vector<33xf32>
    %21 = vector.shape_cast %20 : vector<33xf32> to vector<33x1xf32>
    %cst_12 = arith.constant 3.200000e+01 : f32
    %22 = vector.broadcast %cst_12 : f32 to vector<33x1xf32>
    %23 = arith.divf %21, %22 : vector<33x1xf32>
    %24 = vector.broadcast %23 : vector<33x1xf32> to vector<33x32xf32>
    %25 = arith.subf %1, %24 : vector<33x32xf32>
    %26 = arith.mulf %25, %25 : vector<33x32xf32>
    %cst_13 = arith.constant dense<0.000000e+00> : vector<33xf32>
    %27 = vector.multi_reduction <add>, %26, %cst_13 [1] : vector<33x32xf32> to vector<33xf32>
    %28 = vector.shape_cast %27 : vector<33xf32> to vector<33x1xf32>
    %cst_14 = arith.constant 3.200000e+01 : f32
    %29 = vector.broadcast %cst_14 : f32 to vector<33x1xf32>
    %30 = arith.divf %28, %29 : vector<33x1xf32>
    %31 = vector.broadcast %23 : vector<33x1xf32> to vector<33x32xf32>
    %32 = arith.subf %1, %31 : vector<33x32xf32>
    %cst_15 = arith.constant 9.99999997E-7 : f32
    %33 = vector.broadcast %cst_15 : f32 to vector<33x1xf32>
    %34 = arith.addf %30, %33 : vector<33x1xf32>
    %35 = math.rsqrt %34 : vector<33x1xf32>
    %36 = vector.broadcast %35 : vector<33x1xf32> to vector<33x32xf32>
    %37 = arith.mulf %32, %36 : vector<33x32xf32>
    %38 = vector.broadcast %12 : vector<1x32xf32> to vector<33x32xf32>
    %39 = arith.mulf %37, %38 : vector<33x32xf32>
    %40 = vector.broadcast %13 : vector<1x32xf32> to vector<33x32xf32>
    %41 = arith.addf %39, %40 : vector<33x32xf32>
    %42 = arith.truncf %41 : vector<33x32xf32> to vector<33x32xbf16>
    %cst_16 = arith.constant dense<0.000000e+00> : vector<33x96xf32>
    %43 = tpu.matmul %42, %8, %cst_16 {dimension_numbers = #tpu.dot_dimension_numbers<[1], [0], [0], [1], [0, 0, 1, 1], [], []>} : vector<33x32xbf16>, vector<32x96xbf16>, vector<33x96xf32> -> vector<33x96xf32>
    %44 = vector.broadcast %14 : vector<1x96xf32> to vector<33x96xf32>
    %45 = arith.addf %43, %44 : vector<33x96xf32>
    %46 = vector.extract_strided_slice %45 {offsets = [0, 0], sizes = [33, 32], strides = [1, 1]} : vector<33x96xf32> to vector<33x32xf32>
    %47 = vector.extract_strided_slice %45 {offsets = [0, 32], sizes = [33, 32], strides = [1, 1]} : vector<33x96xf32> to vector<33x32xf32>
    %48 = vector.extract_strided_slice %45 {offsets = [0, 64], sizes = [33, 32], strides = [1, 1]} : vector<33x96xf32> to vector<33x32xf32>
    %49 = arith.truncf %46 : vector<33x32xf32> to vector<33x32xbf16>
    %50 = arith.truncf %47 : vector<33x32xf32> to vector<33x32xbf16>
    %cst_17 = arith.constant dense<0.000000e+00> : vector<33x33xf32>
    %51 = tpu.matmul %49, %50, %cst_17 {dimension_numbers = #tpu.dot_dimension_numbers<[1], [1], [0], [0], [0, 0, 1, 0], [], []>} : vector<33x32xbf16>, vector<33x32xbf16>, vector<33x33xf32> -> vector<33x33xf32>
    %cst_18 = arith.constant dense<0xFF800000> : vector<33xf32>
    %52 = vector.multi_reduction <maximumf>, %51, %cst_18 [1] : vector<33x33xf32> to vector<33xf32>
    %53 = vector.shape_cast %52 : vector<33xf32> to vector<33x1xf32>
    %54 = vector.broadcast %53 : vector<33x1xf32> to vector<33x33xf32>
    %55 = arith.subf %51, %54 : vector<33x33xf32>
    %56 = math.exp %55 : vector<33x33xf32>
    %cst_19 = arith.constant dense<0.000000e+00> : vector<33xf32>
    %57 = vector.multi_reduction <add>, %56, %cst_19 [1] : vector<33x33xf32> to vector<33xf32>
    %58 = vector.shape_cast %57 : vector<33xf32> to vector<33x1xf32>
    %59 = tpu.reciprocal %58 {approx = true} : vector<33x1xf32> -> vector<33x1xf32>
    %60 = vector.broadcast %59 : vector<33x1xf32> to vector<33x33xf32>
    %61 = arith.mulf %56, %60 : vector<33x33xf32>
    %62 = arith.truncf %61 : vector<33x33xf32> to vector<33x33xbf16>
    %63 = arith.truncf %48 : vector<33x32xf32> to vector<33x32xbf16>
    %cst_20 = arith.constant dense<0.000000e+00> : vector<33x32xf32>
    %64 = tpu.matmul %62, %63, %cst_20 {dimension_numbers = #tpu.dot_dimension_numbers<[1], [0], [0], [1], [0, 0, 1, 1], [], []>} : vector<33x33xbf16>, vector<33x32xbf16>, vector<33x32xf32> -> vector<33x32xf32>
    %65 = vector.broadcast %6 : vector<33x1xf32> to vector<33x32xf32>
    %66 = arith.mulf %46, %65 : vector<33x32xf32>
    %67 = arith.addf %64, %66 : vector<33x32xf32>
    %68 = arith.truncf %67 : vector<33x32xf32> to vector<33x32xbf16>
    %cst_21 = arith.constant dense<0.000000e+00> : vector<33x32xf32>
    %69 = tpu.matmul %68, %9, %cst_21 {dimension_numbers = #tpu.dot_dimension_numbers<[1], [0], [0], [1], [0, 0, 1, 1], [], []>} : vector<33x32xbf16>, vector<32x32xbf16>, vector<33x32xf32> -> vector<33x32xf32>
    %70 = vector.broadcast %15 : vector<1x32xf32> to vector<33x32xf32>
    %71 = arith.addf %69, %70 : vector<33x32xf32>
    %72 = arith.addf %1, %71 : vector<33x32xf32>
    %cst_22 = arith.constant dense<0.000000e+00> : vector<33xf32>
    %73 = vector.multi_reduction <add>, %72, %cst_22 [1] : vector<33x32xf32> to vector<33xf32>
    %74 = vector.shape_cast %73 : vector<33xf32> to vector<33x1xf32>
    %cst_23 = arith.constant 3.200000e+01 : f32
    %75 = vector.broadcast %cst_23 : f32 to vector<33x1xf32>
    %76 = arith.divf %74, %75 : vector<33x1xf32>
    %77 = vector.broadcast %76 : vector<33x1xf32> to vector<33x32xf32>
    %78 = arith.subf %72, %77 : vector<33x32xf32>
    %79 = arith.mulf %78, %78 : vector<33x32xf32>
    %cst_24 = arith.constant dense<0.000000e+00> : vector<33xf32>
    %80 = vector.multi_reduction <add>, %79, %cst_24 [1] : vector<33x32xf32> to vector<33xf32>
    %81 = vector.shape_cast %80 : vector<33xf32> to vector<33x1xf32>
    %cst_25 = arith.constant 3.200000e+01 : f32
    %82 = vector.broadcast %cst_25 : f32 to vector<33x1xf32>
    %83 = arith.divf %81, %82 : vector<33x1xf32>
    %84 = vector.broadcast %76 : vector<33x1xf32> to vector<33x32xf32>
    %85 = arith.subf %72, %84 : vector<33x32xf32>
    %cst_26 = arith.constant 9.99999997E-7 : f32
    %86 = vector.broadcast %cst_26 : f32 to vector<33x1xf32>
    %87 = arith.addf %83, %86 : vector<33x1xf32>
    %88 = math.rsqrt %87 : vector<33x1xf32>
    %89 = vector.broadcast %88 : vector<33x1xf32> to vector<33x32xf32>
    %90 = arith.mulf %85, %89 : vector<33x32xf32>
    %91 = vector.broadcast %16 : vector<1x32xf32> to vector<33x32xf32>
    %92 = arith.mulf %90, %91 : vector<33x32xf32>
    %93 = vector.broadcast %17 : vector<1x32xf32> to vector<33x32xf32>
    %94 = arith.addf %92, %93 : vector<33x32xf32>
    %95 = arith.truncf %94 : vector<33x32xf32> to vector<33x32xbf16>
    %cst_27 = arith.constant dense<0.000000e+00> : vector<33x128xf32>
    %96 = tpu.matmul %95, %10, %cst_27 {dimension_numbers = #tpu.dot_dimension_numbers<[1], [0], [0], [1], [0, 0, 1, 1], [], []>} : vector<33x32xbf16>, vector<32x128xbf16>, vector<33x128xf32> -> vector<33x128xf32>
    %97 = vector.broadcast %18 : vector<1x128xf32> to vector<33x128xf32>
    %98 = arith.addf %96, %97 : vector<33x128xf32>
    %cst_28 = arith.constant 5.000000e-01 : f32
    %99 = vector.broadcast %cst_28 : f32 to vector<33x128xf32>
    %100 = arith.mulf %99, %98 : vector<33x128xf32>
    %cst_29 = arith.constant 0.707106769 : f32
    %101 = vector.broadcast %cst_29 : f32 to vector<33x128xf32>
    %102 = arith.mulf %98, %101 : vector<33x128xf32>
    %103 = math.erf %102 : vector<33x128xf32>
    %cst_30 = arith.constant 1.000000e+00 : f32
    %104 = vector.broadcast %cst_30 : f32 to vector<33x128xf32>
    %105 = arith.addf %104, %103 : vector<33x128xf32>
    %106 = arith.mulf %100, %105 : vector<33x128xf32>
    %107 = arith.truncf %106 : vector<33x128xf32> to vector<33x128xbf16>
    %cst_31 = arith.constant dense<0.000000e+00> : vector<33x32xf32>
    %108 = tpu.matmul %107, %11, %cst_31 {dimension_numbers = #tpu.dot_dimension_numbers<[1], [0], [0], [1], [0, 0, 1, 1], [], []>} : vector<33x128xbf16>, vector<128x32xbf16>, vector<33x32xf32> -> vector<33x32xf32>
    %109 = vector.broadcast %19 : vector<1x32xf32> to vector<33x32xf32>
    %110 = arith.addf %108, %109 : vector<33x32xf32>
    %111 = arith.addf %72, %110 : vector<33x32xf32>
    %c0_32 = arith.constant 0 : index
    %c0_33 = arith.constant 0 : index
    %112 = vector.load %arg7[%c0_32, %c0_33] : memref<11x256xf32, #tpu.memory_space<vmem>>, vector<11x256xf32>
    %c0_34 = arith.constant 0 : index
    %c0_35 = arith.constant 0 : index
    %113 = vector.load %arg8[%c0_34, %c0_35] : memref<32x192xbf16, #tpu.memory_space<vmem>>, vector<32x192xbf16>
    %c0_36 = arith.constant 0 : index
    %c0_37 = arith.constant 0 : index
    %114 = vector.load %arg9[%c0_36, %c0_37] : memref<64x64xbf16, #tpu.memory_space<vmem>>, vector<64x64xbf16>
    %c0_38 = arith.constant 0 : index
    %c0_39 = arith.constant 0 : index
    %115 = vector.load %arg10[%c0_38, %c0_39] : memref<32x64xbf16, #tpu.memory_space<vmem>>, vector<32x64xbf16>
    %c0_40 = arith.constant 0 : index
    %c0_41 = arith.constant 0 : index
    %116 = vector.load %arg11[%c0_40, %c0_41] : memref<64x256xbf16, #tpu.memory_space<vmem>>, vector<64x256xbf16>
    %c0_42 = arith.constant 0 : index
    %c0_43 = arith.constant 0 : index
    %117 = vector.load %arg12[%c0_42, %c0_43] : memref<256x64xbf16, #tpu.memory_space<vmem>>, vector<256x64xbf16>
    %118 = vector.extract_strided_slice %112 {offsets = [0, 0], sizes = [1, 32], strides = [1, 1]} : vector<11x256xf32> to vector<1x32xf32>
    %119 = vector.extract_strided_slice %112 {offsets = [1, 0], sizes = [1, 32], strides = [1, 1]} : vector<11x256xf32> to vector<1x32xf32>
    %120 = vector.extract_strided_slice %112 {offsets = [2, 0], sizes = [1, 192], strides = [1, 1]} : vector<11x256xf32> to vector<1x192xf32>
    %121 = vector.extract_strided_slice %112 {offsets = [3, 0], sizes = [1, 64], strides = [1, 1]} : vector<11x256xf32> to vector<1x64xf32>
    %122 = vector.extract_strided_slice %112 {offsets = [4, 0], sizes = [1, 64], strides = [1, 1]} : vector<11x256xf32> to vector<1x64xf32>
    %123 = vector.extract_strided_slice %112 {offsets = [5, 0], sizes = [1, 64], strides = [1, 1]} : vector<11x256xf32> to vector<1x64xf32>
    %124 = vector.extract_strided_slice %112 {offsets = [6, 0], sizes = [1, 64], strides = [1, 1]} : vector<11x256xf32> to vector<1x64xf32>
    %125 = vector.extract_strided_slice %112 {offsets = [7, 0], sizes = [1, 256], strides = [1, 1]} : vector<11x256xf32> to vector<1x256xf32>
    %126 = vector.extract_strided_slice %112 {offsets = [8, 0], sizes = [1, 64], strides = [1, 1]} : vector<11x256xf32> to vector<1x64xf32>
    %cst_44 = arith.constant dense<0.000000e+00> : vector<33xf32>
    %127 = vector.multi_reduction <add>, %111, %cst_44 [1] : vector<33x32xf32> to vector<33xf32>
    %128 = vector.shape_cast %127 : vector<33xf32> to vector<33x1xf32>
    %cst_45 = arith.constant 3.200000e+01 : f32
    %129 = vector.broadcast %cst_45 : f32 to vector<33x1xf32>
    %130 = arith.divf %128, %129 : vector<33x1xf32>
    %131 = vector.broadcast %130 : vector<33x1xf32> to vector<33x32xf32>
    %132 = arith.subf %111, %131 : vector<33x32xf32>
    %133 = arith.mulf %132, %132 : vector<33x32xf32>
    %cst_46 = arith.constant dense<0.000000e+00> : vector<33xf32>
    %134 = vector.multi_reduction <add>, %133, %cst_46 [1] : vector<33x32xf32> to vector<33xf32>
    %135 = vector.shape_cast %134 : vector<33xf32> to vector<33x1xf32>
    %cst_47 = arith.constant 3.200000e+01 : f32
    %136 = vector.broadcast %cst_47 : f32 to vector<33x1xf32>
    %137 = arith.divf %135, %136 : vector<33x1xf32>
    %138 = vector.broadcast %130 : vector<33x1xf32> to vector<33x32xf32>
    %139 = arith.subf %111, %138 : vector<33x32xf32>
    %cst_48 = arith.constant 9.99999997E-7 : f32
    %140 = vector.broadcast %cst_48 : f32 to vector<33x1xf32>
    %141 = arith.addf %137, %140 : vector<33x1xf32>
    %142 = math.rsqrt %141 : vector<33x1xf32>
    %143 = vector.broadcast %142 : vector<33x1xf32> to vector<33x32xf32>
    %144 = arith.mulf %139, %143 : vector<33x32xf32>
    %145 = vector.broadcast %118 : vector<1x32xf32> to vector<33x32xf32>
    %146 = arith.mulf %144, %145 : vector<33x32xf32>
    %147 = vector.broadcast %119 : vector<1x32xf32> to vector<33x32xf32>
    %148 = arith.addf %146, %147 : vector<33x32xf32>
    %149 = arith.truncf %148 : vector<33x32xf32> to vector<33x32xbf16>
    %cst_49 = arith.constant dense<0.000000e+00> : vector<33x192xf32>
    %150 = tpu.matmul %149, %113, %cst_49 {dimension_numbers = #tpu.dot_dimension_numbers<[1], [0], [0], [1], [0, 0, 1, 1], [], []>} : vector<33x32xbf16>, vector<32x192xbf16>, vector<33x192xf32> -> vector<33x192xf32>
    %151 = vector.broadcast %120 : vector<1x192xf32> to vector<33x192xf32>
    %152 = arith.addf %150, %151 : vector<33x192xf32>
    %153 = vector.extract_strided_slice %152 {offsets = [0, 0], sizes = [33, 32], strides = [1, 1]} : vector<33x192xf32> to vector<33x32xf32>
    %154 = vector.extract_strided_slice %152 {offsets = [0, 64], sizes = [33, 32], strides = [1, 1]} : vector<33x192xf32> to vector<33x32xf32>
    %155 = vector.extract_strided_slice %152 {offsets = [0, 128], sizes = [33, 32], strides = [1, 1]} : vector<33x192xf32> to vector<33x32xf32>
    %156 = arith.truncf %153 : vector<33x32xf32> to vector<33x32xbf16>
    %157 = arith.truncf %154 : vector<33x32xf32> to vector<33x32xbf16>
    %cst_50 = arith.constant dense<0.000000e+00> : vector<33x33xf32>
    %158 = tpu.matmul %156, %157, %cst_50 {dimension_numbers = #tpu.dot_dimension_numbers<[1], [1], [0], [0], [0, 0, 1, 0], [], []>} : vector<33x32xbf16>, vector<33x32xbf16>, vector<33x33xf32> -> vector<33x33xf32>
    %cst_51 = arith.constant dense<0xFF800000> : vector<33xf32>
    %159 = vector.multi_reduction <maximumf>, %158, %cst_51 [1] : vector<33x33xf32> to vector<33xf32>
    %160 = vector.shape_cast %159 : vector<33xf32> to vector<33x1xf32>
    %161 = vector.broadcast %160 : vector<33x1xf32> to vector<33x33xf32>
    %162 = arith.subf %158, %161 : vector<33x33xf32>
    %163 = math.exp %162 : vector<33x33xf32>
    %cst_52 = arith.constant dense<0.000000e+00> : vector<33xf32>
    %164 = vector.multi_reduction <add>, %163, %cst_52 [1] : vector<33x33xf32> to vector<33xf32>
    %165 = vector.shape_cast %164 : vector<33xf32> to vector<33x1xf32>
    %166 = tpu.reciprocal %165 {approx = true} : vector<33x1xf32> -> vector<33x1xf32>
    %167 = vector.broadcast %166 : vector<33x1xf32> to vector<33x33xf32>
    %168 = arith.mulf %163, %167 : vector<33x33xf32>
    %169 = arith.truncf %168 : vector<33x33xf32> to vector<33x33xbf16>
    %170 = arith.truncf %155 : vector<33x32xf32> to vector<33x32xbf16>
    %cst_53 = arith.constant dense<0.000000e+00> : vector<33x32xf32>
    %171 = tpu.matmul %169, %170, %cst_53 {dimension_numbers = #tpu.dot_dimension_numbers<[1], [0], [0], [1], [0, 0, 1, 1], [], []>} : vector<33x33xbf16>, vector<33x32xbf16>, vector<33x32xf32> -> vector<33x32xf32>
    %172 = vector.broadcast %6 : vector<33x1xf32> to vector<33x32xf32>
    %173 = arith.mulf %153, %172 : vector<33x32xf32>
    %174 = arith.addf %171, %173 : vector<33x32xf32>
    %175 = arith.truncf %174 : vector<33x32xf32> to vector<33x32xbf16>
    %176 = vector.extract_strided_slice %114 {offsets = [0, 0], sizes = [32, 64], strides = [1, 1]} : vector<64x64xbf16> to vector<32x64xbf16>
    %cst_54 = arith.constant dense<0.000000e+00> : vector<33x64xf32>
    %177 = tpu.matmul %175, %176, %cst_54 {dimension_numbers = #tpu.dot_dimension_numbers<[1], [0], [0], [1], [0, 0, 1, 1], [], []>} : vector<33x32xbf16>, vector<32x64xbf16>, vector<33x64xf32> -> vector<33x64xf32>
    %178 = vector.extract_strided_slice %152 {offsets = [0, 32], sizes = [33, 32], strides = [1, 1]} : vector<33x192xf32> to vector<33x32xf32>
    %179 = vector.extract_strided_slice %152 {offsets = [0, 96], sizes = [33, 32], strides = [1, 1]} : vector<33x192xf32> to vector<33x32xf32>
    %180 = vector.extract_strided_slice %152 {offsets = [0, 160], sizes = [33, 32], strides = [1, 1]} : vector<33x192xf32> to vector<33x32xf32>
    %181 = arith.truncf %178 : vector<33x32xf32> to vector<33x32xbf16>
    %182 = arith.truncf %179 : vector<33x32xf32> to vector<33x32xbf16>
    %cst_55 = arith.constant dense<0.000000e+00> : vector<33x33xf32>
    %183 = tpu.matmul %181, %182, %cst_55 {dimension_numbers = #tpu.dot_dimension_numbers<[1], [1], [0], [0], [0, 0, 1, 0], [], []>} : vector<33x32xbf16>, vector<33x32xbf16>, vector<33x33xf32> -> vector<33x33xf32>
    %cst_56 = arith.constant dense<0xFF800000> : vector<33xf32>
    %184 = vector.multi_reduction <maximumf>, %183, %cst_56 [1] : vector<33x33xf32> to vector<33xf32>
    %185 = vector.shape_cast %184 : vector<33xf32> to vector<33x1xf32>
    %186 = vector.broadcast %185 : vector<33x1xf32> to vector<33x33xf32>
    %187 = arith.subf %183, %186 : vector<33x33xf32>
    %188 = math.exp %187 : vector<33x33xf32>
    %cst_57 = arith.constant dense<0.000000e+00> : vector<33xf32>
    %189 = vector.multi_reduction <add>, %188, %cst_57 [1] : vector<33x33xf32> to vector<33xf32>
    %190 = vector.shape_cast %189 : vector<33xf32> to vector<33x1xf32>
    %191 = tpu.reciprocal %190 {approx = true} : vector<33x1xf32> -> vector<33x1xf32>
    %192 = vector.broadcast %191 : vector<33x1xf32> to vector<33x33xf32>
    %193 = arith.mulf %188, %192 : vector<33x33xf32>
    %194 = arith.truncf %193 : vector<33x33xf32> to vector<33x33xbf16>
    %195 = arith.truncf %180 : vector<33x32xf32> to vector<33x32xbf16>
    %cst_58 = arith.constant dense<0.000000e+00> : vector<33x32xf32>
    %196 = tpu.matmul %194, %195, %cst_58 {dimension_numbers = #tpu.dot_dimension_numbers<[1], [0], [0], [1], [0, 0, 1, 1], [], []>} : vector<33x33xbf16>, vector<33x32xbf16>, vector<33x32xf32> -> vector<33x32xf32>
    %197 = vector.broadcast %6 : vector<33x1xf32> to vector<33x32xf32>
    %198 = arith.mulf %178, %197 : vector<33x32xf32>
    %199 = arith.addf %196, %198 : vector<33x32xf32>
    %200 = arith.truncf %199 : vector<33x32xf32> to vector<33x32xbf16>
    %201 = vector.extract_strided_slice %114 {offsets = [32, 0], sizes = [32, 64], strides = [1, 1]} : vector<64x64xbf16> to vector<32x64xbf16>
    %cst_59 = arith.constant dense<0.000000e+00> : vector<33x64xf32>
    %202 = tpu.matmul %200, %201, %cst_59 {dimension_numbers = #tpu.dot_dimension_numbers<[1], [0], [0], [1], [0, 0, 1, 1], [], []>} : vector<33x32xbf16>, vector<32x64xbf16>, vector<33x64xf32> -> vector<33x64xf32>
    %203 = arith.addf %177, %202 : vector<33x64xf32>
    %204 = vector.broadcast %121 : vector<1x64xf32> to vector<33x64xf32>
    %205 = arith.addf %203, %204 : vector<33x64xf32>
    %cst_60 = arith.constant dense<0.000000e+00> : vector<33x64xf32>
    %206 = tpu.matmul %149, %115, %cst_60 {dimension_numbers = #tpu.dot_dimension_numbers<[1], [0], [0], [1], [0, 0, 1, 1], [], []>} : vector<33x32xbf16>, vector<32x64xbf16>, vector<33x64xf32> -> vector<33x64xf32>
    %207 = vector.broadcast %122 : vector<1x64xf32> to vector<33x64xf32>
    %208 = arith.addf %206, %207 : vector<33x64xf32>
    %209 = arith.addf %208, %205 : vector<33x64xf32>
    %cst_61 = arith.constant dense<0.000000e+00> : vector<33xf32>
    %210 = vector.multi_reduction <add>, %209, %cst_61 [1] : vector<33x64xf32> to vector<33xf32>
    %211 = vector.shape_cast %210 : vector<33xf32> to vector<33x1xf32>
    %cst_62 = arith.constant 6.400000e+01 : f32
    %212 = vector.broadcast %cst_62 : f32 to vector<33x1xf32>
    %213 = arith.divf %211, %212 : vector<33x1xf32>
    %214 = vector.broadcast %213 : vector<33x1xf32> to vector<33x64xf32>
    %215 = arith.subf %209, %214 : vector<33x64xf32>
    %216 = arith.mulf %215, %215 : vector<33x64xf32>
    %cst_63 = arith.constant dense<0.000000e+00> : vector<33xf32>
    %217 = vector.multi_reduction <add>, %216, %cst_63 [1] : vector<33x64xf32> to vector<33xf32>
    %218 = vector.shape_cast %217 : vector<33xf32> to vector<33x1xf32>
    %cst_64 = arith.constant 6.400000e+01 : f32
    %219 = vector.broadcast %cst_64 : f32 to vector<33x1xf32>
    %220 = arith.divf %218, %219 : vector<33x1xf32>
    %221 = vector.broadcast %213 : vector<33x1xf32> to vector<33x64xf32>
    %222 = arith.subf %209, %221 : vector<33x64xf32>
    %cst_65 = arith.constant 9.99999997E-7 : f32
    %223 = vector.broadcast %cst_65 : f32 to vector<33x1xf32>
    %224 = arith.addf %220, %223 : vector<33x1xf32>
    %225 = math.rsqrt %224 : vector<33x1xf32>
    %226 = vector.broadcast %225 : vector<33x1xf32> to vector<33x64xf32>
    %227 = arith.mulf %222, %226 : vector<33x64xf32>
    %228 = vector.broadcast %123 : vector<1x64xf32> to vector<33x64xf32>
    %229 = arith.mulf %227, %228 : vector<33x64xf32>
    %230 = vector.broadcast %124 : vector<1x64xf32> to vector<33x64xf32>
    %231 = arith.addf %229, %230 : vector<33x64xf32>
    %232 = arith.truncf %231 : vector<33x64xf32> to vector<33x64xbf16>
    %cst_66 = arith.constant dense<0.000000e+00> : vector<33x256xf32>
    %233 = tpu.matmul %232, %116, %cst_66 {dimension_numbers = #tpu.dot_dimension_numbers<[1], [0], [0], [1], [0, 0, 1, 1], [], []>} : vector<33x64xbf16>, vector<64x256xbf16>, vector<33x256xf32> -> vector<33x256xf32>
    %234 = vector.broadcast %125 : vector<1x256xf32> to vector<33x256xf32>
    %235 = arith.addf %233, %234 : vector<33x256xf32>
    %cst_67 = arith.constant 5.000000e-01 : f32
    %236 = vector.broadcast %cst_67 : f32 to vector<33x256xf32>
    %237 = arith.mulf %236, %235 : vector<33x256xf32>
    %cst_68 = arith.constant 0.707106769 : f32
    %238 = vector.broadcast %cst_68 : f32 to vector<33x256xf32>
    %239 = arith.mulf %235, %238 : vector<33x256xf32>
    %240 = math.erf %239 : vector<33x256xf32>
    %cst_69 = arith.constant 1.000000e+00 : f32
    %241 = vector.broadcast %cst_69 : f32 to vector<33x256xf32>
    %242 = arith.addf %241, %240 : vector<33x256xf32>
    %243 = arith.mulf %237, %242 : vector<33x256xf32>
    %244 = arith.truncf %243 : vector<33x256xf32> to vector<33x256xbf16>
    %cst_70 = arith.constant dense<0.000000e+00> : vector<33x64xf32>
    %245 = tpu.matmul %244, %117, %cst_70 {dimension_numbers = #tpu.dot_dimension_numbers<[1], [0], [0], [1], [0, 0, 1, 1], [], []>} : vector<33x256xbf16>, vector<256x64xbf16>, vector<33x64xf32> -> vector<33x64xf32>
    %246 = vector.broadcast %126 : vector<1x64xf32> to vector<33x64xf32>
    %247 = arith.addf %245, %246 : vector<33x64xf32>
    %248 = arith.addf %209, %247 : vector<33x64xf32>
    %249 = vector.extract_strided_slice %248 {offsets = [0, 0], sizes = [1, 64], strides = [1, 1]} : vector<33x64xf32> to vector<1x64xf32>
    %250 = vector.extract_strided_slice %112 {offsets = [9, 0], sizes = [1, 64], strides = [1, 1]} : vector<11x256xf32> to vector<1x64xf32>
    %251 = vector.extract_strided_slice %112 {offsets = [10, 0], sizes = [1, 64], strides = [1, 1]} : vector<11x256xf32> to vector<1x64xf32>
    %cst_71 = arith.constant dense<0.000000e+00> : vector<1xf32>
    %252 = vector.multi_reduction <add>, %249, %cst_71 [1] : vector<1x64xf32> to vector<1xf32>
    %253 = vector.shape_cast %252 : vector<1xf32> to vector<1x1xf32>
    %cst_72 = arith.constant 6.400000e+01 : f32
    %254 = vector.broadcast %cst_72 : f32 to vector<1x1xf32>
    %255 = arith.divf %253, %254 : vector<1x1xf32>
    %256 = vector.broadcast %255 : vector<1x1xf32> to vector<1x64xf32>
    %257 = arith.subf %249, %256 : vector<1x64xf32>
    %258 = arith.mulf %257, %257 : vector<1x64xf32>
    %cst_73 = arith.constant dense<0.000000e+00> : vector<1xf32>
    %259 = vector.multi_reduction <add>, %258, %cst_73 [1] : vector<1x64xf32> to vector<1xf32>
    %260 = vector.shape_cast %259 : vector<1xf32> to vector<1x1xf32>
    %cst_74 = arith.constant 6.400000e+01 : f32
    %261 = vector.broadcast %cst_74 : f32 to vector<1x1xf32>
    %262 = arith.divf %260, %261 : vector<1x1xf32>
    %263 = vector.broadcast %255 : vector<1x1xf32> to vector<1x64xf32>
    %264 = arith.subf %249, %263 : vector<1x64xf32>
    %cst_75 = arith.constant 9.99999997E-7 : f32
    %265 = vector.broadcast %cst_75 : f32 to vector<1x1xf32>
    %266 = arith.addf %262, %265 : vector<1x1xf32>
    %267 = math.rsqrt %266 : vector<1x1xf32>
    %268 = vector.broadcast %267 : vector<1x1xf32> to vector<1x64xf32>
    %269 = arith.mulf %264, %268 : vector<1x64xf32>
    %270 = arith.mulf %269, %250 : vector<1x64xf32>
    %271 = arith.addf %270, %251 : vector<1x64xf32>
    %c0_76 = arith.constant 0 : index
    %c0_77 = arith.constant 0 : index
    %c0_78 = arith.constant 0 : index
    %272 = vector.load %arg13[%c0_76, %c0_77, %c0_78] : memref<1x1x64xf32, #tpu.memory_space<vmem>>, vector<1x1x64xf32>
    %273 = vector.shape_cast %272 : vector<1x1x64xf32> to vector<1x64xf32>
    %274 = vector.shape_cast %271 : vector<1x64xf32> to vector<1x1x64xf32>
    tpu.vector_store %arg13[%c0_76, %c0_77, %c0_78], %274 {strides = array<i32>} : memref<1x1x64xf32, #tpu.memory_space<vmem>>, vector<1x1x64xf32>,
    return
  }
  func.func @transform_0(%arg0: i32) -> (i32, i32, i32) {
    %c0_i32 = arith.constant 0 : i32
    %c0_i32_0 = arith.constant 0 : i32
    %c0_i32_1 = arith.constant 0 : i32
    return %arg0, %c0_i32, %c0_i32_0 : i32, i32, i32
  }
  func.func @transform_1(%arg0: i32) -> (i32, i32) {
    %c0_i32 = arith.constant 0 : i32
    %c0_i32_0 = arith.constant 0 : i32
    %c0_i32_1 = arith.constant 0 : i32
    return %c0_i32, %c0_i32_0 : i32, i32
  }
  func.func @transform_2(%arg0: i32) -> (i32, i32) {
    %c0_i32 = arith.constant 0 : i32
    %c0_i32_0 = arith.constant 0 : i32
    %c0_i32_1 = arith.constant 0 : i32
    return %c0_i32, %c0_i32_0 : i32, i32
  }
  func.func @transform_3(%arg0: i32) -> (i32, i32) {
    %c0_i32 = arith.constant 0 : i32
    %c0_i32_0 = arith.constant 0 : i32
    %c0_i32_1 = arith.constant 0 : i32
    return %c0_i32, %c0_i32_0 : i32, i32
  }
  func.func @transform_4(%arg0: i32) -> (i32, i32) {
    %c0_i32 = arith.constant 0 : i32
    %c0_i32_0 = arith.constant 0 : i32
    %c0_i32_1 = arith.constant 0 : i32
    return %c0_i32, %c0_i32_0 : i32, i32
  }
  func.func @transform_5(%arg0: i32) -> (i32, i32) {
    %c0_i32 = arith.constant 0 : i32
    %c0_i32_0 = arith.constant 0 : i32
    %c0_i32_1 = arith.constant 0 : i32
    return %c0_i32, %c0_i32_0 : i32, i32
  }
  func.func @transform_6(%arg0: i32) -> (i32, i32) {
    %c0_i32 = arith.constant 0 : i32
    %c0_i32_0 = arith.constant 0 : i32
    %c0_i32_1 = arith.constant 0 : i32
    return %c0_i32, %c0_i32_0 : i32, i32
  }
  func.func @transform_7(%arg0: i32) -> (i32, i32) {
    %c0_i32 = arith.constant 0 : i32
    %c0_i32_0 = arith.constant 0 : i32
    %c0_i32_1 = arith.constant 0 : i32
    return %c0_i32, %c0_i32_0 : i32, i32
  }
  func.func @transform_8(%arg0: i32) -> (i32, i32) {
    %c0_i32 = arith.constant 0 : i32
    %c0_i32_0 = arith.constant 0 : i32
    %c0_i32_1 = arith.constant 0 : i32
    return %c0_i32, %c0_i32_0 : i32, i32
  }
  func.func @transform_9(%arg0: i32) -> (i32, i32) {
    %c0_i32 = arith.constant 0 : i32
    %c0_i32_0 = arith.constant 0 : i32
    %c0_i32_1 = arith.constant 0 : i32
    return %c0_i32, %c0_i32_0 : i32, i32
  }
  func.func @transform_10(%arg0: i32) -> (i32, i32) {
    %c0_i32 = arith.constant 0 : i32
    %c0_i32_0 = arith.constant 0 : i32
    %c0_i32_1 = arith.constant 0 : i32
    return %c0_i32, %c0_i32_0 : i32, i32
  }
  func.func @transform_11(%arg0: i32) -> (i32, i32) {
    %c0_i32 = arith.constant 0 : i32
    %c0_i32_0 = arith.constant 0 : i32
    %c0_i32_1 = arith.constant 0 : i32
    return %c0_i32, %c0_i32_0 : i32, i32
  }
  func.func @transform_12(%arg0: i32) -> (i32, i32, i32) {
    %c0_i32 = arith.constant 0 : i32
    %c0_i32_0 = arith.constant 0 : i32
    %c0_i32_1 = arith.constant 0 : i32
    return %arg0, %c0_i32, %c0_i32_0 : i32, i32, i32
  }
}

</mosaic_0001>

<llo_original>
// kernel: mfvit_forward.1
$region0: #{mfvit_forward.1}
  #allocation0 [shape = 'u32[]', space=smem, size = 0x4, offset = 0x4, fixed_abs, tag = 'smem constant byte address 0x4 - core index']
  #allocation1 [shape = 'u32[72,128]{1,0:T(1,128)}', space=vmem, size = 0x9000, scoped, tag = 'internal scratch']
  %s0 = inlined_call_operand.vmem [shape: f32[2,33,32], index: 0, kind: input, shape index: {}]
  %s1 = inlined_call_operand.vmem [shape: f32[11,128], index: 1, kind: input, shape index: {}]
  %s2 = inlined_call_operand.vmem [shape: bf16[32,96], index: 2, kind: input, shape index: {}]
  %s3 = inlined_call_operand.vmem [shape: bf16[32,32], index: 3, kind: input, shape index: {}]
  %s4 = inlined_call_operand.vmem [shape: bf16[32,128], index: 4, kind: input, shape index: {}]
  %s5 = inlined_call_operand.vmem [shape: bf16[128,32], index: 5, kind: input, shape index: {}]
  %s6 = inlined_call_operand.vmem [shape: f32[11,256], index: 6, kind: input, shape index: {}]
  %s7 = inlined_call_operand.vmem [shape: bf16[32,192], index: 7, kind: input, shape index: {}]
  %s8 = inlined_call_operand.vmem [shape: bf16[64,64], index: 8, kind: input, shape index: {}]
  %s9 = inlined_call_operand.vmem [shape: bf16[32,64], index: 9, kind: input, shape index: {}]
  %s10 = inlined_call_operand.vmem [shape: bf16[64,256], index: 10, kind: input, shape index: {}]
  %s11 = inlined_call_operand.vmem [shape: bf16[256,64], index: 11, kind: input, shape index: {}]
  %s12 = inlined_call_operand.hbm [shape: f32[2,1,64], index: 12, kind: output, shape index: {}]
  %s13 = sld [smem:[#allocation0]]
  $region81: #{mfvit_forward.1} parent=0
    _
  %s15 = ssub.s32 1, %s13
  %s16 = scalar_select 0, %s15, %s13
  $region1: #{mfvit_forward.1} parent=0
    #allocation2 [shape = 'u8[1024]{0}', space=vmem, size = 0x400, scoped, tag = 'output window, operand 0']
    #allocation3 [shape = 's32[2]{0}', space=sflag, size = 0x8, scoped, tag = 'scoped memory for mfvit_forward.1']
    %17 = vsyncpa [#allocation3], 0
    %s18 = scalar_lea.sflag [#allocation3], 1
    %19 = vsyncpa %s18, 0
    loop: start=0, step=1, limit=4
    $region2: #{mfvit_forward.1} parent=1 // loop_pre_header
      _
    $region3: #{mfvit_forward.1} parent=1 // loop_header
      %s21 = sphi 0, %s25
      %p22 = scmp.ge.s32.totalorder %s21, 4
      %s31 = sphi 0, %s33
      %s34 = sphi 0, %s31
      %s35 = sphi 0, %s34
      %s51 = sphi 0, %s35
      %s55 = sphi 0, %s55
      %s57 = sphi 0, %s55
      %s58 = sphi 0, %s57
      %s72 = sphi 0, %s58
      %s76 = sphi 0, %s76
      %s78 = sphi 0, %s76
      %s79 = sphi 0, %s78
      %s93 = sphi 0, %s79
      %s97 = sphi 0, %s97
      %s99 = sphi 0, %s97
      %s100 = sphi 0, %s99
      %s114 = sphi 0, %s100
      %s118 = sphi 0, %s118
      %s120 = sphi 0, %s118
      %s121 = sphi 0, %s120
      %s135 = sphi 0, %s121
      %s139 = sphi 0, %s139
      %s141 = sphi 0, %s139
      %s142 = sphi 0, %s141
      %s156 = sphi 0, %s142
      %s160 = sphi 0, %s160
      %s162 = sphi 0, %s160
      %s163 = sphi 0, %s162
      %s177 = sphi 0, %s163
      %s181 = sphi 0, %s181
      %s183 = sphi 0, %s181
      %s184 = sphi 0, %s183
      %s198 = sphi 0, %s184
      %s202 = sphi 0, %s202
      %s204 = sphi 0, %s202
      %s205 = sphi 0, %s204
      %s219 = sphi 0, %s205
      %s223 = sphi 0, %s223
      %s225 = sphi 0, %s223
      %s226 = sphi 0, %s225
      %s240 = sphi 0, %s226
      %s244 = sphi 0, %s244
      %s246 = sphi 0, %s244
      %s247 = sphi 0, %s246
      %s261 = sphi 0, %s247
      %s265 = sphi 0, %s265
      %s267 = sphi 0, %s265
      %s268 = sphi 0, %s267
      %s282 = sphi 0, %s268
      %s288 = sphi 0, %s290
      %s291 = sphi 0, %s288
      %s292 = sphi 0, %s291
      %s308 = sphi 0, %s292
    $region4: #{mfvit_forward.1} parent=1 // loop_header_branch
      %24 = sbr.rel (%p22) target = $region8
    $region5: #{mfvit_forward.1} parent=1 // loop_body
      %s26 = ssub.s32 %s21, 1
      %s27 = ssub.s32 %s21, 2
      %s28 = sadd.s32 %s21, 1
      %s29 = ssub.s32 %s21, %s28
      %p30 = scmp.eq.s32.totalorder %s29, 0
      %s32 = sadd.s32 %s31, 1
      %s33 = scalar_select %p30, %s31, %s32
      %p36 = pneg %p30
      %p37 = scmp.eq.s32.totalorder %s21, 1
      %p38 = por %p36, %p37
      %p39 = scmp.ne.s32.totalorder %s31, %s34
      %p40 = scmp.eq.s32.totalorder %s21, 0
      %p41 = por %p39, %p40
      %p42 = scmp.ne.s32.totalorder %s31, %s34
      %p43 = scmp.eq.s32.totalorder %s26, 1
      %p44 = por %p42, %p43
      %p45 = scmp.ne.s32.totalorder %s34, %s35
      %p46 = scmp.eq.s32.totalorder %s26, 0
      %p47 = por %p45, %p46
      %p48 = scmp.ne.s32.totalorder %s34, %s35
      %p49 = scmp.eq.s32.totalorder %s27, 1
      %p50 = por %p48, %p49
      %p52 = scmp.ne.s32.totalorder %s35, %s51
      %p53 = scmp.eq.s32.totalorder %s27, 0
      %p54 = por %p52, %p53
      %s56 = sadd.s32 %s55, 1
      %p59 = scmp.eq.s32.totalorder %s21, 1
      %p60 = scmp.ne.s32.totalorder %s55, %s57
      %p61 = scmp.eq.s32.totalorder %s21, 0
      %p62 = por %p60, %p61
      %p63 = scmp.ne.s32.totalorder %s55, %s57
      %p64 = scmp.eq.s32.totalorder %s26, 1
      %p65 = por %p63, %p64
      %p66 = scmp.ne.s32.totalorder %s57, %s58
      %p67 = scmp.eq.s32.totalorder %s26, 0
      %p68 = por %p66, %p67
      %p69 = scmp.ne.s32.totalorder %s57, %s58
      %p70 = scmp.eq.s32.totalorder %s27, 1
      %p71 = por %p69, %p70
      %p73 = scmp.ne.s32.totalorder %s58, %s72
      %p74 = scmp.eq.s32.totalorder %s27, 0
      %p75 = por %p73, %p74
      %s77 = sadd.s32 %s76, 1
      %p80 = scmp.eq.s32.totalorder %s21, 1
      %p81 = scmp.ne.s32.totalorder %s76, %s78
      %p82 = scmp.eq.s32.totalorder %s21, 0
      %p83 = por %p81, %p82
      %p84 = scmp.ne.s32.totalorder %s76, %s78
      %p85 = scmp.eq.s32.totalorder %s26, 1
      %p86 = por %p84, %p85
      %p87 = scmp.ne.s32.totalorder %s78, %s79
      %p88 = scmp.eq.s32.totalorder %s26, 0
      %p89 = por %p87, %p88
      %p90 = scmp.ne.s32.totalorder %s78, %s79
      %p91 = scmp.eq.s32.totalorder %s27, 1
      %p92 = por %p90, %p91
      %p94 = scmp.ne.s32.totalorder %s79, %s93
      %p95 = scmp.eq.s32.totalorder %s27, 0
      %p96 = por %p94, %p95
      %s98 = sadd.s32 %s97, 1
      %p101 = scmp.eq.s32.totalorder %s21, 1
      %p102 = scmp.ne.s32.totalorder %s97, %s99
      %p103 = scmp.eq.s32.totalorder %s21, 0
      %p104 = por %p102, %p103
      %p105 = scmp.ne.s32.totalorder %s97, %s99
      %p106 = scmp.eq.s32.totalorder %s26, 1
      %p107 = por %p105, %p106
      %p108 = scmp.ne.s32.totalorder %s99, %s100
      %p109 = scmp.eq.s32.totalorder %s26, 0
      %p110 = por %p108, %p109
      %p111 = scmp.ne.s32.totalorder %s99, %s100
      %p112 = scmp.eq.s32.totalorder %s27, 1
      %p113 = por %p111, %p112
      %p115 = scmp.ne.s32.totalorder %s100, %s114
      %p116 = scmp.eq.s32.totalorder %s27, 0
      %p117 = por %p115, %p116
      %s119 = sadd.s32 %s118, 1
      %p122 = scmp.eq.s32.totalorder %s21, 1
      %p123 = scmp.ne.s32.totalorder %s118, %s120
      %p124 = scmp.eq.s32.totalorder %s21, 0
      %p125 = por %p123, %p124
      %p126 = scmp.ne.s32.totalorder %s118, %s120
      %p127 = scmp.eq.s32.totalorder %s26, 1
      %p128 = por %p126, %p127
      %p129 = scmp.ne.s32.totalorder %s120, %s121
      %p130 = scmp.eq.s32.totalorder %s26, 0
      %p131 = por %p129, %p130
      %p132 = scmp.ne.s32.totalorder %s120, %s121
      %p133 = scmp.eq.s32.totalorder %s27, 1
      %p134 = por %p132, %p133
      %p136 = scmp.ne.s32.totalorder %s121, %s135
      %p137 = scmp.eq.s32.totalorder %s27, 0
      %p138 = por %p136, %p137
      %s140 = sadd.s32 %s139, 1
      %p143 = scmp.eq.s32.totalorder %s21, 1
      %p144 = scmp.ne.s32.totalorder %s139, %s141
      %p145 = scmp.eq.s32.totalorder %s21, 0
      %p146 = por %p144, %p145
      %p147 = scmp.ne.s32.totalorder %s139, %s141
      %p148 = scmp.eq.s32.totalorder %s26, 1
      %p149 = por %p147, %p148
      %p150 = scmp.ne.s32.totalorder %s141, %s142
      %p151 = scmp.eq.s32.totalorder %s26, 0
      %p152 = por %p150, %p151
      %p153 = scmp.ne.s32.totalorder %s141, %s142
      %p154 = scmp.eq.s32.totalorder %s27, 1
      %p155 = por %p153, %p154
      %p157 = scmp.ne.s32.totalorder %s142, %s156
      %p158 = scmp.eq.s32.totalorder %s27, 0
      %p159 = por %p157, %p158
      %s161 = sadd.s32 %s160, 1
      %p164 = scmp.eq.s32.totalorder %s21, 1
      %p165 = scmp.ne.s32.totalorder %s160, %s162
      %p166 = scmp.eq.s32.totalorder %s21, 0
      %p167 = por %p165, %p166
      %p168 = scmp.ne.s32.totalorder %s160, %s162
      %p169 = scmp.eq.s32.totalorder %s26, 1
      %p170 = por %p168, %p169
      %p171 = scmp.ne.s32.totalorder %s162, %s163
      %p172 = scmp.eq.s32.totalorder %s26, 0
      %p173 = por %p171, %p172
      %p174 = scmp.ne.s32.totalorder %s162, %s163
      %p175 = scmp.eq.s32.totalorder %s27, 1
      %p176 = por %p174, %p175
      %p178 = scmp.ne.s32.totalorder %s163, %s177
      %p179 = scmp.eq.s32.totalorder %s27, 0
      %p180 = por %p178, %p179
      %s182 = sadd.s32 %s181, 1
      %p185 = scmp.eq.s32.totalorder %s21, 1
      %p186 = scmp.ne.s32.totalorder %s181, %s183
      %p187 = scmp.eq.s32.totalorder %s21, 0
      %p188 = por %p186, %p187
      %p189 = scmp.ne.s32.totalorder %s181, %s183
      %p190 = scmp.eq.s32.totalorder %s26, 1
      %p191 = por %p189, %p190
      %p192 = scmp.ne.s32.totalorder %s183, %s184
      %p193 = scmp.eq.s32.totalorder %s26, 0
      %p194 = por %p192, %p193
      %p195 = scmp.ne.s32.totalorder %s183, %s184
      %p196 = scmp.eq.s32.totalorder %s27, 1
      %p197 = por %p195, %p196
      %p199 = scmp.ne.s32.totalorder %s184, %s198
      %p200 = scmp.eq.s32.totalorder %s27, 0
      %p201 = por %p199, %p200
      %s203 = sadd.s32 %s202, 1
      %p206 = scmp.eq.s32.totalorder %s21, 1
      %p207 = scmp.ne.s32.totalorder %s202, %s204
      %p208 = scmp.eq.s32.totalorder %s21, 0
      %p209 = por %p207, %p208
      %p210 = scmp.ne.s32.totalorder %s202, %s204
      %p211 = scmp.eq.s32.totalorder %s26, 1
      %p212 = por %p210, %p211
      %p213 = scmp.ne.s32.totalorder %s204, %s205
      %p214 = scmp.eq.s32.totalorder %s26, 0
      %p215 = por %p213, %p214
      %p216 = scmp.ne.s32.totalorder %s204, %s205
      %p217 = scmp.eq.s32.totalorder %s27, 1
      %p218 = por %p216, %p217
      %p220 = scmp.ne.s32.totalorder %s205, %s219
      %p221 = scmp.eq.s32.totalorder %s27, 0
      %p222 = por %p220, %p221
      %s224 = sadd.s32 %s223, 1
      %p227 = scmp.eq.s32.totalorder %s21, 1
      %p228 = scmp.ne.s32.totalorder %s223, %s225
      %p229 = scmp.eq.s32.totalorder %s21, 0
      %p230 = por %p228, %p229
      %p231 = scmp.ne.s32.totalorder %s223, %s225
      %p232 = scmp.eq.s32.totalorder %s26, 1
      %p233 = por %p231, %p232
      %p234 = scmp.ne.s32.totalorder %s225, %s226
      %p235 = scmp.eq.s32.totalorder %s26, 0
      %p236 = por %p234, %p235
      %p237 = scmp.ne.s32.totalorder %s225, %s226
      %p238 = scmp.eq.s32.totalorder %s27, 1
      %p239 = por %p237, %p238
      %p241 = scmp.ne.s32.totalorder %s226, %s240
      %p242 = scmp.eq.s32.totalorder %s27, 0
      %p243 = por %p241, %p242
      %s245 = sadd.s32 %s244, 1
      %p248 = scmp.eq.s32.totalorder %s21, 1
      %p249 = scmp.ne.s32.totalorder %s244, %s246
      %p250 = scmp.eq.s32.totalorder %s21, 0
      %p251 = por %p249, %p250
      %p252 = scmp.ne.s32.totalorder %s244, %s246
      %p253 = scmp.eq.s32.totalorder %s26, 1
      %p254 = por %p252, %p253
      %p255 = scmp.ne.s32.totalorder %s246, %s247
      %p256 = scmp.eq.s32.totalorder %s26, 0
      %p257 = por %p255, %p256
      %p258 = scmp.ne.s32.totalorder %s246, %s247
      %p259 = scmp.eq.s32.totalorder %s27, 1
      %p260 = por %p258, %p259
      %p262 = scmp.ne.s32.totalorder %s247, %s261
      %p263 = scmp.eq.s32.totalorder %s27, 0
      %p264 = por %p262, %p263
      %s266 = sadd.s32 %s265, 1
      %p269 = scmp.eq.s32.totalorder %s21, 1
      %p270 = scmp.ne.s32.totalorder %s265, %s267
      %p271 = scmp.eq.s32.totalorder %s21, 0
      %p272 = por %p270, %p271
      %p273 = scmp.ne.s32.totalorder %s265, %s267
      %p274 = scmp.eq.s32.totalorder %s26, 1
      %p275 = por %p273, %p274
      %p276 = scmp.ne.s32.totalorder %s267, %s268
      %p277 = scmp.eq.s32.totalorder %s26, 0
      %p278 = por %p276, %p277
      %p279 = scmp.ne.s32.totalorder %s267, %s268
      %p280 = scmp.eq.s32.totalorder %s27, 1
      %p281 = por %p279, %p280
      %p283 = scmp.ne.s32.totalorder %s268, %s282
      %p284 = scmp.eq.s32.totalorder %s27, 0
      %p285 = por %p283, %p284
      %s286 = ssub.s32 %s21, %s28
      %p287 = scmp.eq.s32.totalorder %s286, 0
      %s289 = sadd.s32 %s288, 1
      %s290 = scalar_select %p287, %s288, %s289
      %p293 = pneg %p287
      %p294 = scmp.eq.s32.totalorder %s21, 1
      %p295 = por %p293, %p294
      %p296 = scmp.ne.s32.totalorder %s288, %s291
      %p297 = scmp.eq.s32.totalorder %s21, 0
      %p298 = por %p296, %p297
      %p299 = scmp.ne.s32.totalorder %s288, %s291
      %p300 = scmp.eq.s32.totalorder %s26, 1
      %p301 = por %p299, %p300
      %p302 = scmp.ne.s32.totalorder %s291, %s292
      %p303 = scmp.eq.s32.totalorder %s26, 0
      %p304 = por %p302, %p303
      %p305 = scmp.ne.s32.totalorder %s291, %s292
      %p306 = scmp.eq.s32.totalorder %s27, 1
      %p307 = por %p305, %p306
      %p309 = scmp.ne.s32.totalorder %s292, %s308
      %p310 = scmp.eq.s32.totalorder %s27, 0
      %p311 = por %p309, %p310
      %p312 = scmp.le.s32.totalorder 1, %s21
      %p313 = scmp.lt.s32.totalorder %s21, 3
      %p314 = pnand %p312, %p313
      %p315 = pneg %p314
      // Predicated region
      $region9: #{mfvit_forward.1} parent=5 // pred_check
        _
      $region10: #{mfvit_forward.1} parent=5 // pred_check_branch
        %317 = sbr.rel (%p314) target = $region12
      $region11: #{mfvit_forward.1} parent=5 // pred_region
        %s318 = ssub.s32 %s21, 1
        // Predicated region
        $region13: #{mfvit_forward.1} parent=11 // pred_check
          %p319 = pneg %p68
        $region14: #{mfvit_forward.1} parent=11 // pred_check_branch
          %321 = sbr.rel (%p319) target = $region16
        $region15: #{mfvit_forward.1} parent=11 // pred_region
          _
        $region16: #{mfvit_forward.1} parent=11 // pred_fallthru
          _
        // Predicated region
        $region17: #{mfvit_forward.1} parent=11 // pred_check
          %p322 = pneg %p89
        $region18: #{mfvit_forward.1} parent=11 // pred_check_branch
          %324 = sbr.rel (%p322) target = $region20
        $region19: #{mfvit_forward.1} parent=11 // pred_region
          _
        $region20: #{mfvit_forward.1} parent=11 // pred_fallthru
          _
        // Predicated region
        $region21: #{mfvit_forward.1} parent=11 // pred_check
          %p325 = pneg %p110
        $region22: #{mfvit_forward.1} parent=11 // pred_check_branch
          %327 = sbr.rel (%p325) target = $region24
        $region23: #{mfvit_forward.1} parent=11 // pred_region
          _
        $region24: #{mfvit_forward.1} parent=11 // pred_fallthru
          _
        // Predicated region
        $region25: #{mfvit_forward.1} parent=11 // pred_check
          %p328 = pneg %p131
        $region26: #{mfvit_forward.1} parent=11 // pred_check_branch
          %330 = sbr.rel (%p328) target = $region28
        $region27: #{mfvit_forward.1} parent=11 // pred_region
          _
        $region28: #{mfvit_forward.1} parent=11 // pred_fallthru
          _
        // Predicated region
        $region29: #{mfvit_forward.1} parent=11 // pred_check
          %p331 = pneg %p152
        $region30: #{mfvit_forward.1} parent=11 // pred_check_branch
          %333 = sbr.rel (%p331) target = $region32
        $region31: #{mfvit_forward.1} parent=11 // pred_region
          _
        $region32: #{mfvit_forward.1} parent=11 // pred_fallthru
          _
        // Predicated region
        $region33: #{mfvit_forward.1} parent=11 // pred_check
          %p334 = pneg %p173
        $region34: #{mfvit_forward.1} parent=11 // pred_check_branch
          %336 = sbr.rel (%p334) target = $region36
        $region35: #{mfvit_forward.1} parent=11 // pred_region
          _
        $region36: #{mfvit_forward.1} parent=11 // pred_fallthru
          _
        // Predicated region
        $region37: #{mfvit_forward.1} parent=11 // pred_check
          %p337 = pneg %p194
        $region38: #{mfvit_forward.1} parent=11 // pred_check_branch
          %339 = sbr.rel (%p337) target = $region40
        $region39: #{mfvit_forward.1} parent=11 // pred_region
          _
        $region40: #{mfvit_forward.1} parent=11 // pred_fallthru
          _
        // Predicated region
        $region41: #{mfvit_forward.1} parent=11 // pred_check
          %p340 = pneg %p215
        $region42: #{mfvit_forward.1} parent=11 // pred_check_branch
          %342 = sbr.rel (%p340) target = $region44
        $region43: #{mfvit_forward.1} parent=11 // pred_region
          _
        $region44: #{mfvit_forward.1} parent=11 // pred_fallthru
          _
        // Predicated region
        $region45: #{mfvit_forward.1} parent=11 // pred_check
          %p343 = pneg %p236
        $region46: #{mfvit_forward.1} parent=11 // pred_check_branch
          %345 = sbr.rel (%p343) target = $region48
        $region47: #{mfvit_forward.1} parent=11 // pred_region
          _
        $region48: #{mfvit_forward.1} parent=11 // pred_fallthru
          _
        // Predicated region
        $region49: #{mfvit_forward.1} parent=11 // pred_check
          %p346 = pneg %p257
        $region50: #{mfvit_forward.1} parent=11 // pred_check_branch
          %348 = sbr.rel (%p346) target = $region52
        $region51: #{mfvit_forward.1} parent=11 // pred_region
          _
        $region52: #{mfvit_forward.1} parent=11 // pred_fallthru
          _
        // Predicated region
        $region53: #{mfvit_forward.1} parent=11 // pred_check
          %p349 = pneg %p278
        $region54: #{mfvit_forward.1} parent=11 // pred_check_branch
          %351 = sbr.rel (%p349) target = $region56
        $region55: #{mfvit_forward.1} parent=11 // pred_region
          _
        $region56: #{mfvit_forward.1} parent=11 // pred_fallthru
          _
      $region12: #{mfvit_forward.1} parent=5 // pred_fallthru
        _
      %p352 = scmp.lt.s32.totalorder %s21, 2
      // Predicated region
      $region57: #{mfvit_forward.1} parent=5 // pred_check
        %p353 = pneg %p352
      $region58: #{mfvit_forward.1} parent=5 // pred_check_branch
        %355 = sbr.rel (%p353) target = $region60
      $region59: #{mfvit_forward.1} parent=5 // pred_region
        // Predicated region
        $region61: #{mfvit_forward.1} parent=59 // pred_check
          %p356 = pneg %p41
        $region62: #{mfvit_forward.1} parent=59 // pred_check_branch
          %358 = sbr.rel (%p356) target = $region64
        $region63: #{mfvit_forward.1} parent=59 // pred_region
          %p359 = scmp.lt.s32.totalorder %s21, 1
          %s360 = scalar_select %p359, %s21, 1
          %s361 = smul.addr %s360, 5
          %s362 = smul.addr %s361, 8
          %s363 = scalar_lea.vmem %s0, %s362
        $region64: #{mfvit_forward.1} parent=59 // pred_fallthru
          _
      $region60: #{mfvit_forward.1} parent=5 // pred_fallthru
        _
      %p364 = scmp.le.s32.totalorder 1, %s21
      %p365 = scmp.lt.s32.totalorder %s21, 3
      %p366 = pnand %p364, %p365
      %p367 = pneg %p366
      // Predicated region
      $region65: #{mfvit_forward.1} parent=5 // pred_check
        _
      $region66: #{mfvit_forward.1} parent=5 // pred_check_branch
        %369 = sbr.rel (%p366) target = $region68
      $region67: #{mfvit_forward.1} parent=5 // pred_region
        %s370 = ssub.s32 %s21, 1
        %p371 = scmp.lt.s32.totalorder %s26, 1
        %s372 = scalar_select %p371, %s26, 1
        %s373 = smul.addr %s372, 5
        %s374 = smul.addr %s373, 8
        %s375 = scalar_lea.vmem %s0, %s374
        %p376 = pneg %p47
        %p377 = pneg %p44
        %p378 = pneg %p68
        %p379 = pneg %p65
        %p380 = pneg %p89
        %p381 = pneg %p86
        %p382 = pneg %p110
        %p383 = pneg %p107
        %p384 = pneg %p131
        %p385 = pneg %p128
        %p386 = pneg %p152
        %p387 = pneg %p149
        %p388 = pneg %p173
        %p389 = pneg %p170
        %p390 = pneg %p194
        %p391 = pneg %p191
        %p392 = pneg %p215
        %p393 = pneg %p212
        %p394 = pneg %p236
        %p395 = pneg %p233
        %p396 = pneg %p257
        %p397 = pneg %p254
        %p398 = pneg %p278
        %p399 = pneg %p275
        %p400 = pneg %p304
        %p401 = pneg %p301
        %s402 = sand.u32 %s291, 1
        %s403 = scalar_lea.sflag [#allocation3], %s402
        %s404 = sand.u32 %s291, 1
        %s405 = scalar_lea.vmem [#allocation2], %s404
        %p406 = scmp.lt.s32.totalorder %s26, 1
        %s407 = scalar_select %p406, %s26, 1
        %s408 = smul.addr %s407, 5
        %s409 = smul.addr %s408, 8
        %s410 = scalar_lea.vmem %s0, %s409
        %v412 = vld [vmem:[%s410] sm:$0xff]
        %v413 = vld [vmem:[%s410 + $0x8] sm:$0xff]
        %v414 = vld [vmem:[%s410 + $0x10] sm:$0xff]
        %v415 = vld [vmem:[%s410 + $0x18] sm:$0xff]
        %v416 = vld [vmem:[%s410 + $0x20] sm:$0x1]
        %v417 = vlaneseq
        %v418 = vshrl.u32 %v417, 7
        %v419 = vadd.s32 %v418, 8
        %v420 = vadd.s32 %v418, 16
        %v421 = vadd.s32 %v418, 24
        %v422 = vadd.s32 %v418, 32
        %vm423 = vcmp.ne.s32.totalorder %v418, 0
        %vm424 = vcmp.ne.s32.totalorder %v419, 0
        %vm425 = vcmp.ne.s32.totalorder %v420, 0
        %vm426 = vcmp.ne.s32.totalorder %v421, 0
        %vm427 = vcmp.ne.s32.totalorder %v422, 0
        %v428 = vsel %vm423, 1, 0
        %v429 = vsel %vm424, 1, 0
        %v430 = vsel %vm425, 1, 0
        %v431 = vsel %vm426, 1, 0
        %v432 = vsel %vm427, 1, 0
        %v433 = vcvt.s32.f32 %v428
        %v434 = vcvt.s32.f32 %v429
        %v435 = vcvt.s32.f32 %v430
        %v436 = vcvt.s32.f32 %v431
        %v437 = vcvt.s32.f32 %v432
        %v438 = vld [vmem:[%s1] sm:$0xff]
        %v439 = vld [vmem:[%s1 + $0x8] sm:$0x7]
        %v440 = vld [vmem:[%s2] sm:$0xf]
        %v441 = vld [vmem:[%s2 + $0x4] sm:$0xf]
        %v442 = vld [vmem:[%s2 + $0x8] sm:$0xf]
        %v443 = vld [vmem:[%s2 + $0xc] sm:$0xf]
        %v444 = vld [vmem:[%s3] sm:$0xf]
        %v445 = vld [vmem:[%s3 + $0x4] sm:$0xf]
        %v446 = vld [vmem:[%s3 + $0x8] sm:$0xf]
        %v447 = vld [vmem:[%s3 + $0xc] sm:$0xf]
        %v448 = vld [vmem:[%s4] sm:$0xf]
        %v449 = vld [vmem:[%s4 + $0x4] sm:$0xf]
        %v450 = vld [vmem:[%s4 + $0x8] sm:$0xf]
        %v451 = vld [vmem:[%s4 + $0xc] sm:$0xf]
        %v452 = vld [vmem:[%s5] sm:$0xf]
        %v453 = vld [vmem:[%s5 + $0x4] sm:$0xf]
        %v454 = vld [vmem:[%s5 + $0x8] sm:$0xf]
        %v455 = vld [vmem:[%s5 + $0xc] sm:$0xf]
        %v456 = vld [vmem:[%s5 + $0x10] sm:$0xf]
        %v457 = vld [vmem:[%s5 + $0x14] sm:$0xf]
        %v458 = vld [vmem:[%s5 + $0x18] sm:$0xf]
        %v459 = vld [vmem:[%s5 + $0x1c] sm:$0xf]
        %v460 = vld [vmem:[%s5 + $0x20] sm:$0xf]
        %v461 = vld [vmem:[%s5 + $0x24] sm:$0xf]
        %v462 = vld [vmem:[%s5 + $0x28] sm:$0xf]
        %v463 = vld [vmem:[%s5 + $0x2c] sm:$0xf]
        %v464 = vld [vmem:[%s5 + $0x30] sm:$0xf]
        %v465 = vld [vmem:[%s5 + $0x34] sm:$0xf]
        %v466 = vld [vmem:[%s5 + $0x38] sm:$0xf]
        %v467 = vld [vmem:[%s5 + $0x3c] sm:$0xf]
        %vm468 = vcmask 261120
        %v469 = vsel %vm468, %v412, 0.0
        %470 = vadd.xlane.f32.xlu0 %v469
        %v471 = vpop.xlane.xlu0 %470
        %v472 = vsel %vm468, %v413, 0.0
        %473 = vadd.xlane.f32.xlu0 %v472
        %v474 = vpop.xlane.xlu0 %473
        %v475 = vsel %vm468, %v414, 0.0
        %476 = vadd.xlane.f32.xlu0 %v475
        %v477 = vpop.xlane.xlu0 %476
        %v478 = vsel %vm468, %v415, 0.0
        %479 = vadd.xlane.f32.xlu0 %v478
        %v480 = vpop.xlane.xlu0 %479
        %vm481 = vcmask 253952
        %v482 = vsel %vm481, %v416, 0.0
        %483 = vadd.xlane.f32.xlu0 %v482
        %v484 = vpop.xlane.xlu0 %483
        %v485 = vrcp.pop 32.0
        %v486 = vmul.f32 32.0, %v485
        %v487 = vsub.f32 1.0, %v486
        %v488 = vmul.f32 %v485, %v487
        %v489 = vadd.f32 %v485, %v488
        %vm490 = vweird.f32 %v485
        %v491 = vsel %vm490, %v485, %v489
        %v492 = vmul.f32 %v471, %v491
        %v493 = vmul.f32 %v474, %v491
        %v494 = vmul.f32 %v477, %v491
        %v495 = vmul.f32 %v480, %v491
        %v496 = vmul.f32 %v484, %v491
        %v497 = vsub.f32 %v412, %v492
        %v498 = vsub.f32 %v413, %v493
        %v499 = vsub.f32 %v414, %v494
        %v500 = vsub.f32 %v415, %v495
        %v501 = vsub.f32 %v416, %v496
        %v502 = vmul.f32 %v497, %v497
        %v503 = vmul.f32 %v498, %v498
        %v504 = vmul.f32 %v499, %v499
        %v505 = vmul.f32 %v500, %v500
        %v506 = vmul.f32 %v501, %v501
        %v507 = vsel %vm468, %v502, 0.0
        %508 = vadd.xlane.f32.xlu0 %v507
        %v509 = vpop.xlane.xlu0 %508
        %v510 = vsel %vm468, %v503, 0.0
        %511 = vadd.xlane.f32.xlu0 %v510
        %v512 = vpop.xlane.xlu0 %511
        %v513 = vsel %vm468, %v504, 0.0
        %514 = vadd.xlane.f32.xlu0 %v513
        %v515 = vpop.xlane.xlu0 %514
        %v516 = vsel %vm468, %v505, 0.0
        %517 = vadd.xlane.f32.xlu0 %v516
        %v518 = vpop.xlane.xlu0 %517
        %v519 = vsel %vm481, %v506, 0.0
        %520 = vadd.xlane.f32.xlu0 %v519
        %v521 = vpop.xlane.xlu0 %520
        %v522 = vmul.f32 %v509, %v491
        %v523 = vmul.f32 %v512, %v491
        %v524 = vmul.f32 %v515, %v491
        %v525 = vmul.f32 %v518, %v491
        %v526 = vmul.f32 %v521, %v491
        %v527 = vadd.f32 %v522, 1e-06
        %v528 = vadd.f32 %v523, 1e-06
        %v529 = vadd.f32 %v524, 1e-06
        %v530 = vadd.f32 %v525, 1e-06
        %v531 = vadd.f32 %v526, 1e-06
        %v532 = vrsqrt.pop %v527
        %v533 = vmul.f32 %v532, %v527
        %v534 = vmul.f32 %v533, %v532
        %v535 = vmul.f32 0.5, %v534
        %v536 = vsub.f32 1.5, %v535
        %v537 = vmul.f32 %v532, %v536
        %vm538 = vweird.f32 %v527
        %vm539 = vweird.f32 %v532
        %vm540 = vmor %vm538, %vm539
        %v541 = vsel %vm540, %v532, %v537
        %v542 = vrsqrt.pop %v528
        %v543 = vmul.f32 %v542, %v528
        %v544 = vmul.f32 %v543, %v542
        %v545 = vmul.f32 0.5, %v544
        %v546 = vsub.f32 1.5, %v545
        %v547 = vmul.f32 %v542, %v546
        %vm548 = vweird.f32 %v528
        %vm549 = vweird.f32 %v542
        %vm550 = vmor %vm548, %vm549
        %v551 = vsel %vm550, %v542, %v547
        %v552 = vrsqrt.pop %v529
        %v553 = vmul.f32 %v552, %v529
        %v554 = vmul.f32 %v553, %v552
        %v555 = vmul.f32 0.5, %v554
        %v556 = vsub.f32 1.5, %v555
        %v557 = vmul.f32 %v552, %v556
        %vm558 = vweird.f32 %v529
        %vm559 = vweird.f32 %v552
        %vm560 = vmor %vm558, %vm559
        %v561 = vsel %vm560, %v552, %v557
        %v562 = vrsqrt.pop %v530
        %v563 = vmul.f32 %v562, %v530
        %v564 = vmul.f32 %v563, %v562
        %v565 = vmul.f32 0.5, %v564
        %v566 = vsub.f32 1.5, %v565
        %v567 = vmul.f32 %v562, %v566
        %vm568 = vweird.f32 %v530
        %vm569 = vweird.f32 %v562
        %vm570 = vmor %vm568, %vm569
        %v571 = vsel %vm570, %v562, %v567
        %v572 = vrsqrt.pop %v531
        %v573 = vmul.f32 %v572, %v531
        %v574 = vmul.f32 %v573, %v572
        %v575 = vmul.f32 0.5, %v574
        %v576 = vsub.f32 1.5, %v575
        %v577 = vmul.f32 %v572, %v576
        %vm578 = vweird.f32 %v531
        %vm579 = vweird.f32 %v572
        %vm580 = vmor %vm578, %vm579
        %v581 = vsel %vm580, %v572, %v577
        %v582 = vmul.f32 %v497, %v541
        %v583 = vmul.f32 %v498, %v551
        %v584 = vmul.f32 %v499, %v561
        %v585 = vmul.f32 %v500, %v571
        %v586 = vmul.f32 %v501, %v581
        %v587 = vperm.slane %v438, 0
        %v588 = vmul.f32 %v582, %v587
        %v589 = vmul.f32 %v583, %v587
        %v590 = vmul.f32 %v584, %v587
        %v591 = vmul.f32 %v585, %v587
        %v592 = vmul.f32 %v586, %v587
        %v593 = vperm.slane %v438, 1
        %v594 = vadd.f32 %v588, %v593
        %v595 = vadd.f32 %v589, %v593
        %v596 = vadd.f32 %v590, %v593
        %v597 = vadd.f32 %v591, %v593
        %v598 = vadd.f32 %v592, %v593
        %v599 = vpack.c.bf16 %v595, %v594
        %v600 = vpack.c.bf16 %v597, %v596
        %v601 = vpack.c.bf16 %v598, %v598
        %v602 = vperm.slane %v438, 2
        %v607 = vunpack.c.l.b16 %v440
        %v608 = vunpack.c.l.b16 %v441
        %v609 = vunpack.c.l.b16 %v442
        %v610 = vunpack.c.l.b16 %v443
        %v611 = vpack.c.b16 %v608, %v607
        %v612 = vpack.c.b16 %v610, %v609
        %v616 = vsel %vm468, %v599, 0
        %v619 = vsel %vm468, %v600, 0
        %v622 = vsel %vm468, %v601, 0
        %624 = vmatpush.bf16.msra.mxu0 0
        %625 = vmatpush.bf16.msra.mxu0 0
        %626 = vmatpush.bf16.msra.mxu0 0
        %627 = vmatpush.bf16.msra.mxu0 0
        %628 = vmatpush.bf16.msra.mxu0 0
        %629 = vmatpush.bf16.msra.mxu0 0
        %630 = vmatpush.bf16.msra.mxu0 %v612
        %631 = vmatpush.bf16.msra.mxu0 %v611
        %632 = vmatmul.bf16.gmra.mxu0 %v616
        %v633 = vpop.f32.mrf.mxu0
        %v634 = vadd.f32 %v602, %v633
        %v635 = vpop.f32.mrf.mxu0
        %v636 = vadd.f32 %v602, %v635
        %637 = vmatmul.bf16.gmra.mxu0 %v619
        %v638 = vpop.f32.mrf.mxu0
        %v639 = vadd.f32 %v602, %v638
        %v640 = vpop.f32.mrf.mxu0
        %v641 = vadd.f32 %v602, %v640
        %642 = vmatmul.bf16.gmra.mxu0 %v622
        %v643 = vpop.f32.mrf.mxu0
        %v644 = vadd.f32 %v602, %v643
        %v645 = vpop.f32.mrf.mxu0
        %646 = vdwg.mxu0
        %v647 = vpack.c.bf16 %v636, %v634
        %v648 = vpack.c.bf16 %v641, %v639
        %v649 = vpack.c.bf16 %v644, %v644
        %653 = vrot.lane.b32.xlu0 %v647, 96
        %v654 = vpop.permute.xlu0 %653
        %655 = vrot.lane.b32.xlu0 %v648, 96
        %v656 = vpop.permute.xlu0 %655
        %657 = vrot.lane.b32.xlu0 %v649, 96
        %v658 = vpop.permute.xlu0 %657
        %v660 = vsel %vm468, %v647, 0
        %v663 = vsel %vm468, %v648, 0
        %v666 = vsel %vm468, %v649, 0
        %v669 = vsel %vm468, %v654, 0
        %v672 = vsel %vm468, %v656, 0
        %v675 = vsel %vm468, %v658, 0
        %677 = vmatpush.bf16.xpose.msra.mxu0 0
        %678 = vmatpush.bf16.xpose.msra.mxu0 0
        %679 = vmatpush.bf16.xpose.msra.mxu0 0
        %680 = vmatpush.bf16.xpose.msra.mxu0 0
        %681 = vmatpush.bf16.xpose.msra.mxu0 0
        %682 = vmatpush.bf16.xpose.msra.mxu0 %v675
        %683 = vmatpush.bf16.xpose.msra.mxu0 %v672
        %684 = vmatpush.bf16.xpose.msra.mxu0 %v669
        %685 = vmatmul.bf16.gmra.mxu0 %v660
        %v686 = vpop.f32.mrf.mxu0
        %v687 = vadd.f32 0.0, %v686
        %v688 = vpop.f32.mrf.mxu0
        %v689 = vadd.f32 0.0, %v688
        %690 = vmatmul.bf16.gmra.mxu0 %v663
        %v691 = vpop.f32.mrf.mxu0
        %v692 = vadd.f32 0.0, %v691
        %v693 = vpop.f32.mrf.mxu0
        %v694 = vadd.f32 0.0, %v693
        %695 = vmatmul.bf16.gmra.mxu0 %v666
        %v696 = vpop.f32.mrf.mxu0
        %v697 = vadd.f32 0.0, %v696
        %v698 = vpop.f32.mrf.mxu0
        %699 = vdwg.mxu0
        %vm700 = vcmask 269312
        %v701 = vsel %vm700, %v687, -inf
        %702 = vmax.xlane.f32.xlu0 %v701
        %v703 = vpop.xlane.xlu0 %702
        %v704 = vsel %vm700, %v689, -inf
        %705 = vmax.xlane.f32.xlu0 %v704
        %v706 = vpop.xlane.xlu0 %705
        %v707 = vsel %vm700, %v692, -inf
        %708 = vmax.xlane.f32.xlu0 %v707
        %v709 = vpop.xlane.xlu0 %708
        %v710 = vsel %vm700, %v694, -inf
        %711 = vmax.xlane.f32.xlu0 %v710
        %v712 = vpop.xlane.xlu0 %711
        %vm713 = vcmask 262144
        %v714 = vsel %vm713, %v697, -inf
        %715 = vmax.xlane.f32.xlu0 %v714
        %v716 = vpop.xlane.xlu0 %715
        %v717 = vsub.f32 %v687, %v703
        %v718 = vsub.f32 %v689, %v706
        %v719 = vsub.f32 %v692, %v709
        %v720 = vsub.f32 %v694, %v712
        %v721 = vsub.f32 %v697, %v716
        %v722 = vmul.f32 %v717, 1.442695
        %v723 = vpow.pop %v722
        %v724 = vmul.f32 %v718, 1.442695
        %v725 = vpow.pop %v724
        %v726 = vmul.f32 %v719, 1.442695
        %v727 = vpow.pop %v726
        %v728 = vmul.f32 %v720, 1.442695
        %v729 = vpow.pop %v728
        %v730 = vmul.f32 %v721, 1.442695
        %v731 = vpow.pop %v730
        %v732 = vsel %vm700, %v723, 0.0
        %733 = vadd.xlane.f32.xlu0 %v732
        %v734 = vpop.xlane.xlu0 %733
        %v735 = vsel %vm700, %v725, 0.0
        %736 = vadd.xlane.f32.xlu0 %v735
        %v737 = vpop.xlane.xlu0 %736
        %v738 = vsel %vm700, %v727, 0.0
        %739 = vadd.xlane.f32.xlu0 %v738
        %v740 = vpop.xlane.xlu0 %739
        %v741 = vsel %vm700, %v729, 0.0
        %742 = vadd.xlane.f32.xlu0 %v741
        %v743 = vpop.xlane.xlu0 %742
        %v744 = vsel %vm713, %v731, 0.0
        %745 = vadd.xlane.f32.xlu0 %v744
        %v746 = vpop.xlane.xlu0 %745
        %v747 = vrcp.pop %v734
        %v748 = vrcp.pop %v737
        %v749 = vrcp.pop %v740
        %v750 = vrcp.pop %v743
        %v751 = vrcp.pop %v746
        %v752 = vmul.f32 %v723, %v747
        %v753 = vmul.f32 %v725, %v748
        %v754 = vmul.f32 %v727, %v749
        %v755 = vmul.f32 %v729, %v750
        %v756 = vmul.f32 %v731, %v751
        %v757 = vpack.c.bf16 %v753, %v752
        %v758 = vpack.c.bf16 %v755, %v754
        %v759 = vpack.c.bf16 %v756, %v756
        %v760 = vmul.f32 %v634, %v433
        %v761 = vmul.f32 %v636, %v434
        %v762 = vmul.f32 %v639, %v435
        %v763 = vmul.f32 %v641, %v436
        %v764 = vmul.f32 %v644, %v437
        %765 = vrot.lane.b32.xlu0 %v647, 64
        %v766 = vpop.permute.xlu0 %765
        %767 = vrot.lane.b32.xlu0 %v648, 64
        %v768 = vpop.permute.xlu0 %767
        %769 = vrot.lane.b32.xlu0 %v649, 64
        %v770 = vpop.permute.xlu0 %769
        %v774 = vsel %vm700, %v757, 0
        %v777 = vsel %vm700, %v758, 0
        %v780 = vsel %vm700, %v759, 0
        %vm782 = vcmask 1040384
        %v783 = vsel 0, 4294967295, 65535
        %v784 = vsel %vm782, %v783, 0
        %v786 = vand.u32 %v770, %v784
        %788 = vmatpush.bf16.msra.mxu0 0
        %789 = vmatpush.bf16.msra.mxu0 0
        %790 = vmatpush.bf16.msra.mxu0 0
        %791 = vmatpush.bf16.msra.mxu0 0
        %792 = vmatpush.bf16.msra.mxu0 0
        %793 = vmatpush.bf16.msra.mxu0 %v786
        %794 = vmatpush.bf16.msra.mxu0 %v768
        %795 = vmatpush.bf16.msra.mxu0 %v766
        %796 = vmatmul.bf16.gmra.mxu0 %v774
        %v797 = vpop.f32.mrf.mxu0
        %v798 = vadd.f32 %v760, %v797
        %v799 = vpop.f32.mrf.mxu0
        %v800 = vadd.f32 %v761, %v799
        %801 = vmatmul.bf16.gmra.mxu0 %v777
        %v802 = vpop.f32.mrf.mxu0
        %v803 = vadd.f32 %v762, %v802
        %v804 = vpop.f32.mrf.mxu0
        %v805 = vadd.f32 %v763, %v804
        %806 = vmatmul.bf16.gmra.mxu0 %v780
        %v807 = vpop.f32.mrf.mxu0
        %v808 = vadd.f32 %v764, %v807
        %v809 = vpop.f32.mrf.mxu0
        %810 = vdwg.mxu0
        %v811 = vpack.c.bf16 %v800, %v798
        %v812 = vpack.c.bf16 %v805, %v803
        %v813 = vpack.c.bf16 %v808, %v808
        %v814 = vperm.slane %v438, 3
        %v819 = vunpack.c.l.b16 %v444
        %v820 = vunpack.c.l.b16 %v445
        %v821 = vunpack.c.l.b16 %v446
        %v822 = vunpack.c.l.b16 %v447
        %v823 = vpack.c.b16 %v820, %v819
        %v824 = vpack.c.b16 %v822, %v821
        %v828 = vsel %vm468, %v811, 0
        %v831 = vsel %vm468, %v812, 0
        %v834 = vsel %vm468, %v813, 0
        %836 = vmatpush.bf16.msra.mxu0 0
        %837 = vmatpush.bf16.msra.mxu0 0
        %838 = vmatpush.bf16.msra.mxu0 0
        %839 = vmatpush.bf16.msra.mxu0 0
        %840 = vmatpush.bf16.msra.mxu0 0
        %841 = vmatpush.bf16.msra.mxu0 0
        %842 = vmatpush.bf16.msra.mxu0 %v824
        %843 = vmatpush.bf16.msra.mxu0 %v823
        %844 = vmatmul.bf16.gmra.mxu0 %v828
        %v845 = vpop.f32.mrf.mxu0
        %v846 = vadd.f32 %v814, %v845
        %v847 = vpop.f32.mrf.mxu0
        %v848 = vadd.f32 %v814, %v847
        %849 = vmatmul.bf16.gmra.mxu0 %v831
        %v850 = vpop.f32.mrf.mxu0
        %v851 = vadd.f32 %v814, %v850
        %v852 = vpop.f32.mrf.mxu0
        %v853 = vadd.f32 %v814, %v852
        %854 = vmatmul.bf16.gmra.mxu0 %v834
        %v855 = vpop.f32.mrf.mxu0
        %v856 = vadd.f32 %v814, %v855
        %v857 = vpop.f32.mrf.mxu0
        %858 = vdwg.mxu0
        %v859 = vadd.f32 %v412, %v846
        %v860 = vadd.f32 %v413, %v848
        %v861 = vadd.f32 %v414, %v851
        %v862 = vadd.f32 %v415, %v853
        %v863 = vadd.f32 %v416, %v856
        %v864 = vsel %vm468, %v859, 0.0
        %865 = vadd.xlane.f32.xlu0 %v864
        %v866 = vpop.xlane.xlu0 %865
        %v867 = vsel %vm468, %v860, 0.0
        %868 = vadd.xlane.f32.xlu0 %v867
        %v869 = vpop.xlane.xlu0 %868
        %v870 = vsel %vm468, %v861, 0.0
        %871 = vadd.xlane.f32.xlu0 %v870
        %v872 = vpop.xlane.xlu0 %871
        %v873 = vsel %vm468, %v862, 0.0
        %874 = vadd.xlane.f32.xlu0 %v873
        %v875 = vpop.xlane.xlu0 %874
        %v876 = vsel %vm481, %v863, 0.0
        %877 = vadd.xlane.f32.xlu0 %v876
        %v878 = vpop.xlane.xlu0 %877
        %v879 = vmul.f32 %v866, %v491
        %v880 = vmul.f32 %v869, %v491
        %v881 = vmul.f32 %v872, %v491
        %v882 = vmul.f32 %v875, %v491
        %v883 = vmul.f32 %v878, %v491
        %v884 = vsub.f32 %v859, %v879
        %v885 = vsub.f32 %v860, %v880
        %v886 = vsub.f32 %v861, %v881
        %v887 = vsub.f32 %v862, %v882
        %v888 = vsub.f32 %v863, %v883
        %v889 = vmul.f32 %v884, %v884
        %v890 = vmul.f32 %v885, %v885
        %v891 = vmul.f32 %v886, %v886
        %v892 = vmul.f32 %v887, %v887
        %v893 = vmul.f32 %v888, %v888
        %v894 = vsel %vm468, %v889, 0.0
        %895 = vadd.xlane.f32.xlu0 %v894
        %v896 = vpop.xlane.xlu0 %895
        %v897 = vsel %vm468, %v890, 0.0
        %898 = vadd.xlane.f32.xlu0 %v897
        %v899 = vpop.xlane.xlu0 %898
        %v900 = vsel %vm468, %v891, 0.0
        %901 = vadd.xlane.f32.xlu0 %v900
        %v902 = vpop.xlane.xlu0 %901
        %v903 = vsel %vm468, %v892, 0.0
        %904 = vadd.xlane.f32.xlu0 %v903
        %v905 = vpop.xlane.xlu0 %904
        %v906 = vsel %vm481, %v893, 0.0
        %907 = vadd.xlane.f32.xlu0 %v906
        %v908 = vpop.xlane.xlu0 %907
        %v909 = vmul.f32 %v896, %v491
        %v910 = vmul.f32 %v899, %v491
        %v911 = vmul.f32 %v902, %v491
        %v912 = vmul.f32 %v905, %v491
        %v913 = vmul.f32 %v908, %v491
        %v914 = vadd.f32 %v909, 1e-06
        %v915 = vadd.f32 %v910, 1e-06
        %v916 = vadd.f32 %v911, 1e-06
        %v917 = vadd.f32 %v912, 1e-06
        %v918 = vadd.f32 %v913, 1e-06
        %v919 = vrsqrt.pop %v914
        %v920 = vmul.f32 %v919, %v914
        %v921 = vmul.f32 %v920, %v919
        %v922 = vmul.f32 0.5, %v921
        %v923 = vsub.f32 1.5, %v922
        %v924 = vmul.f32 %v919, %v923
        %vm925 = vweird.f32 %v914
        %vm926 = vweird.f32 %v919
        %vm927 = vmor %vm925, %vm926
        %v928 = vsel %vm927, %v919, %v924
        %v929 = vrsqrt.pop %v915
        %v930 = vmul.f32 %v929, %v915
        %v931 = vmul.f32 %v930, %v929
        %v932 = vmul.f32 0.5, %v931
        %v933 = vsub.f32 1.5, %v932
        %v934 = vmul.f32 %v929, %v933
        %vm935 = vweird.f32 %v915
        %vm936 = vweird.f32 %v929
        %vm937 = vmor %vm935, %vm936
        %v938 = vsel %vm937, %v929, %v934
        %v939 = vrsqrt.pop %v916
        %v940 = vmul.f32 %v939, %v916
        %v941 = vmul.f32 %v940, %v939
        %v942 = vmul.f32 0.5, %v941
        %v943 = vsub.f32 1.5, %v942
        %v944 = vmul.f32 %v939, %v943
        %vm945 = vweird.f32 %v916
        %vm946 = vweird.f32 %v939
        %vm947 = vmor %vm945, %vm946
        %v948 = vsel %vm947, %v939, %v944
        %v949 = vrsqrt.pop %v917
        %v950 = vmul.f32 %v949, %v917
        %v951 = vmul.f32 %v950, %v949
        %v952 = vmul.f32 0.5, %v951
        %v953 = vsub.f32 1.5, %v952
        %v954 = vmul.f32 %v949, %v953
        %vm955 = vweird.f32 %v917
        %vm956 = vweird.f32 %v949
        %vm957 = vmor %vm955, %vm956
        %v958 = vsel %vm957, %v949, %v954
        %v959 = vrsqrt.pop %v918
        %v960 = vmul.f32 %v959, %v918
        %v961 = vmul.f32 %v960, %v959
        %v962 = vmul.f32 0.5, %v961
        %v963 = vsub.f32 1.5, %v962
        %v964 = vmul.f32 %v959, %v963
        %vm965 = vweird.f32 %v918
        %vm966 = vweird.f32 %v959
        %vm967 = vmor %vm965, %vm966
        %v968 = vsel %vm967, %v959, %v964
        %v969 = vmul.f32 %v884, %v928
        %v970 = vmul.f32 %v885, %v938
        %v971 = vmul.f32 %v886, %v948
        %v972 = vmul.f32 %v887, %v958
        %v973 = vmul.f32 %v888, %v968
        %v974 = vperm.slane %v438, 5
        %v975 = vmul.f32 %v969, %v974
        %v976 = vmul.f32 %v970, %v974
        %v977 = vmul.f32 %v971, %v974
        %v978 = vmul.f32 %v972, %v974
        %v979 = vmul.f32 %v973, %v974
        %v980 = vperm.slane %v438, 6
        %v981 = vadd.f32 %v975, %v980
        %v982 = vadd.f32 %v976, %v980
        %v983 = vadd.f32 %v977, %v980
        %v984 = vadd.f32 %v978, %v980
        %v985 = vadd.f32 %v979, %v980
        %v986 = vpack.c.bf16 %v982, %v981
        %v987 = vpack.c.bf16 %v984, %v983
        %v988 = vpack.c.bf16 %v985, %v985
        %v989 = vperm.slane %v438, 7
        %v994 = vunpack.c.l.b16 %v448
        %v995 = vunpack.c.l.b16 %v449
        %v996 = vunpack.c.l.b16 %v450
        %v997 = vunpack.c.l.b16 %v451
        %v998 = vpack.c.b16 %v995, %v994
        %v999 = vpack.c.b16 %v997, %v996
        %v1003 = vsel %vm468, %v986, 0
        %v1006 = vsel %vm468, %v987, 0
        %v1009 = vsel %vm468, %v988, 0
        %1011 = vmatpush.bf16.msra.mxu0 0
        %1012 = vmatpush.bf16.msra.mxu0 0
        %1013 = vmatpush.bf16.msra.mxu0 0
        %1014 = vmatpush.bf16.msra.mxu0 0
        %1015 = vmatpush.bf16.msra.mxu0 0
        %1016 = vmatpush.bf16.msra.mxu0 0
        %1017 = vmatpush.bf16.msra.mxu0 %v999
        %1018 = vmatpush.bf16.msra.mxu0 %v998
        %1019 = vmatmul.bf16.gmra.mxu0 %v1003
        %v1020 = vpop.f32.mrf.mxu0
        %v1021 = vadd.f32 %v989, %v1020
        %v1022 = vpop.f32.mrf.mxu0
        %v1023 = vadd.f32 %v989, %v1022
        %1024 = vmatmul.bf16.gmra.mxu0 %v1006
        %v1025 = vpop.f32.mrf.mxu0
        %v1026 = vadd.f32 %v989, %v1025
        %v1027 = vpop.f32.mrf.mxu0
        %v1028 = vadd.f32 %v989, %v1027
        %1029 = vmatmul.bf16.gmra.mxu0 %v1009
        %v1030 = vpop.f32.mrf.mxu0
        %v1031 = vadd.f32 %v989, %v1030
        %v1032 = vpop.f32.mrf.mxu0
        %1033 = vdwg.mxu0
        %v1034 = vmul.f32 %v1021, 0.5
        %v1035 = vmul.f32 %v1023, 0.5
        %v1036 = vmul.f32 %v1026, 0.5
        %v1037 = vmul.f32 %v1028, 0.5
        %v1038 = vmul.f32 %v1031, 0.5
        %v1039 = vmul.f32 %v1021, 0.70710677
        %v1040 = vmul.f32 %v1023, 0.70710677
        %v1041 = vmul.f32 %v1026, 0.70710677
        %v1042 = vmul.f32 %v1028, 0.70710677
        %v1043 = vmul.f32 %v1031, 0.70710677
        %v1044 = vmul.f32 %v1039, %v1039
        %v1045 = vmin.f32 16.0, %v1044
        %v1046 = vmul.f32 %v1045, 2.1237322e-06
        %v1047 = vadd.f32 %v1046, 0.00028619796
        %v1048 = vmul.f32 %v1045, %v1047
        %v1049 = vadd.f32 %v1048, 0.0036580483
        %v1050 = vmul.f32 %v1045, %v1049
        %v1051 = vadd.f32 %v1050, 0.05243302
        %v1052 = vmul.f32 %v1045, %v1051
        %v1053 = vadd.f32 %v1052, 0.18741608
        %v1054 = vmul.f32 %v1045, %v1053
        %v1055 = vadd.f32 %v1054, 1.1283791
        %v1056 = vmul.f32 %v1039, %v1055
        %v1057 = vmul.f32 %v1045, 3.8918573e-05
        %v1058 = vadd.f32 %v1057, 0.001143296
        %v1059 = vmul.f32 %v1045, %v1058
        %v1060 = vadd.f32 %v1059, 0.014752088
        %v1061 = vmul.f32 %v1045, %v1060
        %v1062 = vadd.f32 %v1061, 0.112945676
        %v1063 = vmul.f32 %v1045, %v1062
        %v1064 = vadd.f32 %v1063, 0.4994258
        %v1065 = vmul.f32 %v1045, %v1064
        %v1066 = vadd.f32 %v1065, 1.0
        %v1067 = vrcp.pop %v1066
        %v1068 = vmul.f32 %v1066, %v1067
        %v1069 = vsub.f32 1.0, %v1068
        %v1070 = vmul.f32 %v1067, %v1069
        %v1071 = vadd.f32 %v1067, %v1070
        %vm1072 = vweird.f32 %v1066
        %vm1073 = vweird.f32 %v1067
        %vm1074 = vmor %vm1072, %vm1073
        %v1075 = vsel %vm1074, %v1067, %v1071
        %v1076 = vand.u32 2147483647, %v1066
        %vm1077 = vcmp.eq.f32.partialorder %v1076, 8.507059e+37
        %v1078 = vand.u32 %v1066, 2147483648
        %v1079 = vor.u32 1.1754944e-38, %v1078
        %v1080 = vsel %vm1077, %v1079, %v1075
        %v1081 = vmul.f32 %v1056, %v1080
        %v1082 = vmin.f32 %v1081, 1.0
        %v1083 = vmax.f32 %v1082, -1.0
        %v1084 = vmul.f32 %v1040, %v1040
        %v1085 = vmin.f32 16.0, %v1084
        %v1086 = vmul.f32 %v1085, 2.1237322e-06
        %v1087 = vadd.f32 %v1086, 0.00028619796
        %v1088 = vmul.f32 %v1085, %v1087
        %v1089 = vadd.f32 %v1088, 0.0036580483
        %v1090 = vmul.f32 %v1085, %v1089
        %v1091 = vadd.f32 %v1090, 0.05243302
        %v1092 = vmul.f32 %v1085, %v1091
        %v1093 = vadd.f32 %v1092, 0.18741608
        %v1094 = vmul.f32 %v1085, %v1093
        %v1095 = vadd.f32 %v1094, 1.1283791
        %v1096 = vmul.f32 %v1040, %v1095
        %v1097 = vmul.f32 %v1085, 3.8918573e-05
        %v1098 = vadd.f32 %v1097, 0.001143296
        %v1099 = vmul.f32 %v1085, %v1098
        %v1100 = vadd.f32 %v1099, 0.014752088
        %v1101 = vmul.f32 %v1085, %v1100
        %v1102 = vadd.f32 %v1101, 0.112945676
        %v1103 = vmul.f32 %v1085, %v1102
        %v1104 = vadd.f32 %v1103, 0.4994258
        %v1105 = vmul.f32 %v1085, %v1104
        %v1106 = vadd.f32 %v1105, 1.0
        %v1107 = vrcp.pop %v1106
        %v1108 = vmul.f32 %v1106, %v1107
        %v1109 = vsub.f32 1.0, %v1108
        %v1110 = vmul.f32 %v1107, %v1109
        %v1111 = vadd.f32 %v1107, %v1110
        %vm1112 = vweird.f32 %v1106
        %vm1113 = vweird.f32 %v1107
        %vm1114 = vmor %vm1112, %vm1113
        %v1115 = vsel %vm1114, %v1107, %v1111
        %v1116 = vand.u32 2147483647, %v1106
        %vm1117 = vcmp.eq.f32.partialorder %v1116, 8.507059e+37
        %v1118 = vand.u32 %v1106, 2147483648
        %v1119 = vor.u32 1.1754944e-38, %v1118
        %v1120 = vsel %vm1117, %v1119, %v1115
        %v1121 = vmul.f32 %v1096, %v1120
        %v1122 = vmin.f32 %v1121, 1.0
        %v1123 = vmax.f32 %v1122, -1.0
        %v1124 = vmul.f32 %v1041, %v1041
        %v1125 = vmin.f32 16.0, %v1124
        %v1126 = vmul.f32 %v1125, 2.1237322e-06
        %v1127 = vadd.f32 %v1126, 0.00028619796
        %v1128 = vmul.f32 %v1125, %v1127
        %v1129 = vadd.f32 %v1128, 0.0036580483
        %v1130 = vmul.f32 %v1125, %v1129
        %v1131 = vadd.f32 %v1130, 0.05243302
        %v1132 = vmul.f32 %v1125, %v1131
        %v1133 = vadd.f32 %v1132, 0.18741608
        %v1134 = vmul.f32 %v1125, %v1133
        %v1135 = vadd.f32 %v1134, 1.1283791
        %v1136 = vmul.f32 %v1041, %v1135
        %v1137 = vmul.f32 %v1125, 3.8918573e-05
        %v1138 = vadd.f32 %v1137, 0.001143296
        %v1139 = vmul.f32 %v1125, %v1138
        %v1140 = vadd.f32 %v1139, 0.014752088
        %v1141 = vmul.f32 %v1125, %v1140
        %v1142 = vadd.f32 %v1141, 0.112945676
        %v1143 = vmul.f32 %v1125, %v1142
        %v1144 = vadd.f32 %v1143, 0.4994258
        %v1145 = vmul.f32 %v1125, %v1144
        %v1146 = vadd.f32 %v1145, 1.0
        %v1147 = vrcp.pop %v1146
        %v1148 = vmul.f32 %v1146, %v1147
        %v1149 = vsub.f32 1.0, %v1148
        %v1150 = vmul.f32 %v1147, %v1149
        %v1151 = vadd.f32 %v1147, %v1150
        %vm1152 = vweird.f32 %v1146
        %vm1153 = vweird.f32 %v1147
        %vm1154 = vmor %vm1152, %vm1153
        %v1155 = vsel %vm1154, %v1147, %v1151
        %v1156 = vand.u32 2147483647, %v1146
        %vm1157 = vcmp.eq.f32.partialorder %v1156, 8.507059e+37
        %v1158 = vand.u32 %v1146, 2147483648
        %v1159 = vor.u32 1.1754944e-38, %v1158
        %v1160 = vsel %vm1157, %v1159, %v1155
        %v1161 = vmul.f32 %v1136, %v1160
        %v1162 = vmin.f32 %v1161, 1.0
        %v1163 = vmax.f32 %v1162, -1.0
        %v1164 = vmul.f32 %v1042, %v1042
        %v1165 = vmin.f32 16.0, %v1164
        %v1166 = vmul.f32 %v1165, 2.1237322e-06
        %v1167 = vadd.f32 %v1166, 0.00028619796
        %v1168 = vmul.f32 %v1165, %v1167
        %v1169 = vadd.f32 %v1168, 0.0036580483
        %v1170 = vmul.f32 %v1165, %v1169
        %v1171 = vadd.f32 %v1170, 0.05243302
        %v1172 = vmul.f32 %v1165, %v1171
        %v1173 = vadd.f32 %v1172, 0.18741608
        %v1174 = vmul.f32 %v1165, %v1173
        %v1175 = vadd.f32 %v1174, 1.1283791
        %v1176 = vmul.f32 %v1042, %v1175
        %v1177 = vmul.f32 %v1165, 3.8918573e-05
        %v1178 = vadd.f32 %v1177, 0.001143296
        %v1179 = vmul.f32 %v1165, %v1178
        %v1180 = vadd.f32 %v1179, 0.014752088
        %v1181 = vmul.f32 %v1165, %v1180
        %v1182 = vadd.f32 %v1181, 0.112945676
        %v1183 = vmul.f32 %v1165, %v1182
        %v1184 = vadd.f32 %v1183, 0.4994258
        %v1185 = vmul.f32 %v1165, %v1184
        %v1186 = vadd.f32 %v1185, 1.0
        %v1187 = vrcp.pop %v1186
        %v1188 = vmul.f32 %v1186, %v1187
        %v1189 = vsub.f32 1.0, %v1188
        %v1190 = vmul.f32 %v1187, %v1189
        %v1191 = vadd.f32 %v1187, %v1190
        %vm1192 = vweird.f32 %v1186
        %vm1193 = vweird.f32 %v1187
        %vm1194 = vmor %vm1192, %vm1193
        %v1195 = vsel %vm1194, %v1187, %v1191
        %v1196 = vand.u32 2147483647, %v1186
        %vm1197 = vcmp.eq.f32.partialorder %v1196, 8.507059e+37
        %v1198 = vand.u32 %v1186, 2147483648
        %v1199 = vor.u32 1.1754944e-38, %v1198
        %v1200 = vsel %vm1197, %v1199, %v1195
        %v1201 = vmul.f32 %v1176, %v1200
        %v1202 = vmin.f32 %v1201, 1.0
        %v1203 = vmax.f32 %v1202, -1.0
        %v1204 = vmul.f32 %v1043, %v1043
        %v1205 = vmin.f32 16.0, %v1204
        %v1206 = vmul.f32 %v1205, 2.1237322e-06
        %v1207 = vadd.f32 %v1206, 0.00028619796
        %v1208 = vmul.f32 %v1205, %v1207
        %v1209 = vadd.f32 %v1208, 0.0036580483
        %v1210 = vmul.f32 %v1205, %v1209
        %v1211 = vadd.f32 %v1210, 0.05243302
        %v1212 = vmul.f32 %v1205, %v1211
        %v1213 = vadd.f32 %v1212, 0.18741608
        %v1214 = vmul.f32 %v1205, %v1213
        %v1215 = vadd.f32 %v1214, 1.1283791
        %v1216 = vmul.f32 %v1043, %v1215
        %v1217 = vmul.f32 %v1205, 3.8918573e-05
        %v1218 = vadd.f32 %v1217, 0.001143296
        %v1219 = vmul.f32 %v1205, %v1218
        %v1220 = vadd.f32 %v1219, 0.014752088
        %v1221 = vmul.f32 %v1205, %v1220
        %v1222 = vadd.f32 %v1221, 0.112945676
        %v1223 = vmul.f32 %v1205, %v1222
        %v1224 = vadd.f32 %v1223, 0.4994258
        %v1225 = vmul.f32 %v1205, %v1224
        %v1226 = vadd.f32 %v1225, 1.0
        %v1227 = vrcp.pop %v1226
        %v1228 = vmul.f32 %v1226, %v1227
        %v1229 = vsub.f32 1.0, %v1228
        %v1230 = vmul.f32 %v1227, %v1229
        %v1231 = vadd.f32 %v1227, %v1230
        %vm1232 = vweird.f32 %v1226
        %vm1233 = vweird.f32 %v1227
        %vm1234 = vmor %vm1232, %vm1233
        %v1235 = vsel %vm1234, %v1227, %v1231
        %v1236 = vand.u32 2147483647, %v1226
        %vm1237 = vcmp.eq.f32.partialorder %v1236, 8.507059e+37
        %v1238 = vand.u32 %v1226, 2147483648
        %v1239 = vor.u32 1.1754944e-38, %v1238
        %v1240 = vsel %vm1237, %v1239, %v1235
        %v1241 = vmul.f32 %v1216, %v1240
        %v1242 = vmin.f32 %v1241, 1.0
        %v1243 = vmax.f32 %v1242, -1.0
        %v1244 = vadd.f32 %v1083, 1.0
        %v1245 = vadd.f32 %v1123, 1.0
        %v1246 = vadd.f32 %v1163, 1.0
        %v1247 = vadd.f32 %v1203, 1.0
        %v1248 = vadd.f32 %v1243, 1.0
        %v1249 = vmul.f32 %v1034, %v1244
        %v1250 = vmul.f32 %v1035, %v1245
        %v1251 = vmul.f32 %v1036, %v1246
        %v1252 = vmul.f32 %v1037, %v1247
        %v1253 = vmul.f32 %v1038, %v1248
        %v1254 = vpack.c.bf16 %v1250, %v1249
        %v1255 = vpack.c.bf16 %v1252, %v1251
        %v1256 = vpack.c.bf16 %v1253, %v1253
        %v1257 = vperm.slane %v439, 0
        %v1274 = vunpack.c.l.b16 %v452
        %v1275 = vunpack.c.l.b16 %v453
        %v1276 = vunpack.c.l.b16 %v454
        %v1277 = vunpack.c.l.b16 %v455
        %v1278 = vunpack.c.l.b16 %v456
        %v1279 = vunpack.c.l.b16 %v457
        %v1280 = vunpack.c.l.b16 %v458
        %v1281 = vunpack.c.l.b16 %v459
        %v1282 = vunpack.c.l.b16 %v460
        %v1283 = vunpack.c.l.b16 %v461
        %v1284 = vunpack.c.l.b16 %v462
        %v1285 = vunpack.c.l.b16 %v463
        %v1286 = vunpack.c.l.b16 %v464
        %v1287 = vunpack.c.l.b16 %v465
        %v1288 = vunpack.c.l.b16 %v466
        %v1289 = vunpack.c.l.b16 %v467
        %v1290 = vpack.c.b16 %v1275, %v1274
        %v1291 = vpack.c.b16 %v1277, %v1276
        %v1292 = vpack.c.b16 %v1279, %v1278
        %v1293 = vpack.c.b16 %v1281, %v1280
        %v1294 = vpack.c.b16 %v1283, %v1282
        %v1295 = vpack.c.b16 %v1285, %v1284
        %v1296 = vpack.c.b16 %v1287, %v1286
        %v1297 = vpack.c.b16 %v1289, %v1288
        %1306 = vmatpush.bf16.msra.mxu0 %v1297
        %1307 = vmatpush.bf16.msra.mxu0 %v1296
        %1308 = vmatpush.bf16.msra.mxu0 %v1295
        %1309 = vmatpush.bf16.msra.mxu0 %v1294
        %1310 = vmatpush.bf16.msra.mxu0 %v1293
        %1311 = vmatpush.bf16.msra.mxu0 %v1292
        %1312 = vmatpush.bf16.msra.mxu0 %v1291
        %1313 = vmatpush.bf16.msra.mxu0 %v1290
        %1314 = vmatmul.bf16.gmra.mxu0 %v1254
        %v1315 = vpop.f32.mrf.mxu0
        %v1316 = vadd.f32 %v1257, %v1315
        %v1317 = vpop.f32.mrf.mxu0
        %v1318 = vadd.f32 %v1257, %v1317
        %1319 = vmatmul.bf16.gmra.mxu0 %v1255
        %v1320 = vpop.f32.mrf.mxu0
        %v1321 = vadd.f32 %v1257, %v1320
        %v1322 = vpop.f32.mrf.mxu0
        %v1323 = vadd.f32 %v1257, %v1322
        %1324 = vmatmul.bf16.gmra.mxu0 %v1256
        %v1325 = vpop.f32.mrf.mxu0
        %v1326 = vadd.f32 %v1257, %v1325
        %v1327 = vpop.f32.mrf.mxu0
        %1328 = vdwg.mxu0
        %v1329 = vadd.f32 %v859, %v1316
        %v1330 = vadd.f32 %v860, %v1318
        %v1331 = vadd.f32 %v861, %v1321
        %v1332 = vadd.f32 %v862, %v1323
        %v1333 = vadd.f32 %v863, %v1326
        %v1334 = vld [vmem:[%s6] sm:$0xff]
        %v1335 = vld [vmem:[%s6 + $0x8] sm:$0xff]
        %v1336 = vld [vmem:[%s6 + $0x10] sm:$0x7]
        %v1337 = vld [vmem:[%s7] sm:$0xff]
        %v1338 = vld [vmem:[%s7 + $0x8] sm:$0xff]
        %v1339 = vld [vmem:[%s7 + $0x10] sm:$0xff]
        %v1340 = vld [vmem:[%s7 + $0x18] sm:$0xff]
        %v1341 = vld [vmem:[%s8] sm:$0xf]
        %v1342 = vld [vmem:[%s8 + $0x4] sm:$0xf]
        %v1343 = vld [vmem:[%s8 + $0x8] sm:$0xf]
        %v1344 = vld [vmem:[%s8 + $0xc] sm:$0xf]
        %v1345 = vld [vmem:[%s8 + $0x10] sm:$0xf]
        %v1346 = vld [vmem:[%s8 + $0x14] sm:$0xf]
        %v1347 = vld [vmem:[%s8 + $0x18] sm:$0xf]
        %v1348 = vld [vmem:[%s8 + $0x1c] sm:$0xf]
        %v1349 = vld [vmem:[%s9] sm:$0xf]
        %v1350 = vld [vmem:[%s9 + $0x4] sm:$0xf]
        %v1351 = vld [vmem:[%s9 + $0x8] sm:$0xf]
        %v1352 = vld [vmem:[%s9 + $0xc] sm:$0xf]
        %v1353 = vld [vmem:[%s10] sm:$0xff]
        %v1354 = vld [vmem:[%s10 + $0x8] sm:$0xff]
        %v1355 = vld [vmem:[%s10 + $0x10] sm:$0xff]
        %v1356 = vld [vmem:[%s10 + $0x18] sm:$0xff]
        %v1357 = vld [vmem:[%s10 + $0x20] sm:$0xff]
        %v1358 = vld [vmem:[%s10 + $0x28] sm:$0xff]
        %v1359 = vld [vmem:[%s10 + $0x30] sm:$0xff]
        %v1360 = vld [vmem:[%s10 + $0x38] sm:$0xff]
        %v1361 = vld [vmem:[%s11] sm:$0xf]
        %v1362 = vld [vmem:[%s11 + $0x4] sm:$0xf]
        %v1363 = vld [vmem:[%s11 + $0x8] sm:$0xf]
        %v1364 = vld [vmem:[%s11 + $0xc] sm:$0xf]
        %v1365 = vld [vmem:[%s11 + $0x10] sm:$0xf]
        %v1366 = vld [vmem:[%s11 + $0x14] sm:$0xf]
        %v1367 = vld [vmem:[%s11 + $0x18] sm:$0xf]
        %v1368 = vld [vmem:[%s11 + $0x1c] sm:$0xf]
        %v1369 = vld [vmem:[%s11 + $0x20] sm:$0xf]
        %v1370 = vld [vmem:[%s11 + $0x24] sm:$0xf]
        %v1371 = vld [vmem:[%s11 + $0x28] sm:$0xf]
        %v1372 = vld [vmem:[%s11 + $0x2c] sm:$0xf]
        %v1373 = vld [vmem:[%s11 + $0x30] sm:$0xf]
        %v1374 = vld [vmem:[%s11 + $0x34] sm:$0xf]
        %v1375 = vld [vmem:[%s11 + $0x38] sm:$0xf]
        %v1376 = vld [vmem:[%s11 + $0x3c] sm:$0xf]
        %v1377 = vld [vmem:[%s11 + $0x40] sm:$0xf]
        %v1378 = vld [vmem:[%s11 + $0x44] sm:$0xf]
        %v1379 = vld [vmem:[%s11 + $0x48] sm:$0xf]
        %v1380 = vld [vmem:[%s11 + $0x4c] sm:$0xf]
        %v1381 = vld [vmem:[%s11 + $0x50] sm:$0xf]
        %v1382 = vld [vmem:[%s11 + $0x54] sm:$0xf]
        %v1383 = vld [vmem:[%s11 + $0x58] sm:$0xf]
        %v1384 = vld [vmem:[%s11 + $0x5c] sm:$0xf]
        %v1385 = vld [vmem:[%s11 + $0x60] sm:$0xf]
        %v1386 = vld [vmem:[%s11 + $0x64] sm:$0xf]
        %v1387 = vld [vmem:[%s11 + $0x68] sm:$0xf]
        %v1388 = vld [vmem:[%s11 + $0x6c] sm:$0xf]
        %v1389 = vld [vmem:[%s11 + $0x70] sm:$0xf]
        %v1390 = vld [vmem:[%s11 + $0x74] sm:$0xf]
        %v1391 = vld [vmem:[%s11 + $0x78] sm:$0xf]
        %v1392 = vld [vmem:[%s11 + $0x7c] sm:$0xf]
        %v1393 = vsel %vm468, %v1329, 0.0
        %1394 = vadd.xlane.f32.xlu0 %v1393
        %v1395 = vpop.xlane.xlu0 %1394
        %v1396 = vsel %vm468, %v1330, 0.0
        %1397 = vadd.xlane.f32.xlu0 %v1396
        %v1398 = vpop.xlane.xlu0 %1397
        %v1399 = vsel %vm468, %v1331, 0.0
        %1400 = vadd.xlane.f32.xlu0 %v1399
        %v1401 = vpop.xlane.xlu0 %1400
        %v1402 = vsel %vm468, %v1332, 0.0
        %1403 = vadd.xlane.f32.xlu0 %v1402
        %v1404 = vpop.xlane.xlu0 %1403
        %v1405 = vsel %vm481, %v1333, 0.0
        %1406 = vadd.xlane.f32.xlu0 %v1405
        %v1407 = vpop.xlane.xlu0 %1406
        %v1408 = vmul.f32 %v1395, %v491
        %v1409 = vmul.f32 %v1398, %v491
        %v1410 = vmul.f32 %v1401, %v491
        %v1411 = vmul.f32 %v1404, %v491
        %v1412 = vmul.f32 %v1407, %v491
        %v1413 = vsub.f32 %v1329, %v1408
        %v1414 = vsub.f32 %v1330, %v1409
        %v1415 = vsub.f32 %v1331, %v1410
        %v1416 = vsub.f32 %v1332, %v1411
        %v1417 = vsub.f32 %v1333, %v1412
        %v1418 = vmul.f32 %v1413, %v1413
        %v1419 = vmul.f32 %v1414, %v1414
        %v1420 = vmul.f32 %v1415, %v1415
        %v1421 = vmul.f32 %v1416, %v1416
        %v1422 = vmul.f32 %v1417, %v1417
        %v1423 = vsel %vm468, %v1418, 0.0
        %1424 = vadd.xlane.f32.xlu0 %v1423
        %v1425 = vpop.xlane.xlu0 %1424
        %v1426 = vsel %vm468, %v1419, 0.0
        %1427 = vadd.xlane.f32.xlu0 %v1426
        %v1428 = vpop.xlane.xlu0 %1427
        %v1429 = vsel %vm468, %v1420, 0.0
        %1430 = vadd.xlane.f32.xlu0 %v1429
        %v1431 = vpop.xlane.xlu0 %1430
        %v1432 = vsel %vm468, %v1421, 0.0
        %1433 = vadd.xlane.f32.xlu0 %v1432
        %v1434 = vpop.xlane.xlu0 %1433
        %v1435 = vsel %vm481, %v1422, 0.0
        %1436 = vadd.xlane.f32.xlu0 %v1435
        %v1437 = vpop.xlane.xlu0 %1436
        %v1438 = vmul.f32 %v1425, %v491
        %v1439 = vmul.f32 %v1428, %v491
        %v1440 = vmul.f32 %v1431, %v491
        %v1441 = vmul.f32 %v1434, %v491
        %v1442 = vmul.f32 %v1437, %v491
        %v1443 = vadd.f32 %v1438, 1e-06
        %v1444 = vadd.f32 %v1439, 1e-06
        %v1445 = vadd.f32 %v1440, 1e-06
        %v1446 = vadd.f32 %v1441, 1e-06
        %v1447 = vadd.f32 %v1442, 1e-06
        %v1448 = vrsqrt.pop %v1443
        %v1449 = vmul.f32 %v1448, %v1443
        %v1450 = vmul.f32 %v1449, %v1448
        %v1451 = vmul.f32 0.5, %v1450
        %v1452 = vsub.f32 1.5, %v1451
        %v1453 = vmul.f32 %v1448, %v1452
        %vm1454 = vweird.f32 %v1443
        %vm1455 = vweird.f32 %v1448
        %vm1456 = vmor %vm1454, %vm1455
        %v1457 = vsel %vm1456, %v1448, %v1453
        %v1458 = vrsqrt.pop %v1444
        %v1459 = vmul.f32 %v1458, %v1444
        %v1460 = vmul.f32 %v1459, %v1458
        %v1461 = vmul.f32 0.5, %v1460
        %v1462 = vsub.f32 1.5, %v1461
        %v1463 = vmul.f32 %v1458, %v1462
        %vm1464 = vweird.f32 %v1444
        %vm1465 = vweird.f32 %v1458
        %vm1466 = vmor %vm1464, %vm1465
        %v1467 = vsel %vm1466, %v1458, %v1463
        %v1468 = vrsqrt.pop %v1445
        %v1469 = vmul.f32 %v1468, %v1445
        %v1470 = vmul.f32 %v1469, %v1468
        %v1471 = vmul.f32 0.5, %v1470
        %v1472 = vsub.f32 1.5, %v1471
        %v1473 = vmul.f32 %v1468, %v1472
        %vm1474 = vweird.f32 %v1445
        %vm1475 = vweird.f32 %v1468
        %vm1476 = vmor %vm1474, %vm1475
        %v1477 = vsel %vm1476, %v1468, %v1473
        %v1478 = vrsqrt.pop %v1446
        %v1479 = vmul.f32 %v1478, %v1446
        %v1480 = vmul.f32 %v1479, %v1478
        %v1481 = vmul.f32 0.5, %v1480
        %v1482 = vsub.f32 1.5, %v1481
        %v1483 = vmul.f32 %v1478, %v1482
        %vm1484 = vweird.f32 %v1446
        %vm1485 = vweird.f32 %v1478
        %vm1486 = vmor %vm1484, %vm1485
        %v1487 = vsel %vm1486, %v1478, %v1483
        %v1488 = vrsqrt.pop %v1447
        %v1489 = vmul.f32 %v1488, %v1447
        %v1490 = vmul.f32 %v1489, %v1488
        %v1491 = vmul.f32 0.5, %v1490
        %v1492 = vsub.f32 1.5, %v1491
        %v1493 = vmul.f32 %v1488, %v1492
        %vm1494 = vweird.f32 %v1447
        %vm1495 = vweird.f32 %v1488
        %vm1496 = vmor %vm1494, %vm1495
        %v1497 = vsel %vm1496, %v1488, %v1493
        %v1498 = vmul.f32 %v1413, %v1457
        %v1499 = vmul.f32 %v1414, %v1467
        %v1500 = vmul.f32 %v1415, %v1477
        %v1501 = vmul.f32 %v1416, %v1487
        %v1502 = vmul.f32 %v1417, %v1497
        %v1503 = vperm.slane %v1334, 0
        %v1504 = vmul.f32 %v1498, %v1503
        %v1505 = vmul.f32 %v1499, %v1503
        %v1506 = vmul.f32 %v1500, %v1503
        %v1507 = vmul.f32 %v1501, %v1503
        %v1508 = vmul.f32 %v1502, %v1503
        %v1509 = vperm.slane %v1334, 1
        %v1510 = vadd.f32 %v1504, %v1509
        %v1511 = vadd.f32 %v1505, %v1509
        %v1512 = vadd.f32 %v1506, %v1509
        %v1513 = vadd.f32 %v1507, %v1509
        %v1514 = vadd.f32 %v1508, %v1509
        %v1515 = vpack.c.bf16 %v1511, %v1510
        %v1516 = vpack.c.bf16 %v1513, %v1512
        %v1517 = vpack.c.bf16 %v1514, %v1514
        %v1518 = vperm.slane %v1334, 2
        %v1519 = vperm.slane %v1335, 2
        %v1524 = vunpack.c.l.b16 %v1337
        %v1525 = vunpack.c.h.b16 %v1337
        %v1526 = vunpack.c.l.b16 %v1338
        %v1527 = vunpack.c.h.b16 %v1338
        %v1528 = vunpack.c.l.b16 %v1339
        %v1529 = vunpack.c.h.b16 %v1339
        %v1530 = vunpack.c.l.b16 %v1340
        %v1531 = vunpack.c.h.b16 %v1340
        %v1532 = vpack.c.b16 %v1526, %v1524
        %v1533 = vpack.c.b16 %v1527, %v1525
        %v1534 = vpack.c.b16 %v1530, %v1528
        %v1535 = vpack.c.b16 %v1531, %v1529
        %v1541 = vsel %vm468, %v1515, 0
        %v1544 = vsel %vm468, %v1516, 0
        %v1547 = vsel %vm468, %v1517, 0
        %1549 = vmatpush.bf16.msra.mxu0 0
        %1550 = vmatpush.bf16.msra.mxu0 0
        %1551 = vmatpush.bf16.msra.mxu0 0
        %1552 = vmatpush.bf16.msra.mxu0 0
        %1553 = vmatpush.bf16.msra.mxu0 0
        %1554 = vmatpush.bf16.msra.mxu0 0
        %1555 = vmatpush.bf16.msra.mxu0 %v1534
        %1556 = vmatpush.bf16.msra.mxu0 %v1532
        %1557 = vmatmul.bf16.gmra.mxu0 %v1541
        %v1558 = vpop.f32.mrf.mxu0
        %v1559 = vadd.f32 %v1518, %v1558
        %v1560 = vpop.f32.mrf.mxu0
        %v1561 = vadd.f32 %v1518, %v1560
        %1562 = vmatmul.bf16.gmra.mxu0 %v1544
        %v1563 = vpop.f32.mrf.mxu0
        %v1564 = vadd.f32 %v1518, %v1563
        %v1565 = vpop.f32.mrf.mxu0
        %v1566 = vadd.f32 %v1518, %v1565
        %1567 = vmatmul.bf16.gmra.mxu0 %v1547
        %v1568 = vpop.f32.mrf.mxu0
        %v1569 = vadd.f32 %v1518, %v1568
        %v1570 = vpop.f32.mrf.mxu0
        %1571 = vdwg.mxu0
        %1572 = vmatpush.bf16.msra.mxu0 0
        %1573 = vmatpush.bf16.msra.mxu0 0
        %1574 = vmatpush.bf16.msra.mxu0 0
        %1575 = vmatpush.bf16.msra.mxu0 0
        %1576 = vmatpush.bf16.msra.mxu0 0
        %1577 = vmatpush.bf16.msra.mxu0 0
        %1578 = vmatpush.bf16.msra.mxu0 %v1535
        %1579 = vmatpush.bf16.msra.mxu0 %v1533
        %1580 = vmatmul.bf16.gmra.mxu0 %v1541
        %v1581 = vpop.f32.mrf.mxu0
        %v1582 = vadd.f32 %v1519, %v1581
        %v1583 = vpop.f32.mrf.mxu0
        %v1584 = vadd.f32 %v1519, %v1583
        %1585 = vmatmul.bf16.gmra.mxu0 %v1544
        %v1586 = vpop.f32.mrf.mxu0
        %v1587 = vadd.f32 %v1519, %v1586
        %v1588 = vpop.f32.mrf.mxu0
        %v1589 = vadd.f32 %v1519, %v1588
        %1590 = vmatmul.bf16.gmra.mxu0 %v1547
        %v1591 = vpop.f32.mrf.mxu0
        %v1592 = vadd.f32 %v1519, %v1591
        %v1593 = vpop.f32.mrf.mxu0
        %1594 = vdwg.mxu0
        %v1595 = vpack.c.bf16 %v1561, %v1559
        %v1596 = vpack.c.bf16 %v1566, %v1564
        %v1597 = vpack.c.bf16 %v1569, %v1569
        %1601 = vrot.lane.b32.xlu0 %v1595, 64
        %v1602 = vpop.permute.xlu0 %1601
        %1603 = vrot.lane.b32.xlu0 %v1596, 64
        %v1604 = vpop.permute.xlu0 %1603
        %1605 = vrot.lane.b32.xlu0 %v1597, 64
        %v1606 = vpop.permute.xlu0 %1605
        %v1608 = vsel %vm468, %v1595, 0
        %v1611 = vsel %vm468, %v1596, 0
        %v1614 = vsel %vm468, %v1597, 0
        %v1617 = vsel %vm468, %v1602, 0
        %v1620 = vsel %vm468, %v1604, 0
        %v1623 = vsel %vm468, %v1606, 0
        %1625 = vmatpush.bf16.xpose.msra.mxu0 0
        %1626 = vmatpush.bf16.xpose.msra.mxu0 0
        %1627 = vmatpush.bf16.xpose.msra.mxu0 0
        %1628 = vmatpush.bf16.xpose.msra.mxu0 0
        %1629 = vmatpush.bf16.xpose.msra.mxu0 0
        %1630 = vmatpush.bf16.xpose.msra.mxu0 %v1623
        %1631 = vmatpush.bf16.xpose.msra.mxu0 %v1620
        %1632 = vmatpush.bf16.xpose.msra.mxu0 %v1617
        %1633 = vmatmul.bf16.gmra.mxu0 %v1608
        %v1634 = vpop.f32.mrf.mxu0
        %v1635 = vadd.f32 0.0, %v1634
        %v1636 = vpop.f32.mrf.mxu0
        %v1637 = vadd.f32 0.0, %v1636
        %1638 = vmatmul.bf16.gmra.mxu0 %v1611
        %v1639 = vpop.f32.mrf.mxu0
        %v1640 = vadd.f32 0.0, %v1639
        %v1641 = vpop.f32.mrf.mxu0
        %v1642 = vadd.f32 0.0, %v1641
        %1643 = vmatmul.bf16.gmra.mxu0 %v1614
        %v1644 = vpop.f32.mrf.mxu0
        %v1645 = vadd.f32 0.0, %v1644
        %v1646 = vpop.f32.mrf.mxu0
        %1647 = vdwg.mxu0
        %v1648 = vsel %vm700, %v1635, -inf
        %1649 = vmax.xlane.f32.xlu0 %v1648
        %v1650 = vpop.xlane.xlu0 %1649
        %v1651 = vsel %vm700, %v1637, -inf
        %1652 = vmax.xlane.f32.xlu0 %v1651
        %v1653 = vpop.xlane.xlu0 %1652
        %v1654 = vsel %vm700, %v1640, -inf
        %1655 = vmax.xlane.f32.xlu0 %v1654
        %v1656 = vpop.xlane.xlu0 %1655
        %v1657 = vsel %vm700, %v1642, -inf
        %1658 = vmax.xlane.f32.xlu0 %v1657
        %v1659 = vpop.xlane.xlu0 %1658
        %v1660 = vsel %vm713, %v1645, -inf
        %1661 = vmax.xlane.f32.xlu0 %v1660
        %v1662 = vpop.xlane.xlu0 %1661
        %v1663 = vsub.f32 %v1635, %v1650
        %v1664 = vsub.f32 %v1637, %v1653
        %v1665 = vsub.f32 %v1640, %v1656
        %v1666 = vsub.f32 %v1642, %v1659
        %v1667 = vsub.f32 %v1645, %v1662
        %v1668 = vmul.f32 %v1663, 1.442695
        %v1669 = vpow.pop %v1668
        %v1670 = vmul.f32 %v1664, 1.442695
        %v1671 = vpow.pop %v1670
        %v1672 = vmul.f32 %v1665, 1.442695
        %v1673 = vpow.pop %v1672
        %v1674 = vmul.f32 %v1666, 1.442695
        %v1675 = vpow.pop %v1674
        %v1676 = vmul.f32 %v1667, 1.442695
        %v1677 = vpow.pop %v1676
        %v1678 = vsel %vm700, %v1669, 0.0
        %1679 = vadd.xlane.f32.xlu0 %v1678
        %v1680 = vpop.xlane.xlu0 %1679
        %v1681 = vsel %vm700, %v1671, 0.0
        %1682 = vadd.xlane.f32.xlu0 %v1681
        %v1683 = vpop.xlane.xlu0 %1682
        %v1684 = vsel %vm700, %v1673, 0.0
        %1685 = vadd.xlane.f32.xlu0 %v1684
        %v1686 = vpop.xlane.xlu0 %1685
        %v1687 = vsel %vm700, %v1675, 0.0
        %1688 = vadd.xlane.f32.xlu0 %v1687
        %v1689 = vpop.xlane.xlu0 %1688
        %v1690 = vsel %vm713, %v1677, 0.0
        %1691 = vadd.xlane.f32.xlu0 %v1690
        %v1692 = vpop.xlane.xlu0 %1691
        %v1693 = vrcp.pop %v1680
        %v1694 = vrcp.pop %v1683
        %v1695 = vrcp.pop %v1686
        %v1696 = vrcp.pop %v1689
        %v1697 = vrcp.pop %v1692
        %v1698 = vmul.f32 %v1669, %v1693
        %v1699 = vmul.f32 %v1671, %v1694
        %v1700 = vmul.f32 %v1673, %v1695
        %v1701 = vmul.f32 %v1675, %v1696
        %v1702 = vmul.f32 %v1677, %v1697
        %v1703 = vpack.c.bf16 %v1699, %v1698
        %v1704 = vpack.c.bf16 %v1701, %v1700
        %v1705 = vpack.c.bf16 %v1702, %v1702
        %v1706 = vpack.c.bf16 %v1584, %v1582
        %v1707 = vpack.c.bf16 %v1589, %v1587
        %v1708 = vpack.c.bf16 %v1592, %v1592
        %v1709 = vmul.f32 %v1559, %v433
        %v1710 = vmul.f32 %v1561, %v434
        %v1711 = vmul.f32 %v1564, %v435
        %v1712 = vmul.f32 %v1566, %v436
        %v1713 = vmul.f32 %v1569, %v437
        %v1715 = vsel %vm700, %v1703, 0
        %v1718 = vsel %vm700, %v1704, 0
        %v1721 = vsel %vm700, %v1705, 0
        %v1724 = vand.u32 %v1708, %v784
        %1726 = vmatpush.bf16.msra.mxu0 0
        %1727 = vmatpush.bf16.msra.mxu0 0
        %1728 = vmatpush.bf16.msra.mxu0 0
        %1729 = vmatpush.bf16.msra.mxu0 0
        %1730 = vmatpush.bf16.msra.mxu0 0
        %1731 = vmatpush.bf16.msra.mxu0 %v1724
        %1732 = vmatpush.bf16.msra.mxu0 %v1707
        %1733 = vmatpush.bf16.msra.mxu0 %v1706
        %1734 = vmatmul.bf16.gmra.mxu0 %v1715
        %v1735 = vpop.f32.mrf.mxu0
        %v1736 = vadd.f32 %v1709, %v1735
        %v1737 = vpop.f32.mrf.mxu0
        %v1738 = vadd.f32 %v1710, %v1737
        %1739 = vmatmul.bf16.gmra.mxu0 %v1718
        %v1740 = vpop.f32.mrf.mxu0
        %v1741 = vadd.f32 %v1711, %v1740
        %v1742 = vpop.f32.mrf.mxu0
        %v1743 = vadd.f32 %v1712, %v1742
        %1744 = vmatmul.bf16.gmra.mxu0 %v1721
        %v1745 = vpop.f32.mrf.mxu0
        %v1746 = vadd.f32 %v1713, %v1745
        %v1747 = vpop.f32.mrf.mxu0
        %1748 = vdwg.mxu0
        %v1749 = vpack.c.bf16 %v1738, %v1736
        %v1750 = vpack.c.bf16 %v1743, %v1741
        %v1751 = vpack.c.bf16 %v1746, %v1746
        %1752 = vrot.lane.b32.xlu0 %v1595, 96
        %v1753 = vpop.permute.xlu0 %1752
        %1754 = vrot.lane.b32.xlu0 %v1596, 96
        %v1755 = vpop.permute.xlu0 %1754
        %1756 = vrot.lane.b32.xlu0 %v1597, 96
        %v1757 = vpop.permute.xlu0 %1756
        %1758 = vrot.lane.b32.xlu0 %v1595, 32
        %v1759 = vpop.permute.xlu0 %1758
        %1760 = vrot.lane.b32.xlu0 %v1596, 32
        %v1761 = vpop.permute.xlu0 %1760
        %1762 = vrot.lane.b32.xlu0 %v1597, 32
        %v1763 = vpop.permute.xlu0 %1762
        %v1765 = vsel %vm468, %v1753, 0
        %v1768 = vsel %vm468, %v1755, 0
        %v1771 = vsel %vm468, %v1757, 0
        %v1774 = vsel %vm468, %v1759, 0
        %v1777 = vsel %vm468, %v1761, 0
        %v1780 = vsel %vm468, %v1763, 0
        %1782 = vmatpush.bf16.xpose.msra.mxu0 0
        %1783 = vmatpush.bf16.xpose.msra.mxu0 0
        %1784 = vmatpush.bf16.xpose.msra.mxu0 0
        %1785 = vmatpush.bf16.xpose.msra.mxu0 0
        %1786 = vmatpush.bf16.xpose.msra.mxu0 0
        %1787 = vmatpush.bf16.xpose.msra.mxu0 %v1780
        %1788 = vmatpush.bf16.xpose.msra.mxu0 %v1777
        %1789 = vmatpush.bf16.xpose.msra.mxu0 %v1774
        %1790 = vmatmul.bf16.gmra.mxu0 %v1765
        %v1791 = vpop.f32.mrf.mxu0
        %v1792 = vadd.f32 0.0, %v1791
        %v1793 = vpop.f32.mrf.mxu0
        %v1794 = vadd.f32 0.0, %v1793
        %1795 = vmatmul.bf16.gmra.mxu0 %v1768
        %v1796 = vpop.f32.mrf.mxu0
        %v1797 = vadd.f32 0.0, %v1796
        %v1798 = vpop.f32.mrf.mxu0
        %v1799 = vadd.f32 0.0, %v1798
        %1800 = vmatmul.bf16.gmra.mxu0 %v1771
        %v1801 = vpop.f32.mrf.mxu0
        %v1802 = vadd.f32 0.0, %v1801
        %v1803 = vpop.f32.mrf.mxu0
        %1804 = vdwg.mxu0
        %v1805 = vsel %vm700, %v1792, -inf
        %1806 = vmax.xlane.f32.xlu0 %v1805
        %v1807 = vpop.xlane.xlu0 %1806
        %v1808 = vsel %vm700, %v1794, -inf
        %1809 = vmax.xlane.f32.xlu0 %v1808
        %v1810 = vpop.xlane.xlu0 %1809
        %v1811 = vsel %vm700, %v1797, -inf
        %1812 = vmax.xlane.f32.xlu0 %v1811
        %v1813 = vpop.xlane.xlu0 %1812
        %v1814 = vsel %vm700, %v1799, -inf
        %1815 = vmax.xlane.f32.xlu0 %v1814
        %v1816 = vpop.xlane.xlu0 %1815
        %v1817 = vsel %vm713, %v1802, -inf
        %1818 = vmax.xlane.f32.xlu0 %v1817
        %v1819 = vpop.xlane.xlu0 %1818
        %v1820 = vsub.f32 %v1792, %v1807
        %v1821 = vsub.f32 %v1794, %v1810
        %v1822 = vsub.f32 %v1797, %v1813
        %v1823 = vsub.f32 %v1799, %v1816
        %v1824 = vsub.f32 %v1802, %v1819
        %v1825 = vmul.f32 %v1820, 1.442695
        %v1826 = vpow.pop %v1825
        %v1827 = vmul.f32 %v1821, 1.442695
        %v1828 = vpow.pop %v1827
        %v1829 = vmul.f32 %v1822, 1.442695
        %v1830 = vpow.pop %v1829
        %v1831 = vmul.f32 %v1823, 1.442695
        %v1832 = vpow.pop %v1831
        %v1833 = vmul.f32 %v1824, 1.442695
        %v1834 = vpow.pop %v1833
        %v1835 = vsel %vm700, %v1826, 0.0
        %1836 = vadd.xlane.f32.xlu0 %v1835
        %v1837 = vpop.xlane.xlu0 %1836
        %v1838 = vsel %vm700, %v1828, 0.0
        %1839 = vadd.xlane.f32.xlu0 %v1838
        %v1840 = vpop.xlane.xlu0 %1839
        %v1841 = vsel %vm700, %v1830, 0.0
        %1842 = vadd.xlane.f32.xlu0 %v1841
        %v1843 = vpop.xlane.xlu0 %1842
        %v1844 = vsel %vm700, %v1832, 0.0
        %1845 = vadd.xlane.f32.xlu0 %v1844
        %v1846 = vpop.xlane.xlu0 %1845
        %v1847 = vsel %vm713, %v1834, 0.0
        %1848 = vadd.xlane.f32.xlu0 %v1847
        %v1849 = vpop.xlane.xlu0 %1848
        %v1850 = vrcp.pop %v1837
        %v1851 = vrcp.pop %v1840
        %v1852 = vrcp.pop %v1843
        %v1853 = vrcp.pop %v1846
        %v1854 = vrcp.pop %v1849
        %v1855 = vmul.f32 %v1826, %v1850
        %v1856 = vmul.f32 %v1828, %v1851
        %v1857 = vmul.f32 %v1830, %v1852
        %v1858 = vmul.f32 %v1832, %v1853
        %v1859 = vmul.f32 %v1834, %v1854
        %v1860 = vpack.c.bf16 %v1856, %v1855
        %v1861 = vpack.c.bf16 %v1858, %v1857
        %v1862 = vpack.c.bf16 %v1859, %v1859
        %1866 = vrot.lane.b32.xlu0 %v1706, 96
        %v1867 = vpop.permute.xlu0 %1866
        %1868 = vrot.lane.b32.xlu0 %v1707, 96
        %v1869 = vpop.permute.xlu0 %1868
        %1870 = vrot.lane.b32.xlu0 %v1708, 96
        %v1871 = vpop.permute.xlu0 %1870
        %1879 = vrot.lane.b32.xlu0 %v1709, 96
        %v1880 = vpop.permute.xlu0 %1879
        %1881 = vrot.lane.b32.xlu0 %v1710, 96
        %v1882 = vpop.permute.xlu0 %1881
        %1883 = vrot.lane.b32.xlu0 %v1711, 96
        %v1884 = vpop.permute.xlu0 %1883
        %1885 = vrot.lane.b32.xlu0 %v1712, 96
        %v1886 = vpop.permute.xlu0 %1885
        %1887 = vrot.lane.b32.xlu0 %v1713, 96
        %v1888 = vpop.permute.xlu0 %1887
        %v1895 = vsel %vm700, %v1860, 0
        %v1898 = vsel %vm700, %v1861, 0
        %v1901 = vsel %vm700, %v1862, 0
        %v1904 = vand.u32 %v1871, %v784
        %1906 = vmatpush.bf16.msra.mxu0 0
        %1907 = vmatpush.bf16.msra.mxu0 0
        %1908 = vmatpush.bf16.msra.mxu0 0
        %1909 = vmatpush.bf16.msra.mxu0 0
        %1910 = vmatpush.bf16.msra.mxu0 0
        %1911 = vmatpush.bf16.msra.mxu0 %v1904
        %1912 = vmatpush.bf16.msra.mxu0 %v1869
        %1913 = vmatpush.bf16.msra.mxu0 %v1867
        %1914 = vmatmul.bf16.gmra.mxu0 %v1895
        %v1915 = vpop.f32.mrf.mxu0
        %v1916 = vadd.f32 %v1880, %v1915
        %v1917 = vpop.f32.mrf.mxu0
        %v1918 = vadd.f32 %v1882, %v1917
        %1919 = vmatmul.bf16.gmra.mxu0 %v1898
        %v1920 = vpop.f32.mrf.mxu0
        %v1921 = vadd.f32 %v1884, %v1920
        %v1922 = vpop.f32.mrf.mxu0
        %v1923 = vadd.f32 %v1886, %v1922
        %1924 = vmatmul.bf16.gmra.mxu0 %v1901
        %v1925 = vpop.f32.mrf.mxu0
        %v1926 = vadd.f32 %v1888, %v1925
        %v1927 = vpop.f32.mrf.mxu0
        %1928 = vdwg.mxu0
        %v1929 = vpack.c.bf16 %v1918, %v1916
        %v1930 = vpack.c.bf16 %v1923, %v1921
        %v1931 = vpack.c.bf16 %v1926, %v1926
        %v1936 = vunpack.c.l.b16 %v1345
        %v1937 = vunpack.c.l.b16 %v1346
        %v1938 = vunpack.c.l.b16 %v1347
        %v1939 = vunpack.c.l.b16 %v1348
        %v1940 = vpack.c.b16 %v1937, %v1936
        %v1941 = vpack.c.b16 %v1939, %v1938
        %v1945 = vsel %vm468, %v1929, 0
        %v1948 = vsel %vm468, %v1930, 0
        %v1951 = vsel %vm468, %v1931, 0
        %1953 = vmatpush.bf16.msra.mxu0 0
        %1954 = vmatpush.bf16.msra.mxu0 0
        %1955 = vmatpush.bf16.msra.mxu0 0
        %1956 = vmatpush.bf16.msra.mxu0 0
        %1957 = vmatpush.bf16.msra.mxu0 0
        %1958 = vmatpush.bf16.msra.mxu0 0
        %1959 = vmatpush.bf16.msra.mxu0 %v1941
        %1960 = vmatpush.bf16.msra.mxu0 %v1940
        %1961 = vmatmul.bf16.gmra.mxu0 %v1945
        %v1962 = vpop.f32.mrf.mxu0
        %v1963 = vadd.f32 0.0, %v1962
        %v1964 = vpop.f32.mrf.mxu0
        %v1965 = vadd.f32 0.0, %v1964
        %1966 = vmatmul.bf16.gmra.mxu0 %v1948
        %v1967 = vpop.f32.mrf.mxu0
        %v1968 = vadd.f32 0.0, %v1967
        %v1969 = vpop.f32.mrf.mxu0
        %v1970 = vadd.f32 0.0, %v1969
        %1971 = vmatmul.bf16.gmra.mxu0 %v1951
        %v1972 = vpop.f32.mrf.mxu0
        %v1973 = vadd.f32 0.0, %v1972
        %v1974 = vpop.f32.mrf.mxu0
        %1975 = vdwg.mxu0
        %v1980 = vunpack.c.l.b16 %v1341
        %v1981 = vunpack.c.l.b16 %v1342
        %v1982 = vunpack.c.l.b16 %v1343
        %v1983 = vunpack.c.l.b16 %v1344
        %v1984 = vpack.c.b16 %v1981, %v1980
        %v1985 = vpack.c.b16 %v1983, %v1982
        %v1989 = vsel %vm468, %v1749, 0
        %v1992 = vsel %vm468, %v1750, 0
        %v1995 = vsel %vm468, %v1751, 0
        %1997 = vmatpush.bf16.msra.mxu0 0
        %1998 = vmatpush.bf16.msra.mxu0 0
        %1999 = vmatpush.bf16.msra.mxu0 0
        %2000 = vmatpush.bf16.msra.mxu0 0
        %2001 = vmatpush.bf16.msra.mxu0 0
        %2002 = vmatpush.bf16.msra.mxu0 0
        %2003 = vmatpush.bf16.msra.mxu0 %v1985
        %2004 = vmatpush.bf16.msra.mxu0 %v1984
        %2005 = vmatmul.bf16.gmra.mxu0 %v1989
        %v2006 = vpop.f32.mrf.mxu0
        %v2007 = vadd.f32 %v1963, %v2006
        %v2008 = vpop.f32.mrf.mxu0
        %v2009 = vadd.f32 %v1965, %v2008
        %2010 = vmatmul.bf16.gmra.mxu0 %v1992
        %v2011 = vpop.f32.mrf.mxu0
        %v2012 = vadd.f32 %v1968, %v2011
        %v2013 = vpop.f32.mrf.mxu0
        %v2014 = vadd.f32 %v1970, %v2013
        %2015 = vmatmul.bf16.gmra.mxu0 %v1995
        %v2016 = vpop.f32.mrf.mxu0
        %v2017 = vadd.f32 %v1973, %v2016
        %v2018 = vpop.f32.mrf.mxu0
        %2019 = vdwg.mxu0
        %v2020 = vperm.slane %v1334, 3
        %v2021 = vadd.f32 %v2007, %v2020
        %v2022 = vadd.f32 %v2009, %v2020
        %v2023 = vadd.f32 %v2012, %v2020
        %v2024 = vadd.f32 %v2014, %v2020
        %v2025 = vadd.f32 %v2017, %v2020
        %v2026 = vperm.slane %v1334, 4
        %v2031 = vunpack.c.l.b16 %v1349
        %v2032 = vunpack.c.l.b16 %v1350
        %v2033 = vunpack.c.l.b16 %v1351
        %v2034 = vunpack.c.l.b16 %v1352
        %v2035 = vpack.c.b16 %v2032, %v2031
        %v2036 = vpack.c.b16 %v2034, %v2033
        %2039 = vmatpush.bf16.msra.mxu0 0
        %2040 = vmatpush.bf16.msra.mxu0 0
        %2041 = vmatpush.bf16.msra.mxu0 0
        %2042 = vmatpush.bf16.msra.mxu0 0
        %2043 = vmatpush.bf16.msra.mxu0 0
        %2044 = vmatpush.bf16.msra.mxu0 0
        %2045 = vmatpush.bf16.msra.mxu0 %v2036
        %2046 = vmatpush.bf16.msra.mxu0 %v2035
        %2047 = vmatmul.bf16.gmra.mxu0 %v1541
        %v2048 = vpop.f32.mrf.mxu0
        %v2049 = vadd.f32 %v2026, %v2048
        %v2050 = vpop.f32.mrf.mxu0
        %v2051 = vadd.f32 %v2026, %v2050
        %2052 = vmatmul.bf16.gmra.mxu0 %v1544
        %v2053 = vpop.f32.mrf.mxu0
        %v2054 = vadd.f32 %v2026, %v2053
        %v2055 = vpop.f32.mrf.mxu0
        %v2056 = vadd.f32 %v2026, %v2055
        %2057 = vmatmul.bf16.gmra.mxu0 %v1547
        %v2058 = vpop.f32.mrf.mxu0
        %v2059 = vadd.f32 %v2026, %v2058
        %v2060 = vpop.f32.mrf.mxu0
        %2061 = vdwg.mxu0
        %v2062 = vadd.f32 %v2049, %v2021
        %v2063 = vadd.f32 %v2051, %v2022
        %v2064 = vadd.f32 %v2054, %v2023
        %v2065 = vadd.f32 %v2056, %v2024
        %v2066 = vadd.f32 %v2059, %v2025
        %vm2067 = vcmask 523264
        %v2068 = vsel %vm2067, %v2062, 0.0
        %2069 = vadd.xlane.f32.xlu0 %v2068
        %v2070 = vpop.xlane.xlu0 %2069
        %v2071 = vsel %vm2067, %v2063, 0.0
        %2072 = vadd.xlane.f32.xlu0 %v2071
        %v2073 = vpop.xlane.xlu0 %2072
        %v2074 = vsel %vm2067, %v2064, 0.0
        %2075 = vadd.xlane.f32.xlu0 %v2074
        %v2076 = vpop.xlane.xlu0 %2075
        %v2077 = vsel %vm2067, %v2065, 0.0
        %2078 = vadd.xlane.f32.xlu0 %v2077
        %v2079 = vpop.xlane.xlu0 %2078
        %vm2080 = vcmask 516096
        %v2081 = vsel %vm2080, %v2066, 0.0
        %2082 = vadd.xlane.f32.xlu0 %v2081
        %v2083 = vpop.xlane.xlu0 %2082
        %v2084 = vrcp.pop 64.0
        %v2085 = vmul.f32 64.0, %v2084
        %v2086 = vsub.f32 1.0, %v2085
        %v2087 = vmul.f32 %v2084, %v2086
        %v2088 = vadd.f32 %v2084, %v2087
        %vm2089 = vweird.f32 %v2084
        %v2090 = vsel %vm2089, %v2084, %v2088
        %v2091 = vmul.f32 %v2070, %v2090
        %v2092 = vmul.f32 %v2073, %v2090
        %v2093 = vmul.f32 %v2076, %v2090
        %v2094 = vmul.f32 %v2079, %v2090
        %v2095 = vmul.f32 %v2083, %v2090
        %v2096 = vsub.f32 %v2062, %v2091
        %v2097 = vsub.f32 %v2063, %v2092
        %v2098 = vsub.f32 %v2064, %v2093
        %v2099 = vsub.f32 %v2065, %v2094
        %v2100 = vsub.f32 %v2066, %v2095
        %v2101 = vmul.f32 %v2096, %v2096
        %v2102 = vmul.f32 %v2097, %v2097
        %v2103 = vmul.f32 %v2098, %v2098
        %v2104 = vmul.f32 %v2099, %v2099
        %v2105 = vmul.f32 %v2100, %v2100
        %v2106 = vsel %vm2067, %v2101, 0.0
        %2107 = vadd.xlane.f32.xlu0 %v2106
        %v2108 = vpop.xlane.xlu0 %2107
        %v2109 = vsel %vm2067, %v2102, 0.0
        %2110 = vadd.xlane.f32.xlu0 %v2109
        %v2111 = vpop.xlane.xlu0 %2110
        %v2112 = vsel %vm2067, %v2103, 0.0
        %2113 = vadd.xlane.f32.xlu0 %v2112
        %v2114 = vpop.xlane.xlu0 %2113
        %v2115 = vsel %vm2067, %v2104, 0.0
        %2116 = vadd.xlane.f32.xlu0 %v2115
        %v2117 = vpop.xlane.xlu0 %2116
        %v2118 = vsel %vm2080, %v2105, 0.0
        %2119 = vadd.xlane.f32.xlu0 %v2118
        %v2120 = vpop.xlane.xlu0 %2119
        %v2121 = vmul.f32 %v2108, %v2090
        %v2122 = vmul.f32 %v2111, %v2090
        %v2123 = vmul.f32 %v2114, %v2090
        %v2124 = vmul.f32 %v2117, %v2090
        %v2125 = vmul.f32 %v2120, %v2090
        %v2126 = vadd.f32 %v2121, 1e-06
        %v2127 = vadd.f32 %v2122, 1e-06
        %v2128 = vadd.f32 %v2123, 1e-06
        %v2129 = vadd.f32 %v2124, 1e-06
        %v2130 = vadd.f32 %v2125, 1e-06
        %v2131 = vrsqrt.pop %v2126
        %v2132 = vmul.f32 %v2131, %v2126
        %v2133 = vmul.f32 %v2132, %v2131
        %v2134 = vmul.f32 0.5, %v2133
        %v2135 = vsub.f32 1.5, %v2134
        %v2136 = vmul.f32 %v2131, %v2135
        %vm2137 = vweird.f32 %v2126
        %vm2138 = vweird.f32 %v2131
        %vm2139 = vmor %vm2137, %vm2138
        %v2140 = vsel %vm2139, %v2131, %v2136
        %v2141 = vrsqrt.pop %v2127
        %v2142 = vmul.f32 %v2141, %v2127
        %v2143 = vmul.f32 %v2142, %v2141
        %v2144 = vmul.f32 0.5, %v2143
        %v2145 = vsub.f32 1.5, %v2144
        %v2146 = vmul.f32 %v2141, %v2145
        %vm2147 = vweird.f32 %v2127
        %vm2148 = vweird.f32 %v2141
        %vm2149 = vmor %vm2147, %vm2148
        %v2150 = vsel %vm2149, %v2141, %v2146
        %v2151 = vrsqrt.pop %v2128
        %v2152 = vmul.f32 %v2151, %v2128
        %v2153 = vmul.f32 %v2152, %v2151
        %v2154 = vmul.f32 0.5, %v2153
        %v2155 = vsub.f32 1.5, %v2154
        %v2156 = vmul.f32 %v2151, %v2155
        %vm2157 = vweird.f32 %v2128
        %vm2158 = vweird.f32 %v2151
        %vm2159 = vmor %vm2157, %vm2158
        %v2160 = vsel %vm2159, %v2151, %v2156
        %v2161 = vrsqrt.pop %v2129
        %v2162 = vmul.f32 %v2161, %v2129
        %v2163 = vmul.f32 %v2162, %v2161
        %v2164 = vmul.f32 0.5, %v2163
        %v2165 = vsub.f32 1.5, %v2164
        %v2166 = vmul.f32 %v2161, %v2165
        %vm2167 = vweird.f32 %v2129
        %vm2168 = vweird.f32 %v2161
        %vm2169 = vmor %vm2167, %vm2168
        %v2170 = vsel %vm2169, %v2161, %v2166
        %v2171 = vrsqrt.pop %v2130
        %v2172 = vmul.f32 %v2171, %v2130
        %v2173 = vmul.f32 %v2172, %v2171
        %v2174 = vmul.f32 0.5, %v2173
        %v2175 = vsub.f32 1.5, %v2174
        %v2176 = vmul.f32 %v2171, %v2175
        %vm2177 = vweird.f32 %v2130
        %vm2178 = vweird.f32 %v2171
        %vm2179 = vmor %vm2177, %vm2178
        %v2180 = vsel %vm2179, %v2171, %v2176
        %v2181 = vmul.f32 %v2096, %v2140
        %v2182 = vmul.f32 %v2097, %v2150
        %v2183 = vmul.f32 %v2098, %v2160
        %v2184 = vmul.f32 %v2099, %v2170
        %v2185 = vmul.f32 %v2100, %v2180
        %v2186 = vperm.slane %v1334, 5
        %v2187 = vmul.f32 %v2181, %v2186
        %v2188 = vmul.f32 %v2182, %v2186
        %v2189 = vmul.f32 %v2183, %v2186
        %v2190 = vmul.f32 %v2184, %v2186
        %v2191 = vmul.f32 %v2185, %v2186
        %v2192 = vperm.slane %v1334, 6
        %v2193 = vadd.f32 %v2187, %v2192
        %v2194 = vadd.f32 %v2188, %v2192
        %v2195 = vadd.f32 %v2189, %v2192
        %v2196 = vadd.f32 %v2190, %v2192
        %v2197 = vadd.f32 %v2191, %v2192
        %v2198 = vpack.c.bf16 %v2194, %v2193
        %v2199 = vpack.c.bf16 %v2196, %v2195
        %v2200 = vpack.c.bf16 %v2197, %v2197
        %v2201 = vperm.slane %v1334, 7
        %v2202 = vperm.slane %v1335, 7
        %v2211 = vunpack.c.l.b16 %v1353
        %v2212 = vunpack.c.h.b16 %v1353
        %v2213 = vunpack.c.l.b16 %v1354
        %v2214 = vunpack.c.h.b16 %v1354
        %v2215 = vunpack.c.l.b16 %v1355
        %v2216 = vunpack.c.h.b16 %v1355
        %v2217 = vunpack.c.l.b16 %v1356
        %v2218 = vunpack.c.h.b16 %v1356
        %v2219 = vunpack.c.l.b16 %v1357
        %v2220 = vunpack.c.h.b16 %v1357
        %v2221 = vunpack.c.l.b16 %v1358
        %v2222 = vunpack.c.h.b16 %v1358
        %v2223 = vunpack.c.l.b16 %v1359
        %v2224 = vunpack.c.h.b16 %v1359
        %v2225 = vunpack.c.l.b16 %v1360
        %v2226 = vunpack.c.h.b16 %v1360
        %v2227 = vpack.c.b16 %v2213, %v2211
        %v2228 = vpack.c.b16 %v2214, %v2212
        %v2229 = vpack.c.b16 %v2217, %v2215
        %v2230 = vpack.c.b16 %v2218, %v2216
        %v2231 = vpack.c.b16 %v2221, %v2219
        %v2232 = vpack.c.b16 %v2222, %v2220
        %v2233 = vpack.c.b16 %v2225, %v2223
        %v2234 = vpack.c.b16 %v2226, %v2224
        %v2244 = vsel %vm2067, %v2198, 0
        %v2247 = vsel %vm2067, %v2199, 0
        %v2250 = vsel %vm2067, %v2200, 0
        %2252 = vmatpush.bf16.msra.mxu0 0
        %2253 = vmatpush.bf16.msra.mxu0 0
        %2254 = vmatpush.bf16.msra.mxu0 0
        %2255 = vmatpush.bf16.msra.mxu0 0
        %2256 = vmatpush.bf16.msra.mxu0 %v2233
        %2257 = vmatpush.bf16.msra.mxu0 %v2231
        %2258 = vmatpush.bf16.msra.mxu0 %v2229
        %2259 = vmatpush.bf16.msra.mxu0 %v2227
        %2260 = vmatmul.bf16.gmra.mxu0 %v2244
        %v2261 = vpop.f32.mrf.mxu0
        %v2262 = vadd.f32 %v2201, %v2261
        %v2263 = vpop.f32.mrf.mxu0
        %v2264 = vadd.f32 %v2201, %v2263
        %2265 = vmatmul.bf16.gmra.mxu0 %v2247
        %v2266 = vpop.f32.mrf.mxu0
        %v2267 = vadd.f32 %v2201, %v2266
        %v2268 = vpop.f32.mrf.mxu0
        %v2269 = vadd.f32 %v2201, %v2268
        %2270 = vmatmul.bf16.gmra.mxu0 %v2250
        %v2271 = vpop.f32.mrf.mxu0
        %v2272 = vadd.f32 %v2201, %v2271
        %v2273 = vpop.f32.mrf.mxu0
        %2274 = vdwg.mxu0
        %2275 = vmatpush.bf16.msra.mxu0 0
        %2276 = vmatpush.bf16.msra.mxu0 0
        %2277 = vmatpush.bf16.msra.mxu0 0
        %2278 = vmatpush.bf16.msra.mxu0 0
        %2279 = vmatpush.bf16.msra.mxu0 %v2234
        %2280 = vmatpush.bf16.msra.mxu0 %v2232
        %2281 = vmatpush.bf16.msra.mxu0 %v2230
        %2282 = vmatpush.bf16.msra.mxu0 %v2228
        %2283 = vmatmul.bf16.gmra.mxu0 %v2244
        %v2284 = vpop.f32.mrf.mxu0
        %v2285 = vadd.f32 %v2202, %v2284
        %v2286 = vpop.f32.mrf.mxu0
        %v2287 = vadd.f32 %v2202, %v2286
        %2288 = vmatmul.bf16.gmra.mxu0 %v2247
        %v2289 = vpop.f32.mrf.mxu0
        %v2290 = vadd.f32 %v2202, %v2289
        %v2291 = vpop.f32.mrf.mxu0
        %v2292 = vadd.f32 %v2202, %v2291
        %2293 = vmatmul.bf16.gmra.mxu0 %v2250
        %v2294 = vpop.f32.mrf.mxu0
        %v2295 = vadd.f32 %v2202, %v2294
        %v2296 = vpop.f32.mrf.mxu0
        %2297 = vdwg.mxu0
        %v2298 = vmul.f32 %v2262, 0.5
        %v2299 = vmul.f32 %v2285, 0.5
        %v2300 = vmul.f32 %v2264, 0.5
        %v2301 = vmul.f32 %v2287, 0.5
        %v2302 = vmul.f32 %v2267, 0.5
        %v2303 = vmul.f32 %v2290, 0.5
        %v2304 = vmul.f32 %v2269, 0.5
        %v2305 = vmul.f32 %v2292, 0.5
        %v2306 = vmul.f32 %v2272, 0.5
        %v2307 = vmul.f32 %v2295, 0.5
        %v2308 = vmul.f32 %v2262, 0.70710677
        %v2309 = vmul.f32 %v2285, 0.70710677
        %v2310 = vmul.f32 %v2264, 0.70710677
        %v2311 = vmul.f32 %v2287, 0.70710677
        %v2312 = vmul.f32 %v2267, 0.70710677
        %v2313 = vmul.f32 %v2290, 0.70710677
        %v2314 = vmul.f32 %v2269, 0.70710677
        %v2315 = vmul.f32 %v2292, 0.70710677
        %v2316 = vmul.f32 %v2272, 0.70710677
        %v2317 = vmul.f32 %v2295, 0.70710677
        %v2318 = vmul.f32 %v2308, %v2308
        %v2319 = vmin.f32 16.0, %v2318
        %v2320 = vmul.f32 %v2319, 2.1237322e-06
        %v2321 = vadd.f32 %v2320, 0.00028619796
        %v2322 = vmul.f32 %v2319, %v2321
        %v2323 = vadd.f32 %v2322, 0.0036580483
        %v2324 = vmul.f32 %v2319, %v2323
        %v2325 = vadd.f32 %v2324, 0.05243302
        %v2326 = vmul.f32 %v2319, %v2325
        %v2327 = vadd.f32 %v2326, 0.18741608
        %v2328 = vmul.f32 %v2319, %v2327
        %v2329 = vadd.f32 %v2328, 1.1283791
        %v2330 = vmul.f32 %v2308, %v2329
        %v2331 = vmul.f32 %v2319, 3.8918573e-05
        %v2332 = vadd.f32 %v2331, 0.001143296
        %v2333 = vmul.f32 %v2319, %v2332
        %v2334 = vadd.f32 %v2333, 0.014752088
        %v2335 = vmul.f32 %v2319, %v2334
        %v2336 = vadd.f32 %v2335, 0.112945676
        %v2337 = vmul.f32 %v2319, %v2336
        %v2338 = vadd.f32 %v2337, 0.4994258
        %v2339 = vmul.f32 %v2319, %v2338
        %v2340 = vadd.f32 %v2339, 1.0
        %v2341 = vrcp.pop %v2340
        %v2342 = vmul.f32 %v2340, %v2341
        %v2343 = vsub.f32 1.0, %v2342
        %v2344 = vmul.f32 %v2341, %v2343
        %v2345 = vadd.f32 %v2341, %v2344
        %vm2346 = vweird.f32 %v2340
        %vm2347 = vweird.f32 %v2341
        %vm2348 = vmor %vm2346, %vm2347
        %v2349 = vsel %vm2348, %v2341, %v2345
        %v2350 = vand.u32 2147483647, %v2340
        %vm2351 = vcmp.eq.f32.partialorder %v2350, 8.507059e+37
        %v2352 = vand.u32 %v2340, 2147483648
        %v2353 = vor.u32 1.1754944e-38, %v2352
        %v2354 = vsel %vm2351, %v2353, %v2349
        %v2355 = vmul.f32 %v2330, %v2354
        %v2356 = vmin.f32 %v2355, 1.0
        %v2357 = vmax.f32 %v2356, -1.0
        %v2358 = vmul.f32 %v2309, %v2309
        %v2359 = vmin.f32 16.0, %v2358
        %v2360 = vmul.f32 %v2359, 2.1237322e-06
        %v2361 = vadd.f32 %v2360, 0.00028619796
        %v2362 = vmul.f32 %v2359, %v2361
        %v2363 = vadd.f32 %v2362, 0.0036580483
        %v2364 = vmul.f32 %v2359, %v2363
        %v2365 = vadd.f32 %v2364, 0.05243302
        %v2366 = vmul.f32 %v2359, %v2365
        %v2367 = vadd.f32 %v2366, 0.18741608
        %v2368 = vmul.f32 %v2359, %v2367
        %v2369 = vadd.f32 %v2368, 1.1283791
        %v2370 = vmul.f32 %v2309, %v2369
        %v2371 = vmul.f32 %v2359, 3.8918573e-05
        %v2372 = vadd.f32 %v2371, 0.001143296
        %v2373 = vmul.f32 %v2359, %v2372
        %v2374 = vadd.f32 %v2373, 0.014752088
        %v2375 = vmul.f32 %v2359, %v2374
        %v2376 = vadd.f32 %v2375, 0.112945676
        %v2377 = vmul.f32 %v2359, %v2376
        %v2378 = vadd.f32 %v2377, 0.4994258
        %v2379 = vmul.f32 %v2359, %v2378
        %v2380 = vadd.f32 %v2379, 1.0
        %v2381 = vrcp.pop %v2380
        %v2382 = vmul.f32 %v2380, %v2381
        %v2383 = vsub.f32 1.0, %v2382
        %v2384 = vmul.f32 %v2381, %v2383
        %v2385 = vadd.f32 %v2381, %v2384
        %vm2386 = vweird.f32 %v2380
        %vm2387 = vweird.f32 %v2381
        %vm2388 = vmor %vm2386, %vm2387
        %v2389 = vsel %vm2388, %v2381, %v2385
        %v2390 = vand.u32 2147483647, %v2380
        %vm2391 = vcmp.eq.f32.partialorder %v2390, 8.507059e+37
        %v2392 = vand.u32 %v2380, 2147483648
        %v2393 = vor.u32 1.1754944e-38, %v2392
        %v2394 = vsel %vm2391, %v2393, %v2389
        %v2395 = vmul.f32 %v2370, %v2394
        %v2396 = vmin.f32 %v2395, 1.0
        %v2397 = vmax.f32 %v2396, -1.0
        %v2398 = vmul.f32 %v2310, %v2310
        %v2399 = vmin.f32 16.0, %v2398
        %v2400 = vmul.f32 %v2399, 2.1237322e-06
        %v2401 = vadd.f32 %v2400, 0.00028619796
        %v2402 = vmul.f32 %v2399, %v2401
        %v2403 = vadd.f32 %v2402, 0.0036580483
        %v2404 = vmul.f32 %v2399, %v2403
        %v2405 = vadd.f32 %v2404, 0.05243302
        %v2406 = vmul.f32 %v2399, %v2405
        %v2407 = vadd.f32 %v2406, 0.18741608
        %v2408 = vmul.f32 %v2399, %v2407
        %v2409 = vadd.f32 %v2408, 1.1283791
        %v2410 = vmul.f32 %v2310, %v2409
        %v2411 = vmul.f32 %v2399, 3.8918573e-05
        %v2412 = vadd.f32 %v2411, 0.001143296
        %v2413 = vmul.f32 %v2399, %v2412
        %v2414 = vadd.f32 %v2413, 0.014752088
        %v2415 = vmul.f32 %v2399, %v2414
        %v2416 = vadd.f32 %v2415, 0.112945676
        %v2417 = vmul.f32 %v2399, %v2416
        %v2418 = vadd.f32 %v2417, 0.4994258
        %v2419 = vmul.f32 %v2399, %v2418
        %v2420 = vadd.f32 %v2419, 1.0
        %v2421 = vrcp.pop %v2420
        %v2422 = vmul.f32 %v2420, %v2421
        %v2423 = vsub.f32 1.0, %v2422
        %v2424 = vmul.f32 %v2421, %v2423
        %v2425 = vadd.f32 %v2421, %v2424
        %vm2426 = vweird.f32 %v2420
        %vm2427 = vweird.f32 %v2421
        %vm2428 = vmor %vm2426, %vm2427
        %v2429 = vsel %vm2428, %v2421, %v2425
        %v2430 = vand.u32 2147483647, %v2420
        %vm2431 = vcmp.eq.f32.partialorder %v2430, 8.507059e+37
        %v2432 = vand.u32 %v2420, 2147483648
        %v2433 = vor.u32 1.1754944e-38, %v2432
        %v2434 = vsel %vm2431, %v2433, %v2429
        %v2435 = vmul.f32 %v2410, %v2434
        %v2436 = vmin.f32 %v2435, 1.0
        %v2437 = vmax.f32 %v2436, -1.0
        %v2438 = vmul.f32 %v2311, %v2311
        %v2439 = vmin.f32 16.0, %v2438
        %v2440 = vmul.f32 %v2439, 2.1237322e-06
        %v2441 = vadd.f32 %v2440, 0.00028619796
        %v2442 = vmul.f32 %v2439, %v2441
        %v2443 = vadd.f32 %v2442, 0.0036580483
        %v2444 = vmul.f32 %v2439, %v2443
        %v2445 = vadd.f32 %v2444, 0.05243302
        %v2446 = vmul.f32 %v2439, %v2445
        %v2447 = vadd.f32 %v2446, 0.18741608
        %v2448 = vmul.f32 %v2439, %v2447
        %v2449 = vadd.f32 %v2448, 1.1283791
        %v2450 = vmul.f32 %v2311, %v2449
        %v2451 = vmul.f32 %v2439, 3.8918573e-05
        %v2452 = vadd.f32 %v2451, 0.001143296
        %v2453 = vmul.f32 %v2439, %v2452
        %v2454 = vadd.f32 %v2453, 0.014752088
        %v2455 = vmul.f32 %v2439, %v2454
        %v2456 = vadd.f32 %v2455, 0.112945676
        %v2457 = vmul.f32 %v2439, %v2456
        %v2458 = vadd.f32 %v2457, 0.4994258
        %v2459 = vmul.f32 %v2439, %v2458
        %v2460 = vadd.f32 %v2459, 1.0
        %v2461 = vrcp.pop %v2460
        %v2462 = vmul.f32 %v2460, %v2461
        %v2463 = vsub.f32 1.0, %v2462
        %v2464 = vmul.f32 %v2461, %v2463
        %v2465 = vadd.f32 %v2461, %v2464
        %vm2466 = vweird.f32 %v2460
        %vm2467 = vweird.f32 %v2461
        %vm2468 = vmor %vm2466, %vm2467
        %v2469 = vsel %vm2468, %v2461, %v2465
        %v2470 = vand.u32 2147483647, %v2460
        %vm2471 = vcmp.eq.f32.partialorder %v2470, 8.507059e+37
        %v2472 = vand.u32 %v2460, 2147483648
        %v2473 = vor.u32 1.1754944e-38, %v2472
        %v2474 = vsel %vm2471, %v2473, %v2469
        %v2475 = vmul.f32 %v2450, %v2474
        %v2476 = vmin.f32 %v2475, 1.0
        %v2477 = vmax.f32 %v2476, -1.0
        %v2478 = vmul.f32 %v2312, %v2312
        %v2479 = vmin.f32 16.0, %v2478
        %v2480 = vmul.f32 %v2479, 2.1237322e-06
        %v2481 = vadd.f32 %v2480, 0.00028619796
        %v2482 = vmul.f32 %v2479, %v2481
        %v2483 = vadd.f32 %v2482, 0.0036580483
        %v2484 = vmul.f32 %v2479, %v2483
        %v2485 = vadd.f32 %v2484, 0.05243302
        %v2486 = vmul.f32 %v2479, %v2485
        %v2487 = vadd.f32 %v2486, 0.18741608
        %v2488 = vmul.f32 %v2479, %v2487
        %v2489 = vadd.f32 %v2488, 1.1283791
        %v2490 = vmul.f32 %v2312, %v2489
        %v2491 = vmul.f32 %v2479, 3.8918573e-05
        %v2492 = vadd.f32 %v2491, 0.001143296
        %v2493 = vmul.f32 %v2479, %v2492
        %v2494 = vadd.f32 %v2493, 0.014752088
        %v2495 = vmul.f32 %v2479, %v2494
        %v2496 = vadd.f32 %v2495, 0.112945676
        %v2497 = vmul.f32 %v2479, %v2496
        %v2498 = vadd.f32 %v2497, 0.4994258
        %v2499 = vmul.f32 %v2479, %v2498
        %v2500 = vadd.f32 %v2499, 1.0
        %v2501 = vrcp.pop %v2500
        %v2502 = vmul.f32 %v2500, %v2501
        %v2503 = vsub.f32 1.0, %v2502
        %v2504 = vmul.f32 %v2501, %v2503
        %v2505 = vadd.f32 %v2501, %v2504
        %vm2506 = vweird.f32 %v2500
        %vm2507 = vweird.f32 %v2501
        %vm2508 = vmor %vm2506, %vm2507
        %v2509 = vsel %vm2508, %v2501, %v2505
        %v2510 = vand.u32 2147483647, %v2500
        %vm2511 = vcmp.eq.f32.partialorder %v2510, 8.507059e+37
        %v2512 = vand.u32 %v2500, 2147483648
        %v2513 = vor.u32 1.1754944e-38, %v2512
        %v2514 = vsel %vm2511, %v2513, %v2509
        %v2515 = vmul.f32 %v2490, %v2514
        %v2516 = vmin.f32 %v2515, 1.0
        %v2517 = vmax.f32 %v2516, -1.0
        %v2518 = vmul.f32 %v2313, %v2313
        %v2519 = vmin.f32 16.0, %v2518
        %v2520 = vmul.f32 %v2519, 2.1237322e-06
        %v2521 = vadd.f32 %v2520, 0.00028619796
        %v2522 = vmul.f32 %v2519, %v2521
        %v2523 = vadd.f32 %v2522, 0.0036580483
        %v2524 = vmul.f32 %v2519, %v2523
        %v2525 = vadd.f32 %v2524, 0.05243302
        %v2526 = vmul.f32 %v2519, %v2525
        %v2527 = vadd.f32 %v2526, 0.18741608
        %v2528 = vmul.f32 %v2519, %v2527
        %v2529 = vadd.f32 %v2528, 1.1283791
        %v2530 = vmul.f32 %v2313, %v2529
        %v2531 = vmul.f32 %v2519, 3.8918573e-05
        %v2532 = vadd.f32 %v2531, 0.001143296
        %v2533 = vmul.f32 %v2519, %v2532
        %v2534 = vadd.f32 %v2533, 0.014752088
        %v2535 = vmul.f32 %v2519, %v2534
        %v2536 = vadd.f32 %v2535, 0.112945676
        %v2537 = vmul.f32 %v2519, %v2536
        %v2538 = vadd.f32 %v2537, 0.4994258
        %v2539 = vmul.f32 %v2519, %v2538
        %v2540 = vadd.f32 %v2539, 1.0
        %v2541 = vrcp.pop %v2540
        %v2542 = vmul.f32 %v2540, %v2541
        %v2543 = vsub.f32 1.0, %v2542
        %v2544 = vmul.f32 %v2541, %v2543
        %v2545 = vadd.f32 %v2541, %v2544
        %vm2546 = vweird.f32 %v2540
        %vm2547 = vweird.f32 %v2541
        %vm2548 = vmor %vm2546, %vm2547
        %v2549 = vsel %vm2548, %v2541, %v2545
        %v2550 = vand.u32 2147483647, %v2540
        %vm2551 = vcmp.eq.f32.partialorder %v2550, 8.507059e+37
        %v2552 = vand.u32 %v2540, 2147483648
        %v2553 = vor.u32 1.1754944e-38, %v2552
        %v2554 = vsel %vm2551, %v2553, %v2549
        %v2555 = vmul.f32 %v2530, %v2554
        %v2556 = vmin.f32 %v2555, 1.0
        %v2557 = vmax.f32 %v2556, -1.0
        %v2558 = vmul.f32 %v2314, %v2314
        %v2559 = vmin.f32 16.0, %v2558
        %v2560 = vmul.f32 %v2559, 2.1237322e-06
        %v2561 = vadd.f32 %v2560, 0.00028619796
        %v2562 = vmul.f32 %v2559, %v2561
        %v2563 = vadd.f32 %v2562, 0.0036580483
        %v2564 = vmul.f32 %v2559, %v2563
        %v2565 = vadd.f32 %v2564, 0.05243302
        %v2566 = vmul.f32 %v2559, %v2565
        %v2567 = vadd.f32 %v2566, 0.18741608
        %v2568 = vmul.f32 %v2559, %v2567
        %v2569 = vadd.f32 %v2568, 1.1283791
        %v2570 = vmul.f32 %v2314, %v2569
        %v2571 = vmul.f32 %v2559, 3.8918573e-05
        %v2572 = vadd.f32 %v2571, 0.001143296
        %v2573 = vmul.f32 %v2559, %v2572
        %v2574 = vadd.f32 %v2573, 0.014752088
        %v2575 = vmul.f32 %v2559, %v2574
        %v2576 = vadd.f32 %v2575, 0.112945676
        %v2577 = vmul.f32 %v2559, %v2576
        %v2578 = vadd.f32 %v2577, 0.4994258
        %v2579 = vmul.f32 %v2559, %v2578
        %v2580 = vadd.f32 %v2579, 1.0
        %v2581 = vrcp.pop %v2580
        %v2582 = vmul.f32 %v2580, %v2581
        %v2583 = vsub.f32 1.0, %v2582
        %v2584 = vmul.f32 %v2581, %v2583
        %v2585 = vadd.f32 %v2581, %v2584
        %vm2586 = vweird.f32 %v2580
        %vm2587 = vweird.f32 %v2581
        %vm2588 = vmor %vm2586, %vm2587
        %v2589 = vsel %vm2588, %v2581, %v2585
        %v2590 = vand.u32 2147483647, %v2580
        %vm2591 = vcmp.eq.f32.partialorder %v2590, 8.507059e+37
        %v2592 = vand.u32 %v2580, 2147483648
        %v2593 = vor.u32 1.1754944e-38, %v2592
        %v2594 = vsel %vm2591, %v2593, %v2589
        %v2595 = vmul.f32 %v2570, %v2594
        %v2596 = vmin.f32 %v2595, 1.0
        %v2597 = vmax.f32 %v2596, -1.0
        %v2598 = vmul.f32 %v2315, %v2315
        %v2599 = vmin.f32 16.0, %v2598
        %v2600 = vmul.f32 %v2599, 2.1237322e-06
        %v2601 = vadd.f32 %v2600, 0.00028619796
        %v2602 = vmul.f32 %v2599, %v2601
        %v2603 = vadd.f32 %v2602, 0.0036580483
        %v2604 = vmul.f32 %v2599, %v2603
        %v2605 = vadd.f32 %v2604, 0.05243302
        %v2606 = vmul.f32 %v2599, %v2605
        %v2607 = vadd.f32 %v2606, 0.18741608
        %v2608 = vmul.f32 %v2599, %v2607
        %v2609 = vadd.f32 %v2608, 1.1283791
        %v2610 = vmul.f32 %v2315, %v2609
        %v2611 = vmul.f32 %v2599, 3.8918573e-05
        %v2612 = vadd.f32 %v2611, 0.001143296
        %v2613 = vmul.f32 %v2599, %v2612
        %v2614 = vadd.f32 %v2613, 0.014752088
        %v2615 = vmul.f32 %v2599, %v2614
        %v2616 = vadd.f32 %v2615, 0.112945676
        %v2617 = vmul.f32 %v2599, %v2616
        %v2618 = vadd.f32 %v2617, 0.4994258
        %v2619 = vmul.f32 %v2599, %v2618
        %v2620 = vadd.f32 %v2619, 1.0
        %v2621 = vrcp.pop %v2620
        %v2622 = vmul.f32 %v2620, %v2621
        %v2623 = vsub.f32 1.0, %v2622
        %v2624 = vmul.f32 %v2621, %v2623
        %v2625 = vadd.f32 %v2621, %v2624
        %vm2626 = vweird.f32 %v2620
        %vm2627 = vweird.f32 %v2621
        %vm2628 = vmor %vm2626, %vm2627
        %v2629 = vsel %vm2628, %v2621, %v2625
        %v2630 = vand.u32 2147483647, %v2620
        %vm2631 = vcmp.eq.f32.partialorder %v2630, 8.507059e+37
        %v2632 = vand.u32 %v2620, 2147483648
        %v2633 = vor.u32 1.1754944e-38, %v2632
        %v2634 = vsel %vm2631, %v2633, %v2629
        %v2635 = vmul.f32 %v2610, %v2634
        %v2636 = vmin.f32 %v2635, 1.0
        %v2637 = vmax.f32 %v2636, -1.0
        %v2638 = vmul.f32 %v2316, %v2316
        %v2639 = vmin.f32 16.0, %v2638
        %v2640 = vmul.f32 %v2639, 2.1237322e-06
        %v2641 = vadd.f32 %v2640, 0.00028619796
        %v2642 = vmul.f32 %v2639, %v2641
        %v2643 = vadd.f32 %v2642, 0.0036580483
        %v2644 = vmul.f32 %v2639, %v2643
        %v2645 = vadd.f32 %v2644, 0.05243302
        %v2646 = vmul.f32 %v2639, %v2645
        %v2647 = vadd.f32 %v2646, 0.18741608
        %v2648 = vmul.f32 %v2639, %v2647
        %v2649 = vadd.f32 %v2648, 1.1283791
        %v2650 = vmul.f32 %v2316, %v2649
        %v2651 = vmul.f32 %v2639, 3.8918573e-05
        %v2652 = vadd.f32 %v2651, 0.001143296
        %v2653 = vmul.f32 %v2639, %v2652
        %v2654 = vadd.f32 %v2653, 0.014752088
        %v2655 = vmul.f32 %v2639, %v2654
        %v2656 = vadd.f32 %v2655, 0.112945676
        %v2657 = vmul.f32 %v2639, %v2656
        %v2658 = vadd.f32 %v2657, 0.4994258
        %v2659 = vmul.f32 %v2639, %v2658
        %v2660 = vadd.f32 %v2659, 1.0
        %v2661 = vrcp.pop %v2660
        %v2662 = vmul.f32 %v2660, %v2661
        %v2663 = vsub.f32 1.0, %v2662
        %v2664 = vmul.f32 %v2661, %v2663
        %v2665 = vadd.f32 %v2661, %v2664
        %vm2666 = vweird.f32 %v2660
        %vm2667 = vweird.f32 %v2661
        %vm2668 = vmor %vm2666, %vm2667
        %v2669 = vsel %vm2668, %v2661, %v2665
        %v2670 = vand.u32 2147483647, %v2660
        %vm2671 = vcmp.eq.f32.partialorder %v2670, 8.507059e+37
        %v2672 = vand.u32 %v2660, 2147483648
        %v2673 = vor.u32 1.1754944e-38, %v2672
        %v2674 = vsel %vm2671, %v2673, %v2669
        %v2675 = vmul.f32 %v2650, %v2674
        %v2676 = vmin.f32 %v2675, 1.0
        %v2677 = vmax.f32 %v2676, -1.0
        %v2678 = vmul.f32 %v2317, %v2317
        %v2679 = vmin.f32 16.0, %v2678
        %v2680 = vmul.f32 %v2679, 2.1237322e-06
        %v2681 = vadd.f32 %v2680, 0.00028619796
        %v2682 = vmul.f32 %v2679, %v2681
        %v2683 = vadd.f32 %v2682, 0.0036580483
        %v2684 = vmul.f32 %v2679, %v2683
        %v2685 = vadd.f32 %v2684, 0.05243302
        %v2686 = vmul.f32 %v2679, %v2685
        %v2687 = vadd.f32 %v2686, 0.18741608
        %v2688 = vmul.f32 %v2679, %v2687
        %v2689 = vadd.f32 %v2688, 1.1283791
        %v2690 = vmul.f32 %v2317, %v2689
        %v2691 = vmul.f32 %v2679, 3.8918573e-05
        %v2692 = vadd.f32 %v2691, 0.001143296
        %v2693 = vmul.f32 %v2679, %v2692
        %v2694 = vadd.f32 %v2693, 0.014752088
        %v2695 = vmul.f32 %v2679, %v2694
        %v2696 = vadd.f32 %v2695, 0.112945676
        %v2697 = vmul.f32 %v2679, %v2696
        %v2698 = vadd.f32 %v2697, 0.4994258
        %v2699 = vmul.f32 %v2679, %v2698
        %v2700 = vadd.f32 %v2699, 1.0
        %v2701 = vrcp.pop %v2700
        %v2702 = vmul.f32 %v2700, %v2701
        %v2703 = vsub.f32 1.0, %v2702
        %v2704 = vmul.f32 %v2701, %v2703
        %v2705 = vadd.f32 %v2701, %v2704
        %vm2706 = vweird.f32 %v2700
        %vm2707 = vweird.f32 %v2701
        %vm2708 = vmor %vm2706, %vm2707
        %v2709 = vsel %vm2708, %v2701, %v2705
        %v2710 = vand.u32 2147483647, %v2700
        %vm2711 = vcmp.eq.f32.partialorder %v2710, 8.507059e+37
        %v2712 = vand.u32 %v2700, 2147483648
        %v2713 = vor.u32 1.1754944e-38, %v2712
        %v2714 = vsel %vm2711, %v2713, %v2709
        %v2715 = vmul.f32 %v2690, %v2714
        %v2716 = vmin.f32 %v2715, 1.0
        %v2717 = vmax.f32 %v2716, -1.0
        %v2718 = vadd.f32 %v2357, 1.0
        %v2719 = vadd.f32 %v2397, 1.0
        %v2720 = vadd.f32 %v2437, 1.0
        %v2721 = vadd.f32 %v2477, 1.0
        %v2722 = vadd.f32 %v2517, 1.0
        %v2723 = vadd.f32 %v2557, 1.0
        %v2724 = vadd.f32 %v2597, 1.0
        %v2725 = vadd.f32 %v2637, 1.0
        %v2726 = vadd.f32 %v2677, 1.0
        %v2727 = vadd.f32 %v2717, 1.0
        %v2728 = vmul.f32 %v2298, %v2718
        %v2729 = vmul.f32 %v2299, %v2719
        %v2730 = vmul.f32 %v2300, %v2720
        %v2731 = vmul.f32 %v2301, %v2721
        %v2732 = vmul.f32 %v2302, %v2722
        %v2733 = vmul.f32 %v2303, %v2723
        %v2734 = vmul.f32 %v2304, %v2724
        %v2735 = vmul.f32 %v2305, %v2725
        %v2736 = vmul.f32 %v2306, %v2726
        %v2737 = vmul.f32 %v2307, %v2727
        %v2738 = vpack.c.bf16 %v2730, %v2728
        %v2739 = vpack.c.bf16 %v2731, %v2729
        %v2740 = vpack.c.bf16 %v2734, %v2732
        %v2741 = vpack.c.bf16 %v2735, %v2733
        %v2742 = vpack.c.bf16 %v2736, %v2736
        %v2743 = vpack.c.bf16 %v2737, %v2737
        %v2744 = vperm.slane %v1336, 0
        %v2777 = vunpack.c.l.b16 %v1361
        %v2778 = vunpack.c.l.b16 %v1362
        %v2779 = vunpack.c.l.b16 %v1363
        %v2780 = vunpack.c.l.b16 %v1364
        %v2781 = vunpack.c.l.b16 %v1365
        %v2782 = vunpack.c.l.b16 %v1366
        %v2783 = vunpack.c.l.b16 %v1367
        %v2784 = vunpack.c.l.b16 %v1368
        %v2785 = vunpack.c.l.b16 %v1369
        %v2786 = vunpack.c.l.b16 %v1370
        %v2787 = vunpack.c.l.b16 %v1371
        %v2788 = vunpack.c.l.b16 %v1372
        %v2789 = vunpack.c.l.b16 %v1373
        %v2790 = vunpack.c.l.b16 %v1374
        %v2791 = vunpack.c.l.b16 %v1375
        %v2792 = vunpack.c.l.b16 %v1376
        %v2793 = vunpack.c.l.b16 %v1377
        %v2794 = vunpack.c.l.b16 %v1378
        %v2795 = vunpack.c.l.b16 %v1379
        %v2796 = vunpack.c.l.b16 %v1380
        %v2797 = vunpack.c.l.b16 %v1381
        %v2798 = vunpack.c.l.b16 %v1382
        %v2799 = vunpack.c.l.b16 %v1383
        %v2800 = vunpack.c.l.b16 %v1384
        %v2801 = vunpack.c.l.b16 %v1385
        %v2802 = vunpack.c.l.b16 %v1386
        %v2803 = vunpack.c.l.b16 %v1387
        %v2804 = vunpack.c.l.b16 %v1388
        %v2805 = vunpack.c.l.b16 %v1389
        %v2806 = vunpack.c.l.b16 %v1390
        %v2807 = vunpack.c.l.b16 %v1391
        %v2808 = vunpack.c.l.b16 %v1392
        %v2809 = vpack.c.b16 %v2778, %v2777
        %v2810 = vpack.c.b16 %v2780, %v2779
        %v2811 = vpack.c.b16 %v2782, %v2781
        %v2812 = vpack.c.b16 %v2784, %v2783
        %v2813 = vpack.c.b16 %v2786, %v2785
        %v2814 = vpack.c.b16 %v2788, %v2787
        %v2815 = vpack.c.b16 %v2790, %v2789
        %v2816 = vpack.c.b16 %v2792, %v2791
        %v2817 = vpack.c.b16 %v2794, %v2793
        %v2818 = vpack.c.b16 %v2796, %v2795
        %v2819 = vpack.c.b16 %v2798, %v2797
        %v2820 = vpack.c.b16 %v2800, %v2799
        %v2821 = vpack.c.b16 %v2802, %v2801
        %v2822 = vpack.c.b16 %v2804, %v2803
        %v2823 = vpack.c.b16 %v2806, %v2805
        %v2824 = vpack.c.b16 %v2808, %v2807
        %2841 = vmatpush.bf16.msra.mxu0 %v2816
        %2842 = vmatpush.bf16.msra.mxu0 %v2815
        %2843 = vmatpush.bf16.msra.mxu0 %v2814
        %2844 = vmatpush.bf16.msra.mxu0 %v2813
        %2845 = vmatpush.bf16.msra.mxu0 %v2812
        %2846 = vmatpush.bf16.msra.mxu0 %v2811
        %2847 = vmatpush.bf16.msra.mxu0 %v2810
        %2848 = vmatpush.bf16.msra.mxu0 %v2809
        %2849 = vmatmul.bf16.gmra.mxu0 %v2738
        %v2850 = vpop.f32.mrf.mxu0
        %v2851 = vadd.f32 %v2744, %v2850
        %v2852 = vpop.f32.mrf.mxu0
        %2853 = vmatmul.bf16.gmra.mxu0 %v2740
        %v2854 = vpop.f32.mrf.mxu0
        %v2855 = vpop.f32.mrf.mxu0
        %2856 = vmatmul.bf16.gmra.mxu0 %v2742
        %v2857 = vpop.f32.mrf.mxu0
        %v2858 = vpop.f32.mrf.mxu0
        %2859 = vdwg.mxu0
        %2860 = vmatpush.bf16.msra.mxu0 %v2824
        %2861 = vmatpush.bf16.msra.mxu0 %v2823
        %2862 = vmatpush.bf16.msra.mxu0 %v2822
        %2863 = vmatpush.bf16.msra.mxu0 %v2821
        %2864 = vmatpush.bf16.msra.mxu0 %v2820
        %2865 = vmatpush.bf16.msra.mxu0 %v2819
        %2866 = vmatpush.bf16.msra.mxu0 %v2818
        %2867 = vmatpush.bf16.msra.mxu0 %v2817
        %2868 = vmatmul.bf16.gmra.mxu0 %v2739
        %v2869 = vpop.f32.mrf.mxu0
        %v2870 = vadd.f32 %v2851, %v2869
        %v2871 = vpop.f32.mrf.mxu0
        %2872 = vmatmul.bf16.gmra.mxu0 %v2741
        %v2873 = vpop.f32.mrf.mxu0
        %v2874 = vpop.f32.mrf.mxu0
        %2875 = vmatmul.bf16.gmra.mxu0 %v2743
        %v2876 = vpop.f32.mrf.mxu0
        %v2877 = vpop.f32.mrf.mxu0
        %2878 = vdwg.mxu0
        %v2879 = vadd.f32 %v2062, %v2870
        %v2880 = vsel %vm2080, %v2879, 0.0
        %2881 = vadd.xlane.f32.xlu0 %v2880
        %v2882 = vpop.xlane.xlu0 %2881
        %v2883 = vmul.f32 %v2882, %v2090
        %v2884 = vsub.f32 %v2879, %v2883
        %v2885 = vmul.f32 %v2884, %v2884
        %v2886 = vsel %vm2080, %v2885, 0.0
        %2887 = vadd.xlane.f32.xlu0 %v2886
        %v2888 = vpop.xlane.xlu0 %2887
        %v2889 = vmul.f32 %v2888, %v2090
        %v2890 = vadd.f32 %v2889, 1e-06
        %v2891 = vrsqrt.pop %v2890
        %v2892 = vmul.f32 %v2891, %v2890
        %v2893 = vmul.f32 %v2892, %v2891
        %v2894 = vmul.f32 0.5, %v2893
        %v2895 = vsub.f32 1.5, %v2894
        %v2896 = vmul.f32 %v2891, %v2895
        %vm2897 = vweird.f32 %v2890
        %vm2898 = vweird.f32 %v2891
        %vm2899 = vmor %vm2897, %vm2898
        %v2900 = vsel %vm2899, %v2891, %v2896
        %v2901 = vmul.f32 %v2884, %v2900
        %v2903 = vrot.slane %v1336, 1
        %v2905 = vmul.f32 %v2901, %v2903
        %v2906 = vrot.slane %v1336, 2
        %v2908 = vadd.f32 %v2905, %v2906
        %2909 = vst.msk [vmem:[%s405] sm:$0x1] %vm2080, %v2908
        %s2910 = sand.u32 %s291, 1
        %s2911 = scalar_lea.sflag [#allocation3], %s2910
        %s2912 = sand.u32 %s291, 1
        %s2913 = scalar_lea.vmem [#allocation2], %s2912
        // Predicated region
        $region69: #{mfvit_forward.1} parent=67 // pred_check
          %p2914 = pneg %p301
        $region70: #{mfvit_forward.1} parent=67 // pred_check_branch
          %2916 = sbr.rel (%p2914) target = $region72
        $region71: #{mfvit_forward.1} parent=67 // pred_region
          %2918 = vsyncadd %s2911, 0
          %s2919 = scalar_lea.hbm %s12, %s26
          %s2921 = sshll.u32 %s2913, 4
          %s2922 = int_to_ptr.vmem [resolvable:$true] %s2921
          %s2923 = sshll.u32 %s2919, 4
          %s2924 = int_to_ptr.hbm [resolvable:$true] %s2923
          %2926 = dma.vmem_to_hbm [thread:$0]  %s2922, 16, %s2924, %s2911
        $region72: #{mfvit_forward.1} parent=67 // pred_fallthru
          _
      $region68: #{mfvit_forward.1} parent=5 // pred_fallthru
        _
      %p2927 = scmp.le.s32.totalorder 2, %s21
      // Predicated region
      $region73: #{mfvit_forward.1} parent=5 // pred_check
        %p2928 = pneg %p2927
      $region74: #{mfvit_forward.1} parent=5 // pred_check_branch
        %2930 = sbr.rel (%p2928) target = $region76
      $region75: #{mfvit_forward.1} parent=5 // pred_region
        %s2931 = ssub.s32 %s21, 2
        // Predicated region
        $region77: #{mfvit_forward.1} parent=75 // pred_check
          %p2932 = pneg %p307
        $region78: #{mfvit_forward.1} parent=75 // pred_check_branch
          %2934 = sbr.rel (%p2932) target = $region80
        $region79: #{mfvit_forward.1} parent=75 // pred_region
          %s2935 = sand.u32 %s292, 1
          %s2936 = scalar_lea.sflag [#allocation3], %s2935
          %s2937 = sand.u32 %s292, 1
          %s2938 = scalar_lea.vmem [#allocation2], %s2937
          %2940 = dma.done %s2936, 16
        $region80: #{mfvit_forward.1} parent=75 // pred_fallthru
          _
      $region76: #{mfvit_forward.1} parent=5 // pred_fallthru
        _
    $region6: #{mfvit_forward.1} parent=1 // loop_footer
      %s25 = sadd.s32 1, %s21
    $region7: #{mfvit_forward.1} parent=1 // loop_footer_branch
      %20 = sbr.rel target = $region3
    $region8: #{mfvit_forward.1} parent=1 // loop_exit
      _
    %2941 = vsyncpa [#allocation3], 1
    %s2942 = scalar_lea.sflag [#allocation3], 1
    %2943 = vsyncpa %s2942, 1

</llo_original>
